<compile_context>
chip_gen: v7x
topology: tpu7x:2x2x1
jax: 0.10.0
libtpu: 0.0.40
codegen_flags: <defaults>
</compile_context>

<pallas_src>
import functools

import jax
import jax.numpy as jnp
import numpy as np
from jax.experimental import pallas as pl
from jax.experimental.pallas import tpu as pltpu


# ---------------------------------------------------------------------------
# Math helpers (shared by kernel and pure-JAX reference)
# ---------------------------------------------------------------------------
def _sigmoid(x):
    # Exact sigmoid via tanh -> EUP slot, no divide on the serial gate chain.
    return 0.5 * (jnp.tanh(0.5 * x) + 1.0)


def _leaky_relu(x, slope=0.01):
    return jnp.where(x > 0, x, slope * x)


def _layernorm(x, gamma, beta, eps=1e-5):
    # Two-pass (centered) LayerNorm: robust to |mean| >> std; runs once, off the serial chain.
    inv_n = 1.0 / x.shape[-1]
    mean = jnp.sum(x, axis=-1, keepdims=True) * inv_n
    xc = x - mean
    var = jnp.sum(xc * xc, axis=-1, keepdims=True) * inv_n
    return xc * (gamma * jax.lax.rsqrt(var + eps)) + beta


# ---------------------------------------------------------------------------
# Pallas kernel: whole sequence in one invocation
# ---------------------------------------------------------------------------
def gru_policy_kernel(
    x_ref,        # (T*Bp, S)      time-major rows: row = t*Bp + b   (batch zero-padded)
    h0_ref,       # (Bp, Hp)       lane/sublane-padded initial hidden state
    wi_ref,       # (S, 3*Hp)      [W_ir | W_iz | W_in], each gate in its own 128-lane block
    wh_ref,       # (Hp, 3*Hp)     [W_hr | W_hz | W_hn]
    bi_ref,       # (1, 3*Hp)      [b_ir+b_hr | b_iz+b_hz | b_in]
    bhn_ref,      # (1, Hp)        b_hn (kept separate because of the r * (...) gating)
    w1_ref, b1_ref, g1_ref, be1_ref,   # w1: (Hp, H) row-padded; LN params over true H
    w2_ref, b2_ref, g2_ref, be2_ref,   # (H, H2), LN params over true H2
    w3_ref, b3_ref,                    # (H2, Apad), (1, Apad)  zero-padded lane-dense head
    act_ref,      # out: (T*Bp, Apad)
    hn_ref,       # out: (Bp, Hp)
    proj_scr,     # VMEM (T*Bp, 3*Hp)
    hseq_scr,     # VMEM (T*Bp, Hp)
):
    TB = x_ref.shape[0]
    Bp, Hp = h0_ref.shape
    T = TB // Bp

    dot = functools.partial(jnp.dot, preferred_element_type=jnp.float32)

    # --- (1) Hoisted input projection for all timesteps (off the serial chain) ---
    proj_scr[...] = dot(x_ref[...], wi_ref[...]) + bi_ref[...]

    # Loop-invariant loads hoisted out of the recurrence.
    wh = wh_ref[...]
    bhn = bhn_ref[...]

    # --- (2) Serial GRU recurrence: one fused (Bp,Hp)@(Hp,3*Hp) matmul per step,
    #         all gate slices lane-tile aligned, full-tile hseq store ---
    def step(t, h):
        row = pl.multiple_of(t * Bp, Bp)                   # sublane-tile-aligned offset
        p = proj_scr[pl.ds(row, Bp), :]                    # (Bp, 3*Hp)
        hh = dot(h, wh)                                    # (Bp, 3*Hp)
        rz = _sigmoid(p[:, : 2 * Hp] + hh[:, : 2 * Hp])    # one EUP push for r and z
        r = rz[:, :Hp]
        z = rz[:, Hp: 2 * Hp]
        n = jnp.tanh(p[:, 2 * Hp:] + r * (hh[:, 2 * Hp:] + bhn))
        h_new = h + (1.0 - z) * (n - h)
        hseq_scr[pl.ds(row, Bp), :] = h_new                # full (8,128)-tile store
        return h_new

    unroll = T if T <= 16 else 8
    h_last = jax.lax.fori_loop(0, T, step, h0_ref[...], unroll=unroll)
    hn_ref[...] = h_last

    # --- (3) Batched MLP head over all T*Bp rows at once (padded h lanes hit zero rows of w1) ---
    y = dot(hseq_scr[...], w1_ref[...]) + b1_ref[...]
    y = _leaky_relu(_layernorm(y, g1_ref[...], be1_ref[...]))
    y = dot(y, w2_ref[...]) + b2_ref[...]
    y = _leaky_relu(_layernorm(y, g2_ref[...], be2_ref[...]))
    y = dot(y, w3_ref[...]) + b3_ref[...]
    act_ref[...] = jnp.tanh(y)                             # single lane-dense writeback


# ---------------------------------------------------------------------------
# Wrapper: matches GRUPolicy.forward(state_seq, hidden) semantics
# ---------------------------------------------------------------------------
def _fuse_params(params, hpad, apad):
    """Fuse per-gate GRU params, padding each gate to its own 128-lane block; pad the head."""
    H = params["whr"].shape[0]
    A = params["w3"].shape[-1]

    def pad_cols(w, width):
        return jnp.pad(w, ((0, 0), (0, width - w.shape[1])))

    # Gate blocks: real weights in lanes [0:H] of each hpad-wide block, zeros elsewhere.
    wi = jnp.concatenate(
        [pad_cols(params["wir"], hpad),
         pad_cols(params["wiz"], hpad),
         pad_cols(params["win"], hpad)], axis=1)                       # (S, 3*hpad)

    def pad_hh(w):  # (H,H) -> (hpad,hpad), zero rows/cols
        return jnp.pad(w, ((0, hpad - H), (0, hpad - H)))

    wh = jnp.concatenate(
        [pad_hh(params["whr"]), pad_hh(params["whz"]), pad_hh(params["whn"])],
        axis=1)                                                        # (hpad, 3*hpad)

    bi = jnp.concatenate(
        [pad_cols(params["bir"] + params["bhr"], hpad),
         pad_cols(params["biz"] + params["bhz"], hpad),
         pad_cols(params["bin"], hpad)], axis=1)                       # (1, 3*hpad)
    bhn = pad_cols(params["bhn"], hpad)                                # (1, hpad)

    w1 = jnp.pad(params["w1"], ((0, hpad - H), (0, 0)))                # (hpad, H): zero rows for padded h lanes
    w3p = jnp.pad(params["w3"], ((0, 0), (0, apad - A)))               # (H2, apad)
    b3p = jnp.pad(params["b3"], ((0, 0), (0, apad - A)))               # (1, apad)

    return [
        wi, wh, bi, bhn,
        w1, params["b1"], params["g1"], params["be1"],
        params["w2"], params["b2"], params["g2"], params["be2"],
        w3p, b3p,
    ]


def gru_policy_forward(params, state_seq, hidden):
    """state_seq: (B,T,S) f32, hidden: (1,B,H) f32 -> (act_seq (B,T,A), hn (1,B,H))."""
    B, T, S = state_seq.shape
    H = hidden.shape[-1]
    A = params["w3"].shape[-1]

    LANE, SUB = 128, 8
    Hpad = ((H + LANE - 1) // LANE) * LANE
    Apad = ((A + LANE - 1) // LANE) * LANE
    Bpad = ((B + SUB - 1) // SUB) * SUB

    # Time-major, batch zero-padded to a full sublane tile, flattened so the whole input
    # projection is a single (T*Bpad, S) @ (S, 3*Hpad) matmul.
    x_tm = jnp.transpose(state_seq, (1, 0, 2)).astype(jnp.float32)           # (T, B, S)
    x_tm = jnp.pad(x_tm, ((0, 0), (0, Bpad - B), (0, 0))).reshape(T * Bpad, S)
    h0 = jnp.pad(hidden[0].astype(jnp.float32), ((0, Bpad - B), (0, Hpad - H)))

    weights = _fuse_params(params, Hpad, Apad)

    def full_spec(arr):
        nd = arr.ndim
        return pl.BlockSpec(arr.shape, lambda i, _nd=nd: (0,) * _nd)

    in_specs = [full_spec(x_tm), full_spec(h0)] + [full_spec(w) for w in weights]
    out_specs = (
        pl.BlockSpec((T * Bpad, Apad), lambda i: (0, 0)),
        pl.BlockSpec((Bpad, Hpad), lambda i: (0, 0)),
    )

    act_flat, hn = pl.pallas_call(
        gru_policy_kernel,
        out_shape=(
            jax.ShapeDtypeStruct((T * Bpad, Apad), jnp.float32),
            jax.ShapeDtypeStruct((Bpad, Hpad), jnp.float32),
        ),
        grid=(1,),
        in_specs=in_specs,
        out_specs=out_specs,
        scratch_shapes=[
            pltpu.VMEM((T * Bpad, 3 * Hpad), jnp.float32),   # hoisted input projections
            pltpu.VMEM((T * Bpad, Hpad), jnp.float32),       # full hidden-state sequence
        ],
        compiler_params=pltpu.CompilerParams(dimension_semantics=("arbitrary",)),
    )(x_tm, h0, *weights)

    act_seq = jnp.transpose(act_flat.reshape(T, Bpad, Apad)[:, :B, :A], (1, 0, 2))
    return act_seq, hn[:B, :H][None]


# ---------------------------------------------------------------------------
# Deterministic parameter init (PyTorch-like uniform bounds), stored pre-transposed
# so the kernel computes x @ W.
# ---------------------------------------------------------------------------
def init_params(key, state_dim, action_dim, hidden_dim):
    S, A, H = state_dim, action_dim, hidden_dim
    H2 = H // 2
    keys = jax.random.split(key, 18)

    def unif(k, shape, bound):
        return jax.random.uniform(k, shape, jnp.float32, -bound, bound)

    kg = 1.0 / np.sqrt(H)
    p = {}
    p["wir"] = unif(keys[0], (S, H), kg)
    p["wiz"] = unif(keys[1], (S, H), kg)
    p["win"] = unif(keys[2], (S, H), kg)
    p["whr"] = unif(keys[3], (H, H), kg)
    p["whz"] = unif(keys[4], (H, H), kg)
    p["whn"] = unif(keys[5], (H, H), kg)
    p["bir"] = unif(keys[6], (1, H), kg)
    p["biz"] = unif(keys[7], (1, H), kg)
    p["bin"] = unif(keys[8], (1, H), kg)
    p["bhr"] = unif(keys[9], (1, H), kg)
    p["bhz"] = unif(keys[10], (1, H), kg)
    p["bhn"] = unif(keys[11], (1, H), kg)
    k1 = 1.0 / np.sqrt(H)
    k2 = 1.0 / np.sqrt(H)
    k3 = 1.0 / np.sqrt(H2)
    p["w1"] = unif(keys[12], (H, H), k1)
    p["b1"] = unif(keys[13], (1, H), k1)
    p["g1"] = jnp.ones((1, H), jnp.float32)
    p["be1"] = jnp.zeros((1, H), jnp.float32)
    p["w2"] = unif(keys[14], (H, H2), k2)
    p["b2"] = unif(keys[15], (1, H2), k2)
    p["g2"] = jnp.ones((1, H2), jnp.float32)
    p["be2"] = jnp.zeros((1, H2), jnp.float32)
    p["w3"] = unif(keys[16], (H2, A), k3)
    p["b3"] = unif(keys[17], (1, A), k3)
    return p


# ---------------------------------------------------------------------------
# Pure-JAX reference (per-gate GRU, standard LayerNorm) for correctness check
# ---------------------------------------------------------------------------
def _layernorm_ref(x, gamma, beta, eps=1e-5):
    mu = jnp.mean(x, axis=-1, keepdims=True)
    var = jnp.mean((x - mu) ** 2, axis=-1, keepdims=True)
    return (x - mu) * jax.lax.rsqrt(var + eps) * gamma + beta


def ref_forward(params, state_seq, hidden):
    x = jnp.transpose(state_seq, (1, 0, 2)).astype(jnp.float32)  # (T, B, S)
    h = hidden[0].astype(jnp.float32)                             # (B, H)

    def step(h, xt):
        r = _sigmoid(xt @ params["wir"] + params["bir"] + h @ params["whr"] + params["bhr"])
        z = _sigmoid(xt @ params["wiz"] + params["biz"] + h @ params["whz"] + params["bhz"])
        n = jnp.tanh(xt @ params["win"] + params["bin"]
                     + r * (h @ params["whn"] + params["bhn"]))
        h_new = (1.0 - z) * n + z * h
        y = h_new @ params["w1"] + params["b1"]
        y = _leaky_relu(_layernorm_ref(y, params["g1"], params["be1"]))
        y = y @ params["w2"] + params["b2"]
        y = _leaky_relu(_layernorm_ref(y, params["g2"], params["be2"]))
        y = y @ params["w3"] + params["b3"]
        return h_new, jnp.tanh(y)

    hn, acts = jax.lax.scan(step, h, x)
    return jnp.transpose(acts, (1, 0, 2)), hn[None]


if __name__ == "__main__":
    # Small, module-consistent shapes: batch=2, seq=8, state_dim=8, hidden_dim=32, action_dim=4
    B, T, S, H, A = 2, 8, 8, 32, 4

    root = jax.random.PRNGKey(0)
    kparam, kx = jax.random.split(root)
    params = init_params(kparam, S, A, H)

    state_seq = jax.random.normal(kx, (B, T, S), jnp.float32)
    hidden = jnp.zeros((1, B, H), jnp.float32)  # GRUPolicy.init_hidden(batch_size)

    fwd = jax.jit(gru_policy_forward)
    act_seq, hn = fwd(params, state_seq, hidden)
    jax.block_until_ready((act_seq, hn))

    ref_act, ref_hn = ref_forward(params, state_seq, hidden)
    np.testing.assert_allclose(np.asarray(act_seq), np.asarray(ref_act), rtol=1e-5, atol=2e-5)
    np.testing.assert_allclose(np.asarray(hn), np.asarray(ref_hn), rtol=1e-5, atol=2e-5)

    assert act_seq.shape == (B, T, A) and hn.shape == (1, B, H)
    print("KERNEL_OK")
</pallas_src>

<mosaic_0001>
module attributes {stable_mosaic.version = 11 : i64} {
  func.func @gru_policy_kernel(%arg0: i32, %arg1: memref<64x8xf32, #tpu.memory_space<vmem>>, %arg2: memref<8x128xf32, #tpu.memory_space<vmem>>, %arg3: memref<8x384xf32, #tpu.memory_space<vmem>>, %arg4: memref<128x384xf32, #tpu.memory_space<vmem>>, %arg5: memref<1x384xf32, #tpu.memory_space<vmem>>, %arg6: memref<1x128xf32, #tpu.memory_space<vmem>>, %arg7: memref<128x32xf32, #tpu.memory_space<vmem>>, %arg8: memref<1x32xf32, #tpu.memory_space<vmem>>, %arg9: memref<1x32xf32, #tpu.memory_space<vmem>>, %arg10: memref<1x32xf32, #tpu.memory_space<vmem>>, %arg11: memref<32x16xf32, #tpu.memory_space<vmem>>, %arg12: memref<1x16xf32, #tpu.memory_space<vmem>>, %arg13: memref<1x16xf32, #tpu.memory_space<vmem>>, %arg14: memref<1x16xf32, #tpu.memory_space<vmem>>, %arg15: memref<16x128xf32, #tpu.memory_space<vmem>>, %arg16: memref<1x128xf32, #tpu.memory_space<vmem>>, %arg17: memref<64x128xf32, #tpu.memory_space<vmem>>, %arg18: memref<8x128xf32, #tpu.memory_space<vmem>>, %arg19: memref<64x384xf32, #tpu.memory_space<vmem>>, %arg20: memref<64x128xf32, #tpu.memory_space<vmem>>) attributes {dimension_semantics = [#tpu.dimension_semantics<arbitrary>], iteration_bounds = array<i64: 1>, scalar_prefetch = 0 : i64, scratch_operands = 2 : i64, tpu.core_type = #tpu.core_type<tc>, window_params = [{pipeline_mode = #tpu.pipeline_mode<synchronous>, transform_indices = @transform_0, window_bounds = array<i64: 64, 8>}, {pipeline_mode = #tpu.pipeline_mode<synchronous>, transform_indices = @transform_1, window_bounds = array<i64: 8, 128>}, {pipeline_mode = #tpu.pipeline_mode<synchronous>, transform_indices = @transform_2, window_bounds = array<i64: 8, 384>}, {pipeline_mode = #tpu.pipeline_mode<synchronous>, transform_indices = @transform_3, window_bounds = array<i64: 128, 384>}, {pipeline_mode = #tpu.pipeline_mode<synchronous>, transform_indices = @transform_4, window_bounds = array<i64: 1, 384>}, {pipeline_mode = #tpu.pipeline_mode<synchronous>, transform_indices = @transform_5, window_bounds = array<i64: 1, 128>}, {pipeline_mode = #tpu.pipeline_mode<synchronous>, transform_indices = @transform_6, window_bounds = array<i64: 128, 32>}, {pipeline_mode = #tpu.pipeline_mode<synchronous>, transform_indices = @transform_7, window_bounds = array<i64: 1, 32>}, {pipeline_mode = #tpu.pipeline_mode<synchronous>, transform_indices = @transform_8, window_bounds = array<i64: 1, 32>}, {pipeline_mode = #tpu.pipeline_mode<synchronous>, transform_indices = @transform_9, window_bounds = array<i64: 1, 32>}, {pipeline_mode = #tpu.pipeline_mode<synchronous>, transform_indices = @transform_10, window_bounds = array<i64: 32, 16>}, {pipeline_mode = #tpu.pipeline_mode<synchronous>, transform_indices = @transform_11, window_bounds = array<i64: 1, 16>}, {pipeline_mode = #tpu.pipeline_mode<synchronous>, transform_indices = @transform_12, window_bounds = array<i64: 1, 16>}, {pipeline_mode = #tpu.pipeline_mode<synchronous>, transform_indices = @transform_13, window_bounds = array<i64: 1, 16>}, {pipeline_mode = #tpu.pipeline_mode<synchronous>, transform_indices = @transform_14, window_bounds = array<i64: 16, 128>}, {pipeline_mode = #tpu.pipeline_mode<synchronous>, transform_indices = @transform_15, window_bounds = array<i64: 1, 128>}, {pipeline_mode = #tpu.pipeline_mode<synchronous>, transform_indices = @transform_16, window_bounds = array<i64: 64, 128>}, {pipeline_mode = #tpu.pipeline_mode<synchronous>, transform_indices = @transform_17, window_bounds = array<i64: 8, 128>}]} {
    %c0 = arith.constant 0 : index
    %c0_0 = arith.constant 0 : index
    %0 = vector.load %arg1[%c0, %c0_0] : memref<64x8xf32, #tpu.memory_space<vmem>>, vector<64x8xf32>
    %c0_1 = arith.constant 0 : index
    %c0_2 = arith.constant 0 : index
    %1 = vector.load %arg3[%c0_1, %c0_2] : memref<8x384xf32, #tpu.memory_space<vmem>>, vector<8x384xf32>
    %cst = arith.constant dense<0.000000e+00> : vector<64x384xf32>
    %2 = tpu.matmul %0, %1, %cst {dimension_numbers = #tpu.dot_dimension_numbers<[1], [0], [0], [1], [0, 0, 1, 1], [], []>} : vector<64x8xf32>, vector<8x384xf32>, vector<64x384xf32> -> vector<64x384xf32>
    %c0_3 = arith.constant 0 : index
    %c0_4 = arith.constant 0 : index
    %3 = vector.load %arg5[%c0_3, %c0_4] : memref<1x384xf32, #tpu.memory_space<vmem>>, vector<1x384xf32>
    %4 = vector.broadcast %3 : vector<1x384xf32> to vector<64x384xf32>
    %5 = arith.addf %2, %4 : vector<64x384xf32>
    %c0_5 = arith.constant 0 : index
    %c0_6 = arith.constant 0 : index
    %6 = vector.load %arg19[%c0_5, %c0_6] : memref<64x384xf32, #tpu.memory_space<vmem>>, vector<64x384xf32>
    tpu.vector_store %arg19[%c0_5, %c0_6], %5 {strides = array<i32>} : memref<64x384xf32, #tpu.memory_space<vmem>>, vector<64x384xf32>,
    %c0_7 = arith.constant 0 : index
    %c0_8 = arith.constant 0 : index
    %7 = vector.load %arg4[%c0_7, %c0_8] : memref<128x384xf32, #tpu.memory_space<vmem>>, vector<128x384xf32>
    %c0_9 = arith.constant 0 : index
    %c0_10 = arith.constant 0 : index
    %8 = vector.load %arg6[%c0_9, %c0_10] : memref<1x128xf32, #tpu.memory_space<vmem>>, vector<1x128xf32>
    %c0_11 = arith.constant 0 : index
    %c0_12 = arith.constant 0 : index
    %9 = vector.load %arg2[%c0_11, %c0_12] : memref<8x128xf32, #tpu.memory_space<vmem>>, vector<8x128xf32>
    %c0_i32 = arith.constant 0 : i32
    %c8_i32 = arith.constant 8 : i32
    %10 = arith.muli %c0_i32, %c8_i32 : i32
    %11 = tpu.assume_multiple %10, 8 : i32
    %12 = arith.index_cast %11 : i32 to index
    %c0_13 = arith.constant 0 : index
    %13 = vector.load %arg19[%12, %c0_13] : memref<64x384xf32, #tpu.memory_space<vmem>>, vector<8x384xf32>
    %cst_14 = arith.constant dense<0.000000e+00> : vector<8x384xf32>
    %14 = tpu.matmul %9, %7, %cst_14 {dimension_numbers = #tpu.dot_dimension_numbers<[1], [0], [0], [1], [0, 0, 1, 1], [], []>} : vector<8x128xf32>, vector<128x384xf32>, vector<8x384xf32> -> vector<8x384xf32>
    %15 = vector.extract_strided_slice %13 {offsets = [0, 0], sizes = [8, 256], strides = [1, 1]} : vector<8x384xf32> to vector<8x256xf32>
    %16 = vector.extract_strided_slice %14 {offsets = [0, 0], sizes = [8, 256], strides = [1, 1]} : vector<8x384xf32> to vector<8x256xf32>
    %17 = arith.addf %15, %16 : vector<8x256xf32>
    %cst_15 = arith.constant 5.000000e-01 : f32
    %18 = vector.broadcast %cst_15 : f32 to vector<8x256xf32>
    %19 = arith.mulf %18, %17 : vector<8x256xf32>
    %20 = math.tanh %19 : vector<8x256xf32>
    %cst_16 = arith.constant 1.000000e+00 : f32
    %21 = vector.broadcast %cst_16 : f32 to vector<8x256xf32>
    %22 = arith.addf %20, %21 : vector<8x256xf32>
    %cst_17 = arith.constant 5.000000e-01 : f32
    %23 = vector.broadcast %cst_17 : f32 to vector<8x256xf32>
    %24 = arith.mulf %23, %22 : vector<8x256xf32>
    %25 = vector.extract_strided_slice %24 {offsets = [0, 0], sizes = [8, 128], strides = [1, 1]} : vector<8x256xf32> to vector<8x128xf32>
    %26 = vector.extract_strided_slice %24 {offsets = [0, 128], sizes = [8, 128], strides = [1, 1]} : vector<8x256xf32> to vector<8x128xf32>
    %27 = vector.extract_strided_slice %13 {offsets = [0, 256], sizes = [8, 128], strides = [1, 1]} : vector<8x384xf32> to vector<8x128xf32>
    %28 = vector.extract_strided_slice %14 {offsets = [0, 256], sizes = [8, 128], strides = [1, 1]} : vector<8x384xf32> to vector<8x128xf32>
    %29 = vector.broadcast %8 : vector<1x128xf32> to vector<8x128xf32>
    %30 = arith.addf %28, %29 : vector<8x128xf32>
    %31 = arith.mulf %25, %30 : vector<8x128xf32>
    %32 = arith.addf %27, %31 : vector<8x128xf32>
    %33 = math.tanh %32 : vector<8x128xf32>
    %cst_18 = arith.constant 1.000000e+00 : f32
    %34 = vector.broadcast %cst_18 : f32 to vector<8x128xf32>
    %35 = arith.subf %34, %26 : vector<8x128xf32>
    %36 = arith.subf %33, %9 : vector<8x128xf32>
    %37 = arith.mulf %35, %36 : vector<8x128xf32>
    %38 = arith.addf %9, %37 : vector<8x128xf32>
    %39 = arith.index_cast %11 : i32 to index
    %c0_19 = arith.constant 0 : index
    %40 = vector.load %arg20[%39, %c0_19] : memref<64x128xf32, #tpu.memory_space<vmem>>, vector<8x128xf32>
    tpu.vector_store %arg20[%39, %c0_19], %38 {strides = array<i32>} : memref<64x128xf32, #tpu.memory_space<vmem>>, vector<8x128xf32>,
    %c1_i32 = arith.constant 1 : i32
    %c8_i32_20 = arith.constant 8 : i32
    %41 = arith.muli %c1_i32, %c8_i32_20 : i32
    %42 = tpu.assume_multiple %41, 8 : i32
    %43 = arith.index_cast %42 : i32 to index
    %c0_21 = arith.constant 0 : index
    %44 = vector.load %arg19[%43, %c0_21] : memref<64x384xf32, #tpu.memory_space<vmem>>, vector<8x384xf32>
    %cst_22 = arith.constant dense<0.000000e+00> : vector<8x384xf32>
    %45 = tpu.matmul %38, %7, %cst_22 {dimension_numbers = #tpu.dot_dimension_numbers<[1], [0], [0], [1], [0, 0, 1, 1], [], []>} : vector<8x128xf32>, vector<128x384xf32>, vector<8x384xf32> -> vector<8x384xf32>
    %46 = vector.extract_strided_slice %44 {offsets = [0, 0], sizes = [8, 256], strides = [1, 1]} : vector<8x384xf32> to vector<8x256xf32>
    %47 = vector.extract_strided_slice %45 {offsets = [0, 0], sizes = [8, 256], strides = [1, 1]} : vector<8x384xf32> to vector<8x256xf32>
    %48 = arith.addf %46, %47 : vector<8x256xf32>
    %cst_23 = arith.constant 5.000000e-01 : f32
    %49 = vector.broadcast %cst_23 : f32 to vector<8x256xf32>
    %50 = arith.mulf %49, %48 : vector<8x256xf32>
    %51 = math.tanh %50 : vector<8x256xf32>
    %cst_24 = arith.constant 1.000000e+00 : f32
    %52 = vector.broadcast %cst_24 : f32 to vector<8x256xf32>
    %53 = arith.addf %51, %52 : vector<8x256xf32>
    %cst_25 = arith.constant 5.000000e-01 : f32
    %54 = vector.broadcast %cst_25 : f32 to vector<8x256xf32>
    %55 = arith.mulf %54, %53 : vector<8x256xf32>
    %56 = vector.extract_strided_slice %55 {offsets = [0, 0], sizes = [8, 128], strides = [1, 1]} : vector<8x256xf32> to vector<8x128xf32>
    %57 = vector.extract_strided_slice %55 {offsets = [0, 128], sizes = [8, 128], strides = [1, 1]} : vector<8x256xf32> to vector<8x128xf32>
    %58 = vector.extract_strided_slice %44 {offsets = [0, 256], sizes = [8, 128], strides = [1, 1]} : vector<8x384xf32> to vector<8x128xf32>
    %59 = vector.extract_strided_slice %45 {offsets = [0, 256], sizes = [8, 128], strides = [1, 1]} : vector<8x384xf32> to vector<8x128xf32>
    %60 = vector.broadcast %8 : vector<1x128xf32> to vector<8x128xf32>
    %61 = arith.addf %59, %60 : vector<8x128xf32>
    %62 = arith.mulf %56, %61 : vector<8x128xf32>
    %63 = arith.addf %58, %62 : vector<8x128xf32>
    %64 = math.tanh %63 : vector<8x128xf32>
    %cst_26 = arith.constant 1.000000e+00 : f32
    %65 = vector.broadcast %cst_26 : f32 to vector<8x128xf32>
    %66 = arith.subf %65, %57 : vector<8x128xf32>
    %67 = arith.subf %64, %38 : vector<8x128xf32>
    %68 = arith.mulf %66, %67 : vector<8x128xf32>
    %69 = arith.addf %38, %68 : vector<8x128xf32>
    %70 = arith.index_cast %42 : i32 to index
    %c0_27 = arith.constant 0 : index
    %71 = vector.load %arg20[%70, %c0_27] : memref<64x128xf32, #tpu.memory_space<vmem>>, vector<8x128xf32>
    tpu.vector_store %arg20[%70, %c0_27], %69 {strides = array<i32>} : memref<64x128xf32, #tpu.memory_space<vmem>>, vector<8x128xf32>,
    %c2_i32 = arith.constant 2 : i32
    %c8_i32_28 = arith.constant 8 : i32
    %72 = arith.muli %c2_i32, %c8_i32_28 : i32
    %73 = tpu.assume_multiple %72, 8 : i32
    %74 = arith.index_cast %73 : i32 to index
    %c0_29 = arith.constant 0 : index
    %75 = vector.load %arg19[%74, %c0_29] : memref<64x384xf32, #tpu.memory_space<vmem>>, vector<8x384xf32>
    %cst_30 = arith.constant dense<0.000000e+00> : vector<8x384xf32>
    %76 = tpu.matmul %69, %7, %cst_30 {dimension_numbers = #tpu.dot_dimension_numbers<[1], [0], [0], [1], [0, 0, 1, 1], [], []>} : vector<8x128xf32>, vector<128x384xf32>, vector<8x384xf32> -> vector<8x384xf32>
    %77 = vector.extract_strided_slice %75 {offsets = [0, 0], sizes = [8, 256], strides = [1, 1]} : vector<8x384xf32> to vector<8x256xf32>
    %78 = vector.extract_strided_slice %76 {offsets = [0, 0], sizes = [8, 256], strides = [1, 1]} : vector<8x384xf32> to vector<8x256xf32>
    %79 = arith.addf %77, %78 : vector<8x256xf32>
    %cst_31 = arith.constant 5.000000e-01 : f32
    %80 = vector.broadcast %cst_31 : f32 to vector<8x256xf32>
    %81 = arith.mulf %80, %79 : vector<8x256xf32>
    %82 = math.tanh %81 : vector<8x256xf32>
    %cst_32 = arith.constant 1.000000e+00 : f32
    %83 = vector.broadcast %cst_32 : f32 to vector<8x256xf32>
    %84 = arith.addf %82, %83 : vector<8x256xf32>
    %cst_33 = arith.constant 5.000000e-01 : f32
    %85 = vector.broadcast %cst_33 : f32 to vector<8x256xf32>
    %86 = arith.mulf %85, %84 : vector<8x256xf32>
    %87 = vector.extract_strided_slice %86 {offsets = [0, 0], sizes = [8, 128], strides = [1, 1]} : vector<8x256xf32> to vector<8x128xf32>
    %88 = vector.extract_strided_slice %86 {offsets = [0, 128], sizes = [8, 128], strides = [1, 1]} : vector<8x256xf32> to vector<8x128xf32>
    %89 = vector.extract_strided_slice %75 {offsets = [0, 256], sizes = [8, 128], strides = [1, 1]} : vector<8x384xf32> to vector<8x128xf32>
    %90 = vector.extract_strided_slice %76 {offsets = [0, 256], sizes = [8, 128], strides = [1, 1]} : vector<8x384xf32> to vector<8x128xf32>
    %91 = vector.broadcast %8 : vector<1x128xf32> to vector<8x128xf32>
    %92 = arith.addf %90, %91 : vector<8x128xf32>
    %93 = arith.mulf %87, %92 : vector<8x128xf32>
    %94 = arith.addf %89, %93 : vector<8x128xf32>
    %95 = math.tanh %94 : vector<8x128xf32>
    %cst_34 = arith.constant 1.000000e+00 : f32
    %96 = vector.broadcast %cst_34 : f32 to vector<8x128xf32>
    %97 = arith.subf %96, %88 : vector<8x128xf32>
    %98 = arith.subf %95, %69 : vector<8x128xf32>
    %99 = arith.mulf %97, %98 : vector<8x128xf32>
    %100 = arith.addf %69, %99 : vector<8x128xf32>
    %101 = arith.index_cast %73 : i32 to index
    %c0_35 = arith.constant 0 : index
    %102 = vector.load %arg20[%101, %c0_35] : memref<64x128xf32, #tpu.memory_space<vmem>>, vector<8x128xf32>
    tpu.vector_store %arg20[%101, %c0_35], %100 {strides = array<i32>} : memref<64x128xf32, #tpu.memory_space<vmem>>, vector<8x128xf32>,
    %c3_i32 = arith.constant 3 : i32
    %c8_i32_36 = arith.constant 8 : i32
    %103 = arith.muli %c3_i32, %c8_i32_36 : i32
    %104 = tpu.assume_multiple %103, 8 : i32
    %105 = arith.index_cast %104 : i32 to index
    %c0_37 = arith.constant 0 : index
    %106 = vector.load %arg19[%105, %c0_37] : memref<64x384xf32, #tpu.memory_space<vmem>>, vector<8x384xf32>
    %cst_38 = arith.constant dense<0.000000e+00> : vector<8x384xf32>
    %107 = tpu.matmul %100, %7, %cst_38 {dimension_numbers = #tpu.dot_dimension_numbers<[1], [0], [0], [1], [0, 0, 1, 1], [], []>} : vector<8x128xf32>, vector<128x384xf32>, vector<8x384xf32> -> vector<8x384xf32>
    %108 = vector.extract_strided_slice %106 {offsets = [0, 0], sizes = [8, 256], strides = [1, 1]} : vector<8x384xf32> to vector<8x256xf32>
    %109 = vector.extract_strided_slice %107 {offsets = [0, 0], sizes = [8, 256], strides = [1, 1]} : vector<8x384xf32> to vector<8x256xf32>
    %110 = arith.addf %108, %109 : vector<8x256xf32>
    %cst_39 = arith.constant 5.000000e-01 : f32
    %111 = vector.broadcast %cst_39 : f32 to vector<8x256xf32>
    %112 = arith.mulf %111, %110 : vector<8x256xf32>
    %113 = math.tanh %112 : vector<8x256xf32>
    %cst_40 = arith.constant 1.000000e+00 : f32
    %114 = vector.broadcast %cst_40 : f32 to vector<8x256xf32>
    %115 = arith.addf %113, %114 : vector<8x256xf32>
    %cst_41 = arith.constant 5.000000e-01 : f32
    %116 = vector.broadcast %cst_41 : f32 to vector<8x256xf32>
    %117 = arith.mulf %116, %115 : vector<8x256xf32>
    %118 = vector.extract_strided_slice %117 {offsets = [0, 0], sizes = [8, 128], strides = [1, 1]} : vector<8x256xf32> to vector<8x128xf32>
    %119 = vector.extract_strided_slice %117 {offsets = [0, 128], sizes = [8, 128], strides = [1, 1]} : vector<8x256xf32> to vector<8x128xf32>
    %120 = vector.extract_strided_slice %106 {offsets = [0, 256], sizes = [8, 128], strides = [1, 1]} : vector<8x384xf32> to vector<8x128xf32>
    %121 = vector.extract_strided_slice %107 {offsets = [0, 256], sizes = [8, 128], strides = [1, 1]} : vector<8x384xf32> to vector<8x128xf32>
    %122 = vector.broadcast %8 : vector<1x128xf32> to vector<8x128xf32>
    %123 = arith.addf %121, %122 : vector<8x128xf32>
    %124 = arith.mulf %118, %123 : vector<8x128xf32>
    %125 = arith.addf %120, %124 : vector<8x128xf32>
    %126 = math.tanh %125 : vector<8x128xf32>
    %cst_42 = arith.constant 1.000000e+00 : f32
    %127 = vector.broadcast %cst_42 : f32 to vector<8x128xf32>
    %128 = arith.subf %127, %119 : vector<8x128xf32>
    %129 = arith.subf %126, %100 : vector<8x128xf32>
    %130 = arith.mulf %128, %129 : vector<8x128xf32>
    %131 = arith.addf %100, %130 : vector<8x128xf32>
    %132 = arith.index_cast %104 : i32 to index
    %c0_43 = arith.constant 0 : index
    %133 = vector.load %arg20[%132, %c0_43] : memref<64x128xf32, #tpu.memory_space<vmem>>, vector<8x128xf32>
    tpu.vector_store %arg20[%132, %c0_43], %131 {strides = array<i32>} : memref<64x128xf32, #tpu.memory_space<vmem>>, vector<8x128xf32>,
    %c4_i32 = arith.constant 4 : i32
    %c8_i32_44 = arith.constant 8 : i32
    %134 = arith.muli %c4_i32, %c8_i32_44 : i32
    %135 = tpu.assume_multiple %134, 8 : i32
    %136 = arith.index_cast %135 : i32 to index
    %c0_45 = arith.constant 0 : index
    %137 = vector.load %arg19[%136, %c0_45] : memref<64x384xf32, #tpu.memory_space<vmem>>, vector<8x384xf32>
    %cst_46 = arith.constant dense<0.000000e+00> : vector<8x384xf32>
    %138 = tpu.matmul %131, %7, %cst_46 {dimension_numbers = #tpu.dot_dimension_numbers<[1], [0], [0], [1], [0, 0, 1, 1], [], []>} : vector<8x128xf32>, vector<128x384xf32>, vector<8x384xf32> -> vector<8x384xf32>
    %139 = vector.extract_strided_slice %137 {offsets = [0, 0], sizes = [8, 256], strides = [1, 1]} : vector<8x384xf32> to vector<8x256xf32>
    %140 = vector.extract_strided_slice %138 {offsets = [0, 0], sizes = [8, 256], strides = [1, 1]} : vector<8x384xf32> to vector<8x256xf32>
    %141 = arith.addf %139, %140 : vector<8x256xf32>
    %cst_47 = arith.constant 5.000000e-01 : f32
    %142 = vector.broadcast %cst_47 : f32 to vector<8x256xf32>
    %143 = arith.mulf %142, %141 : vector<8x256xf32>
    %144 = math.tanh %143 : vector<8x256xf32>
    %cst_48 = arith.constant 1.000000e+00 : f32
    %145 = vector.broadcast %cst_48 : f32 to vector<8x256xf32>
    %146 = arith.addf %144, %145 : vector<8x256xf32>
    %cst_49 = arith.constant 5.000000e-01 : f32
    %147 = vector.broadcast %cst_49 : f32 to vector<8x256xf32>
    %148 = arith.mulf %147, %146 : vector<8x256xf32>
    %149 = vector.extract_strided_slice %148 {offsets = [0, 0], sizes = [8, 128], strides = [1, 1]} : vector<8x256xf32> to vector<8x128xf32>
    %150 = vector.extract_strided_slice %148 {offsets = [0, 128], sizes = [8, 128], strides = [1, 1]} : vector<8x256xf32> to vector<8x128xf32>
    %151 = vector.extract_strided_slice %137 {offsets = [0, 256], sizes = [8, 128], strides = [1, 1]} : vector<8x384xf32> to vector<8x128xf32>
    %152 = vector.extract_strided_slice %138 {offsets = [0, 256], sizes = [8, 128], strides = [1, 1]} : vector<8x384xf32> to vector<8x128xf32>
    %153 = vector.broadcast %8 : vector<1x128xf32> to vector<8x128xf32>
    %154 = arith.addf %152, %153 : vector<8x128xf32>
    %155 = arith.mulf %149, %154 : vector<8x128xf32>
    %156 = arith.addf %151, %155 : vector<8x128xf32>
    %157 = math.tanh %156 : vector<8x128xf32>
    %cst_50 = arith.constant 1.000000e+00 : f32
    %158 = vector.broadcast %cst_50 : f32 to vector<8x128xf32>
    %159 = arith.subf %158, %150 : vector<8x128xf32>
    %160 = arith.subf %157, %131 : vector<8x128xf32>
    %161 = arith.mulf %159, %160 : vector<8x128xf32>
    %162 = arith.addf %131, %161 : vector<8x128xf32>
    %163 = arith.index_cast %135 : i32 to index
    %c0_51 = arith.constant 0 : index
    %164 = vector.load %arg20[%163, %c0_51] : memref<64x128xf32, #tpu.memory_space<vmem>>, vector<8x128xf32>
    tpu.vector_store %arg20[%163, %c0_51], %162 {strides = array<i32>} : memref<64x128xf32, #tpu.memory_space<vmem>>, vector<8x128xf32>,
    %c5_i32 = arith.constant 5 : i32
    %c8_i32_52 = arith.constant 8 : i32
    %165 = arith.muli %c5_i32, %c8_i32_52 : i32
    %166 = tpu.assume_multiple %165, 8 : i32
    %167 = arith.index_cast %166 : i32 to index
    %c0_53 = arith.constant 0 : index
    %168 = vector.load %arg19[%167, %c0_53] : memref<64x384xf32, #tpu.memory_space<vmem>>, vector<8x384xf32>
    %cst_54 = arith.constant dense<0.000000e+00> : vector<8x384xf32>
    %169 = tpu.matmul %162, %7, %cst_54 {dimension_numbers = #tpu.dot_dimension_numbers<[1], [0], [0], [1], [0, 0, 1, 1], [], []>} : vector<8x128xf32>, vector<128x384xf32>, vector<8x384xf32> -> vector<8x384xf32>
    %170 = vector.extract_strided_slice %168 {offsets = [0, 0], sizes = [8, 256], strides = [1, 1]} : vector<8x384xf32> to vector<8x256xf32>
    %171 = vector.extract_strided_slice %169 {offsets = [0, 0], sizes = [8, 256], strides = [1, 1]} : vector<8x384xf32> to vector<8x256xf32>
    %172 = arith.addf %170, %171 : vector<8x256xf32>
    %cst_55 = arith.constant 5.000000e-01 : f32
    %173 = vector.broadcast %cst_55 : f32 to vector<8x256xf32>
    %174 = arith.mulf %173, %172 : vector<8x256xf32>
    %175 = math.tanh %174 : vector<8x256xf32>
    %cst_56 = arith.constant 1.000000e+00 : f32
    %176 = vector.broadcast %cst_56 : f32 to vector<8x256xf32>
    %177 = arith.addf %175, %176 : vector<8x256xf32>
    %cst_57 = arith.constant 5.000000e-01 : f32
    %178 = vector.broadcast %cst_57 : f32 to vector<8x256xf32>
    %179 = arith.mulf %178, %177 : vector<8x256xf32>
    %180 = vector.extract_strided_slice %179 {offsets = [0, 0], sizes = [8, 128], strides = [1, 1]} : vector<8x256xf32> to vector<8x128xf32>
    %181 = vector.extract_strided_slice %179 {offsets = [0, 128], sizes = [8, 128], strides = [1, 1]} : vector<8x256xf32> to vector<8x128xf32>
    %182 = vector.extract_strided_slice %168 {offsets = [0, 256], sizes = [8, 128], strides = [1, 1]} : vector<8x384xf32> to vector<8x128xf32>
    %183 = vector.extract_strided_slice %169 {offsets = [0, 256], sizes = [8, 128], strides = [1, 1]} : vector<8x384xf32> to vector<8x128xf32>
    %184 = vector.broadcast %8 : vector<1x128xf32> to vector<8x128xf32>
    %185 = arith.addf %183, %184 : vector<8x128xf32>
    %186 = arith.mulf %180, %185 : vector<8x128xf32>
    %187 = arith.addf %182, %186 : vector<8x128xf32>
    %188 = math.tanh %187 : vector<8x128xf32>
    %cst_58 = arith.constant 1.000000e+00 : f32
    %189 = vector.broadcast %cst_58 : f32 to vector<8x128xf32>
    %190 = arith.subf %189, %181 : vector<8x128xf32>
    %191 = arith.subf %188, %162 : vector<8x128xf32>
    %192 = arith.mulf %190, %191 : vector<8x128xf32>
    %193 = arith.addf %162, %192 : vector<8x128xf32>
    %194 = arith.index_cast %166 : i32 to index
    %c0_59 = arith.constant 0 : index
    %195 = vector.load %arg20[%194, %c0_59] : memref<64x128xf32, #tpu.memory_space<vmem>>, vector<8x128xf32>
    tpu.vector_store %arg20[%194, %c0_59], %193 {strides = array<i32>} : memref<64x128xf32, #tpu.memory_space<vmem>>, vector<8x128xf32>,
    %c6_i32 = arith.constant 6 : i32
    %c8_i32_60 = arith.constant 8 : i32
    %196 = arith.muli %c6_i32, %c8_i32_60 : i32
    %197 = tpu.assume_multiple %196, 8 : i32
    %198 = arith.index_cast %197 : i32 to index
    %c0_61 = arith.constant 0 : index
    %199 = vector.load %arg19[%198, %c0_61] : memref<64x384xf32, #tpu.memory_space<vmem>>, vector<8x384xf32>
    %cst_62 = arith.constant dense<0.000000e+00> : vector<8x384xf32>
    %200 = tpu.matmul %193, %7, %cst_62 {dimension_numbers = #tpu.dot_dimension_numbers<[1], [0], [0], [1], [0, 0, 1, 1], [], []>} : vector<8x128xf32>, vector<128x384xf32>, vector<8x384xf32> -> vector<8x384xf32>
    %201 = vector.extract_strided_slice %199 {offsets = [0, 0], sizes = [8, 256], strides = [1, 1]} : vector<8x384xf32> to vector<8x256xf32>
    %202 = vector.extract_strided_slice %200 {offsets = [0, 0], sizes = [8, 256], strides = [1, 1]} : vector<8x384xf32> to vector<8x256xf32>
    %203 = arith.addf %201, %202 : vector<8x256xf32>
    %cst_63 = arith.constant 5.000000e-01 : f32
    %204 = vector.broadcast %cst_63 : f32 to vector<8x256xf32>
    %205 = arith.mulf %204, %203 : vector<8x256xf32>
    %206 = math.tanh %205 : vector<8x256xf32>
    %cst_64 = arith.constant 1.000000e+00 : f32
    %207 = vector.broadcast %cst_64 : f32 to vector<8x256xf32>
    %208 = arith.addf %206, %207 : vector<8x256xf32>
    %cst_65 = arith.constant 5.000000e-01 : f32
    %209 = vector.broadcast %cst_65 : f32 to vector<8x256xf32>
    %210 = arith.mulf %209, %208 : vector<8x256xf32>
    %211 = vector.extract_strided_slice %210 {offsets = [0, 0], sizes = [8, 128], strides = [1, 1]} : vector<8x256xf32> to vector<8x128xf32>
    %212 = vector.extract_strided_slice %210 {offsets = [0, 128], sizes = [8, 128], strides = [1, 1]} : vector<8x256xf32> to vector<8x128xf32>
    %213 = vector.extract_strided_slice %199 {offsets = [0, 256], sizes = [8, 128], strides = [1, 1]} : vector<8x384xf32> to vector<8x128xf32>
    %214 = vector.extract_strided_slice %200 {offsets = [0, 256], sizes = [8, 128], strides = [1, 1]} : vector<8x384xf32> to vector<8x128xf32>
    %215 = vector.broadcast %8 : vector<1x128xf32> to vector<8x128xf32>
    %216 = arith.addf %214, %215 : vector<8x128xf32>
    %217 = arith.mulf %211, %216 : vector<8x128xf32>
    %218 = arith.addf %213, %217 : vector<8x128xf32>
    %219 = math.tanh %218 : vector<8x128xf32>
    %cst_66 = arith.constant 1.000000e+00 : f32
    %220 = vector.broadcast %cst_66 : f32 to vector<8x128xf32>
    %221 = arith.subf %220, %212 : vector<8x128xf32>
    %222 = arith.subf %219, %193 : vector<8x128xf32>
    %223 = arith.mulf %221, %222 : vector<8x128xf32>
    %224 = arith.addf %193, %223 : vector<8x128xf32>
    %225 = arith.index_cast %197 : i32 to index
    %c0_67 = arith.constant 0 : index
    %226 = vector.load %arg20[%225, %c0_67] : memref<64x128xf32, #tpu.memory_space<vmem>>, vector<8x128xf32>
    tpu.vector_store %arg20[%225, %c0_67], %224 {strides = array<i32>} : memref<64x128xf32, #tpu.memory_space<vmem>>, vector<8x128xf32>,
    %c7_i32 = arith.constant 7 : i32
    %c8_i32_68 = arith.constant 8 : i32
    %227 = arith.muli %c7_i32, %c8_i32_68 : i32
    %228 = tpu.assume_multiple %227, 8 : i32
    %229 = arith.index_cast %228 : i32 to index
    %c0_69 = arith.constant 0 : index
    %230 = vector.load %arg19[%229, %c0_69] : memref<64x384xf32, #tpu.memory_space<vmem>>, vector<8x384xf32>
    %cst_70 = arith.constant dense<0.000000e+00> : vector<8x384xf32>
    %231 = tpu.matmul %224, %7, %cst_70 {dimension_numbers = #tpu.dot_dimension_numbers<[1], [0], [0], [1], [0, 0, 1, 1], [], []>} : vector<8x128xf32>, vector<128x384xf32>, vector<8x384xf32> -> vector<8x384xf32>
    %232 = vector.extract_strided_slice %230 {offsets = [0, 0], sizes = [8, 256], strides = [1, 1]} : vector<8x384xf32> to vector<8x256xf32>
    %233 = vector.extract_strided_slice %231 {offsets = [0, 0], sizes = [8, 256], strides = [1, 1]} : vector<8x384xf32> to vector<8x256xf32>
    %234 = arith.addf %232, %233 : vector<8x256xf32>
    %cst_71 = arith.constant 5.000000e-01 : f32
    %235 = vector.broadcast %cst_71 : f32 to vector<8x256xf32>
    %236 = arith.mulf %235, %234 : vector<8x256xf32>
    %237 = math.tanh %236 : vector<8x256xf32>
    %cst_72 = arith.constant 1.000000e+00 : f32
    %238 = vector.broadcast %cst_72 : f32 to vector<8x256xf32>
    %239 = arith.addf %237, %238 : vector<8x256xf32>
    %cst_73 = arith.constant 5.000000e-01 : f32
    %240 = vector.broadcast %cst_73 : f32 to vector<8x256xf32>
    %241 = arith.mulf %240, %239 : vector<8x256xf32>
    %242 = vector.extract_strided_slice %241 {offsets = [0, 0], sizes = [8, 128], strides = [1, 1]} : vector<8x256xf32> to vector<8x128xf32>
    %243 = vector.extract_strided_slice %241 {offsets = [0, 128], sizes = [8, 128], strides = [1, 1]} : vector<8x256xf32> to vector<8x128xf32>
    %244 = vector.extract_strided_slice %230 {offsets = [0, 256], sizes = [8, 128], strides = [1, 1]} : vector<8x384xf32> to vector<8x128xf32>
    %245 = vector.extract_strided_slice %231 {offsets = [0, 256], sizes = [8, 128], strides = [1, 1]} : vector<8x384xf32> to vector<8x128xf32>
    %246 = vector.broadcast %8 : vector<1x128xf32> to vector<8x128xf32>
    %247 = arith.addf %245, %246 : vector<8x128xf32>
    %248 = arith.mulf %242, %247 : vector<8x128xf32>
    %249 = arith.addf %244, %248 : vector<8x128xf32>
    %250 = math.tanh %249 : vector<8x128xf32>
    %cst_74 = arith.constant 1.000000e+00 : f32
    %251 = vector.broadcast %cst_74 : f32 to vector<8x128xf32>
    %252 = arith.subf %251, %243 : vector<8x128xf32>
    %253 = arith.subf %250, %224 : vector<8x128xf32>
    %254 = arith.mulf %252, %253 : vector<8x128xf32>
    %255 = arith.addf %224, %254 : vector<8x128xf32>
    %256 = arith.index_cast %228 : i32 to index
    %c0_75 = arith.constant 0 : index
    %257 = vector.load %arg20[%256, %c0_75] : memref<64x128xf32, #tpu.memory_space<vmem>>, vector<8x128xf32>
    tpu.vector_store %arg20[%256, %c0_75], %255 {strides = array<i32>} : memref<64x128xf32, #tpu.memory_space<vmem>>, vector<8x128xf32>,
    %c8_i32_76 = arith.constant 8 : i32
    %c0_77 = arith.constant 0 : index
    %c0_78 = arith.constant 0 : index
    %258 = vector.load %arg18[%c0_77, %c0_78] : memref<8x128xf32, #tpu.memory_space<vmem>>, vector<8x128xf32>
    tpu.vector_store %arg18[%c0_77, %c0_78], %255 {strides = array<i32>} : memref<8x128xf32, #tpu.memory_space<vmem>>, vector<8x128xf32>,
    %c0_79 = arith.constant 0 : index
    %c0_80 = arith.constant 0 : index
    %259 = vector.load %arg20[%c0_79, %c0_80] : memref<64x128xf32, #tpu.memory_space<vmem>>, vector<64x128xf32>
    %c0_81 = arith.constant 0 : index
    %c0_82 = arith.constant 0 : index
    %260 = vector.load %arg7[%c0_81, %c0_82] : memref<128x32xf32, #tpu.memory_space<vmem>>, vector<128x32xf32>
    %cst_83 = arith.constant dense<0.000000e+00> : vector<64x32xf32>
    %261 = tpu.matmul %259, %260, %cst_83 {dimension_numbers = #tpu.dot_dimension_numbers<[1], [0], [0], [1], [0, 0, 1, 1], [], []>} : vector<64x128xf32>, vector<128x32xf32>, vector<64x32xf32> -> vector<64x32xf32>
    %c0_84 = arith.constant 0 : index
    %c0_85 = arith.constant 0 : index
    %262 = vector.load %arg8[%c0_84, %c0_85] : memref<1x32xf32, #tpu.memory_space<vmem>>, vector<1x32xf32>
    %263 = vector.broadcast %262 : vector<1x32xf32> to vector<64x32xf32>
    %264 = arith.addf %261, %263 : vector<64x32xf32>
    %c0_86 = arith.constant 0 : index
    %c0_87 = arith.constant 0 : index
    %265 = vector.load %arg9[%c0_86, %c0_87] : memref<1x32xf32, #tpu.memory_space<vmem>>, vector<1x32xf32>
    %c0_88 = arith.constant 0 : index
    %c0_89 = arith.constant 0 : index
    %266 = vector.load %arg10[%c0_88, %c0_89] : memref<1x32xf32, #tpu.memory_space<vmem>>, vector<1x32xf32>
    %cst_90 = arith.constant dense<0.000000e+00> : vector<64xf32>
    %267 = vector.multi_reduction <add>, %264, %cst_90 [1] : vector<64x32xf32> to vector<64xf32>
    %268 = vector.shape_cast %267 : vector<64xf32> to vector<64x1xf32>
    %cst_91 = arith.constant 3.125000e-02 : f32
    %269 = vector.broadcast %cst_91 : f32 to vector<64x1xf32>
    %270 = arith.mulf %268, %269 : vector<64x1xf32>
    %271 = vector.broadcast %270 : vector<64x1xf32> to vector<64x32xf32>
    %272 = arith.subf %264, %271 : vector<64x32xf32>
    %273 = arith.mulf %272, %272 : vector<64x32xf32>
    %cst_92 = arith.constant dense<0.000000e+00> : vector<64xf32>
    %274 = vector.multi_reduction <add>, %273, %cst_92 [1] : vector<64x32xf32> to vector<64xf32>
    %275 = vector.shape_cast %274 : vector<64xf32> to vector<64x1xf32>
    %cst_93 = arith.constant 3.125000e-02 : f32
    %276 = vector.broadcast %cst_93 : f32 to vector<64x1xf32>
    %277 = arith.mulf %275, %276 : vector<64x1xf32>
    %cst_94 = arith.constant 9.99999974E-6 : f32
    %278 = vector.broadcast %cst_94 : f32 to vector<64x1xf32>
    %279 = arith.addf %277, %278 : vector<64x1xf32>
    %280 = math.rsqrt %279 : vector<64x1xf32>
    %281 = vector.broadcast %265 : vector<1x32xf32> to vector<64x32xf32>
    %282 = vector.broadcast %280 : vector<64x1xf32> to vector<64x32xf32>
    %283 = arith.mulf %281, %282 : vector<64x32xf32>
    %284 = arith.mulf %272, %283 : vector<64x32xf32>
    %285 = vector.broadcast %266 : vector<1x32xf32> to vector<64x32xf32>
    %286 = arith.addf %284, %285 : vector<64x32xf32>
    %cst_95 = arith.constant 0.000000e+00 : f32
    %287 = vector.broadcast %cst_95 : f32 to vector<64x32xf32>
    %288 = arith.cmpf ogt, %286, %287 : vector<64x32xf32>
    %cst_96 = arith.constant 0.00999999977 : f32
    %289 = vector.broadcast %cst_96 : f32 to vector<64x32xf32>
    %290 = arith.mulf %289, %286 : vector<64x32xf32>
    %291 = arith.select %288, %286, %290 : vector<64x32xi1>, vector<64x32xf32>
    %c0_97 = arith.constant 0 : index
    %c0_98 = arith.constant 0 : index
    %292 = vector.load %arg11[%c0_97, %c0_98] : memref<32x16xf32, #tpu.memory_space<vmem>>, vector<32x16xf32>
    %cst_99 = arith.constant dense<0.000000e+00> : vector<64x16xf32>
    %293 = tpu.matmul %291, %292, %cst_99 {dimension_numbers = #tpu.dot_dimension_numbers<[1], [0], [0], [1], [0, 0, 1, 1], [], []>} : vector<64x32xf32>, vector<32x16xf32>, vector<64x16xf32> -> vector<64x16xf32>
    %c0_100 = arith.constant 0 : index
    %c0_101 = arith.constant 0 : index
    %294 = vector.load %arg12[%c0_100, %c0_101] : memref<1x16xf32, #tpu.memory_space<vmem>>, vector<1x16xf32>
    %295 = vector.broadcast %294 : vector<1x16xf32> to vector<64x16xf32>
    %296 = arith.addf %293, %295 : vector<64x16xf32>
    %c0_102 = arith.constant 0 : index
    %c0_103 = arith.constant 0 : index
    %297 = vector.load %arg13[%c0_102, %c0_103] : memref<1x16xf32, #tpu.memory_space<vmem>>, vector<1x16xf32>
    %c0_104 = arith.constant 0 : index
    %c0_105 = arith.constant 0 : index
    %298 = vector.load %arg14[%c0_104, %c0_105] : memref<1x16xf32, #tpu.memory_space<vmem>>, vector<1x16xf32>
    %cst_106 = arith.constant dense<0.000000e+00> : vector<64xf32>
    %299 = vector.multi_reduction <add>, %296, %cst_106 [1] : vector<64x16xf32> to vector<64xf32>
    %300 = vector.shape_cast %299 : vector<64xf32> to vector<64x1xf32>
    %cst_107 = arith.constant 6.250000e-02 : f32
    %301 = vector.broadcast %cst_107 : f32 to vector<64x1xf32>
    %302 = arith.mulf %300, %301 : vector<64x1xf32>
    %303 = vector.broadcast %302 : vector<64x1xf32> to vector<64x16xf32>
    %304 = arith.subf %296, %303 : vector<64x16xf32>
    %305 = arith.mulf %304, %304 : vector<64x16xf32>
    %cst_108 = arith.constant dense<0.000000e+00> : vector<64xf32>
    %306 = vector.multi_reduction <add>, %305, %cst_108 [1] : vector<64x16xf32> to vector<64xf32>
    %307 = vector.shape_cast %306 : vector<64xf32> to vector<64x1xf32>
    %cst_109 = arith.constant 6.250000e-02 : f32
    %308 = vector.broadcast %cst_109 : f32 to vector<64x1xf32>
    %309 = arith.mulf %307, %308 : vector<64x1xf32>
    %cst_110 = arith.constant 9.99999974E-6 : f32
    %310 = vector.broadcast %cst_110 : f32 to vector<64x1xf32>
    %311 = arith.addf %309, %310 : vector<64x1xf32>
    %312 = math.rsqrt %311 : vector<64x1xf32>
    %313 = vector.broadcast %297 : vector<1x16xf32> to vector<64x16xf32>
    %314 = vector.broadcast %312 : vector<64x1xf32> to vector<64x16xf32>
    %315 = arith.mulf %313, %314 : vector<64x16xf32>
    %316 = arith.mulf %304, %315 : vector<64x16xf32>
    %317 = vector.broadcast %298 : vector<1x16xf32> to vector<64x16xf32>
    %318 = arith.addf %316, %317 : vector<64x16xf32>
    %cst_111 = arith.constant 0.000000e+00 : f32
    %319 = vector.broadcast %cst_111 : f32 to vector<64x16xf32>
    %320 = arith.cmpf ogt, %318, %319 : vector<64x16xf32>
    %cst_112 = arith.constant 0.00999999977 : f32
    %321 = vector.broadcast %cst_112 : f32 to vector<64x16xf32>
    %322 = arith.mulf %321, %318 : vector<64x16xf32>
    %323 = arith.select %320, %318, %322 : vector<64x16xi1>, vector<64x16xf32>
    %c0_113 = arith.constant 0 : index
    %c0_114 = arith.constant 0 : index
    %324 = vector.load %arg15[%c0_113, %c0_114] : memref<16x128xf32, #tpu.memory_space<vmem>>, vector<16x128xf32>
    %cst_115 = arith.constant dense<0.000000e+00> : vector<64x128xf32>
    %325 = tpu.matmul %323, %324, %cst_115 {dimension_numbers = #tpu.dot_dimension_numbers<[1], [0], [0], [1], [0, 0, 1, 1], [], []>} : vector<64x16xf32>, vector<16x128xf32>, vector<64x128xf32> -> vector<64x128xf32>
    %c0_116 = arith.constant 0 : index
    %c0_117 = arith.constant 0 : index
    %326 = vector.load %arg16[%c0_116, %c0_117] : memref<1x128xf32, #tpu.memory_space<vmem>>, vector<1x128xf32>
    %327 = vector.broadcast %326 : vector<1x128xf32> to vector<64x128xf32>
    %328 = arith.addf %325, %327 : vector<64x128xf32>
    %329 = math.tanh %328 : vector<64x128xf32>
    %c0_118 = arith.constant 0 : index
    %c0_119 = arith.constant 0 : index
    %330 = vector.load %arg17[%c0_118, %c0_119] : memref<64x128xf32, #tpu.memory_space<vmem>>, vector<64x128xf32>
    tpu.vector_store %arg17[%c0_118, %c0_119], %329 {strides = array<i32>} : memref<64x128xf32, #tpu.memory_space<vmem>>, vector<64x128xf32>,
    return
  }
  func.func @transform_0(%arg0: i32) -> (i32, i32) {
    %c0_i32 = arith.constant 0 : i32
    %c0_i32_0 = arith.constant 0 : i32
    %c0_i32_1 = arith.constant 0 : i32
    return %c0_i32, %c0_i32_0 : i32, i32
  }
  func.func @transform_1(%arg0: i32) -> (i32, i32) {
    %c0_i32 = arith.constant 0 : i32
    %c0_i32_0 = arith.constant 0 : i32
    %c0_i32_1 = arith.constant 0 : i32
    return %c0_i32, %c0_i32_0 : i32, i32
  }
  func.func @transform_2(%arg0: i32) -> (i32, i32) {
    %c0_i32 = arith.constant 0 : i32
    %c0_i32_0 = arith.constant 0 : i32
    %c0_i32_1 = arith.constant 0 : i32
    return %c0_i32, %c0_i32_0 : i32, i32
  }
  func.func @transform_3(%arg0: i32) -> (i32, i32) {
    %c0_i32 = arith.constant 0 : i32
    %c0_i32_0 = arith.constant 0 : i32
    %c0_i32_1 = arith.constant 0 : i32
    return %c0_i32, %c0_i32_0 : i32, i32
  }
  func.func @transform_4(%arg0: i32) -> (i32, i32) {
    %c0_i32 = arith.constant 0 : i32
    %c0_i32_0 = arith.constant 0 : i32
    %c0_i32_1 = arith.constant 0 : i32
    return %c0_i32, %c0_i32_0 : i32, i32
  }
  func.func @transform_5(%arg0: i32) -> (i32, i32) {
    %c0_i32 = arith.constant 0 : i32
    %c0_i32_0 = arith.constant 0 : i32
    %c0_i32_1 = arith.constant 0 : i32
    return %c0_i32, %c0_i32_0 : i32, i32
  }
  func.func @transform_6(%arg0: i32) -> (i32, i32) {
    %c0_i32 = arith.constant 0 : i32
    %c0_i32_0 = arith.constant 0 : i32
    %c0_i32_1 = arith.constant 0 : i32
    return %c0_i32, %c0_i32_0 : i32, i32
  }
  func.func @transform_7(%arg0: i32) -> (i32, i32) {
    %c0_i32 = arith.constant 0 : i32
    %c0_i32_0 = arith.constant 0 : i32
    %c0_i32_1 = arith.constant 0 : i32
    return %c0_i32, %c0_i32_0 : i32, i32
  }
  func.func @transform_8(%arg0: i32) -> (i32, i32) {
    %c0_i32 = arith.constant 0 : i32
    %c0_i32_0 = arith.constant 0 : i32
    %c0_i32_1 = arith.constant 0 : i32
    return %c0_i32, %c0_i32_0 : i32, i32
  }
  func.func @transform_9(%arg0: i32) -> (i32, i32) {
    %c0_i32 = arith.constant 0 : i32
    %c0_i32_0 = arith.constant 0 : i32
    %c0_i32_1 = arith.constant 0 : i32
    return %c0_i32, %c0_i32_0 : i32, i32
  }
  func.func @transform_10(%arg0: i32) -> (i32, i32) {
    %c0_i32 = arith.constant 0 : i32
    %c0_i32_0 = arith.constant 0 : i32
    %c0_i32_1 = arith.constant 0 : i32
    return %c0_i32, %c0_i32_0 : i32, i32
  }
  func.func @transform_11(%arg0: i32) -> (i32, i32) {
    %c0_i32 = arith.constant 0 : i32
    %c0_i32_0 = arith.constant 0 : i32
    %c0_i32_1 = arith.constant 0 : i32
    return %c0_i32, %c0_i32_0 : i32, i32
  }
  func.func @transform_12(%arg0: i32) -> (i32, i32) {
    %c0_i32 = arith.constant 0 : i32
    %c0_i32_0 = arith.constant 0 : i32
    %c0_i32_1 = arith.constant 0 : i32
    return %c0_i32, %c0_i32_0 : i32, i32
  }
  func.func @transform_13(%arg0: i32) -> (i32, i32) {
    %c0_i32 = arith.constant 0 : i32
    %c0_i32_0 = arith.constant 0 : i32
    %c0_i32_1 = arith.constant 0 : i32
    return %c0_i32, %c0_i32_0 : i32, i32
  }
  func.func @transform_14(%arg0: i32) -> (i32, i32) {
    %c0_i32 = arith.constant 0 : i32
    %c0_i32_0 = arith.constant 0 : i32
    %c0_i32_1 = arith.constant 0 : i32
    return %c0_i32, %c0_i32_0 : i32, i32
  }
  func.func @transform_15(%arg0: i32) -> (i32, i32) {
    %c0_i32 = arith.constant 0 : i32
    %c0_i32_0 = arith.constant 0 : i32
    %c0_i32_1 = arith.constant 0 : i32
    return %c0_i32, %c0_i32_0 : i32, i32
  }
  func.func @transform_16(%arg0: i32) -> (i32, i32) {
    %c0_i32 = arith.constant 0 : i32
    %c0_i32_0 = arith.constant 0 : i32
    %c0_i32_1 = arith.constant 0 : i32
    return %c0_i32, %c0_i32_0 : i32, i32
  }
  func.func @transform_17(%arg0: i32) -> (i32, i32) {
    %c0_i32 = arith.constant 0 : i32
    %c0_i32_0 = arith.constant 0 : i32
    %c0_i32_1 = arith.constant 0 : i32
    return %c0_i32, %c0_i32_0 : i32, i32
  }
}

</mosaic_0001>

<llo_original>
// kernel: gru_policy_forward.1
$region0: #{gru_policy_forward.1}
  #allocation0 [shape = 'u32[]', space=smem, size = 0x4, offset = 0x4, fixed_abs, tag = 'smem constant byte address 0x4 - core index']
  #allocation1 [shape = 'u32[144,128]{1,0:T(1,128)}', space=vmem, size = 0x12000, scoped, tag = 'internal scratch']
  #allocation2 [shape = 'f32[64,384]{1,0:T(8,128)}', space=vmem, size = 0x18000, scoped, tag = 'scratch operand']
  #allocation3 [shape = 'f32[64,128]{1,0:T(8,128)}', space=vmem, size = 0x8000, scoped, tag = 'scratch operand']
  %s0 = inlined_call_operand.vmem [shape: f32[64,8], index: 0, kind: input, shape index: {}]
  %s1 = inlined_call_operand.vmem [shape: f32[8,128], index: 1, kind: input, shape index: {}]
  %s2 = inlined_call_operand.vmem [shape: f32[8,384], index: 2, kind: input, shape index: {}]
  %s3 = inlined_call_operand.vmem [shape: f32[128,384], index: 3, kind: input, shape index: {}]
  %s4 = inlined_call_operand.vmem [shape: f32[1,384], index: 4, kind: input, shape index: {}]
  %s5 = inlined_call_operand.vmem [shape: f32[1,128], index: 5, kind: input, shape index: {}]
  %s6 = inlined_call_operand.vmem [shape: f32[128,32], index: 6, kind: input, shape index: {}]
  %s7 = inlined_call_operand.vmem [shape: f32[1,32], index: 7, kind: input, shape index: {}]
  %s8 = inlined_call_operand.vmem [shape: f32[1,32], index: 8, kind: input, shape index: {}]
  %s9 = inlined_call_operand.vmem [shape: f32[1,32], index: 9, kind: input, shape index: {}]
  %s10 = inlined_call_operand.vmem [shape: f32[32,16], index: 10, kind: input, shape index: {}]
  %s11 = inlined_call_operand.vmem [shape: f32[1,16], index: 11, kind: input, shape index: {}]
  %s12 = inlined_call_operand.vmem [shape: f32[1,16], index: 12, kind: input, shape index: {}]
  %s13 = inlined_call_operand.vmem [shape: f32[1,16], index: 13, kind: input, shape index: {}]
  %s14 = inlined_call_operand.vmem [shape: f32[16,128], index: 14, kind: input, shape index: {}]
  %s15 = inlined_call_operand.vmem [shape: f32[1,128], index: 15, kind: input, shape index: {}]
  %s16 = inlined_call_operand.vmem [shape: f32[64,128], index: 16, kind: output, shape index: {0}]
  %s17 = inlined_call_operand.vmem [shape: f32[8,128], index: 17, kind: output, shape index: {1}]
  %18 = xla_tuple %s16, %s17
  %s19 = sld [smem:[#allocation0]]
  $region82: #{gru_policy_forward.1} parent=0
    _
  %s21 = ssub.s32 1, %s19
  %s22 = scalar_select 0, %s21, %s19
  // Predicated region
  $region2: #{gru_policy_forward.1} parent=0 // pred_check
    _
  $region3: #{gru_policy_forward.1} parent=0 // pred_check_branch
    %24 = sbr.rel (0) target = $region5
  $region4: #{gru_policy_forward.1} parent=0 // pred_region
    _
  $region5: #{gru_policy_forward.1} parent=0 // pred_fallthru
    _
  // Predicated region
  $region6: #{gru_policy_forward.1} parent=0 // pred_check
    _
  $region7: #{gru_policy_forward.1} parent=0 // pred_check_branch
    %26 = sbr.rel (0) target = $region9
  $region8: #{gru_policy_forward.1} parent=0 // pred_region
    _
  $region9: #{gru_policy_forward.1} parent=0 // pred_fallthru
    _
  // Predicated region
  $region10: #{gru_policy_forward.1} parent=0 // pred_check
    _
  $region11: #{gru_policy_forward.1} parent=0 // pred_check_branch
    %28 = sbr.rel (0) target = $region13
  $region12: #{gru_policy_forward.1} parent=0 // pred_region
    _
  $region13: #{gru_policy_forward.1} parent=0 // pred_fallthru
    _
  // Predicated region
  $region14: #{gru_policy_forward.1} parent=0 // pred_check
    _
  $region15: #{gru_policy_forward.1} parent=0 // pred_check_branch
    %30 = sbr.rel (0) target = $region17
  $region16: #{gru_policy_forward.1} parent=0 // pred_region
    _
  $region17: #{gru_policy_forward.1} parent=0 // pred_fallthru
    _
  // Predicated region
  $region18: #{gru_policy_forward.1} parent=0 // pred_check
    _
  $region19: #{gru_policy_forward.1} parent=0 // pred_check_branch
    %32 = sbr.rel (0) target = $region21
  $region20: #{gru_policy_forward.1} parent=0 // pred_region
    _
  $region21: #{gru_policy_forward.1} parent=0 // pred_fallthru
    _
  // Predicated region
  $region22: #{gru_policy_forward.1} parent=0 // pred_check
    _
  $region23: #{gru_policy_forward.1} parent=0 // pred_check_branch
    %34 = sbr.rel (0) target = $region25
  $region24: #{gru_policy_forward.1} parent=0 // pred_region
    _
  $region25: #{gru_policy_forward.1} parent=0 // pred_fallthru
    _
  // Predicated region
  $region26: #{gru_policy_forward.1} parent=0 // pred_check
    _
  $region27: #{gru_policy_forward.1} parent=0 // pred_check_branch
    %36 = sbr.rel (0) target = $region29
  $region28: #{gru_policy_forward.1} parent=0 // pred_region
    _
  $region29: #{gru_policy_forward.1} parent=0 // pred_fallthru
    _
  // Predicated region
  $region30: #{gru_policy_forward.1} parent=0 // pred_check
    _
  $region31: #{gru_policy_forward.1} parent=0 // pred_check_branch
    %38 = sbr.rel (0) target = $region33
  $region32: #{gru_policy_forward.1} parent=0 // pred_region
    _
  $region33: #{gru_policy_forward.1} parent=0 // pred_fallthru
    _
  // Predicated region
  $region34: #{gru_policy_forward.1} parent=0 // pred_check
    _
  $region35: #{gru_policy_forward.1} parent=0 // pred_check_branch
    %40 = sbr.rel (0) target = $region37
  $region36: #{gru_policy_forward.1} parent=0 // pred_region
    _
  $region37: #{gru_policy_forward.1} parent=0 // pred_fallthru
    _
  // Predicated region
  $region38: #{gru_policy_forward.1} parent=0 // pred_check
    _
  $region39: #{gru_policy_forward.1} parent=0 // pred_check_branch
    %42 = sbr.rel (0) target = $region41
  $region40: #{gru_policy_forward.1} parent=0 // pred_region
    _
  $region41: #{gru_policy_forward.1} parent=0 // pred_fallthru
    _
  // Predicated region
  $region42: #{gru_policy_forward.1} parent=0 // pred_check
    _
  $region43: #{gru_policy_forward.1} parent=0 // pred_check_branch
    %44 = sbr.rel (0) target = $region45
  $region44: #{gru_policy_forward.1} parent=0 // pred_region
    _
  $region45: #{gru_policy_forward.1} parent=0 // pred_fallthru
    _
  // Predicated region
  $region46: #{gru_policy_forward.1} parent=0 // pred_check
    _
  $region47: #{gru_policy_forward.1} parent=0 // pred_check_branch
    %46 = sbr.rel (0) target = $region49
  $region48: #{gru_policy_forward.1} parent=0 // pred_region
    _
  $region49: #{gru_policy_forward.1} parent=0 // pred_fallthru
    _
  // Predicated region
  $region50: #{gru_policy_forward.1} parent=0 // pred_check
    _
  $region51: #{gru_policy_forward.1} parent=0 // pred_check_branch
    %48 = sbr.rel (0) target = $region53
  $region52: #{gru_policy_forward.1} parent=0 // pred_region
    _
  $region53: #{gru_policy_forward.1} parent=0 // pred_fallthru
    _
  // Predicated region
  $region54: #{gru_policy_forward.1} parent=0 // pred_check
    _
  $region55: #{gru_policy_forward.1} parent=0 // pred_check_branch
    %50 = sbr.rel (0) target = $region57
  $region56: #{gru_policy_forward.1} parent=0 // pred_region
    _
  $region57: #{gru_policy_forward.1} parent=0 // pred_fallthru
    _
  // Predicated region
  $region58: #{gru_policy_forward.1} parent=0 // pred_check
    _
  $region59: #{gru_policy_forward.1} parent=0 // pred_check_branch
    %52 = sbr.rel (0) target = $region61
  $region60: #{gru_policy_forward.1} parent=0 // pred_region
    _
  $region61: #{gru_policy_forward.1} parent=0 // pred_fallthru
    _
  // Predicated region
  $region62: #{gru_policy_forward.1} parent=0 // pred_check
    _
  $region63: #{gru_policy_forward.1} parent=0 // pred_check_branch
    %54 = sbr.rel (0) target = $region65
  $region64: #{gru_policy_forward.1} parent=0 // pred_region
    _
  $region65: #{gru_policy_forward.1} parent=0 // pred_fallthru
    _
  %v55 = vld [vmem:[%s0] sm:$0xff]
  %v56 = vld [vmem:[%s0 + $0x8] sm:$0xff]
  %v57 = vld [vmem:[%s0 + $0x10] sm:$0xff]
  %v58 = vld [vmem:[%s0 + $0x18] sm:$0xff]
  %v59 = vld [vmem:[%s0 + $0x20] sm:$0xff]
  %v60 = vld [vmem:[%s0 + $0x28] sm:$0xff]
  %v61 = vld [vmem:[%s0 + $0x30] sm:$0xff]
  %v62 = vld [vmem:[%s0 + $0x38] sm:$0xff]
  %v63 = vld [vmem:[%s2] sm:$0xff]
  %v64 = vld [vmem:[%s2 + $0x8] sm:$0xff]
  %v65 = vld [vmem:[%s2 + $0x10] sm:$0xff]
  %v66 = vld [vmem:[%s4] sm:$0x7]
  %v68 = vlaneseq
  %v69 = vshrl.u32 %v68, 7
  %v70 = vsub.s32 0, %v69
  %v71 = vrot.slane %v66, %v70
  %v72 = vlaneseq
  %v73 = vshrl.u32 %v72, 7
  %v74 = vsub.s32 1, %v73
  %v75 = vrot.slane %v66, %v74
  %v76 = vlaneseq
  %v77 = vshrl.u32 %v76, 7
  %v78 = vsub.s32 2, %v77
  %v79 = vrot.slane %v66, %v78
  %vm83 = vcmask 64512
  %v85 = vsel %vm83, %v55, 0
  %v88 = vsel %vm83, %v56, 0
  %v91 = vsel %vm83, %v57, 0
  %v94 = vsel %vm83, %v58, 0
  %v97 = vsel %vm83, %v59, 0
  %v100 = vsel %vm83, %v60, 0
  %v103 = vsel %vm83, %v61, 0
  %v106 = vsel %vm83, %v62, 0
  %108 = vmatprep.subr.mxu0 %v64
  %109 = vmatpush1.msra.mxu0 %v63
  %110 = vmatprep.subr.mxu0 0.0
  %111 = vmatpush1.msra.mxu0 0.0
  %112 = vmatprep.subr.mxu0 0.0
  %113 = vmatpush1.msra.mxu0 0.0
  %114 = vmatprep.subr.mxu0 0.0
  %115 = vmatpush1.msra.mxu0 0.0
  %116 = vmatprep.subr.mxu0 0.0
  %117 = vmatpush1.msra.mxu0 0.0
  %118 = vmatprep.subr.mxu0 0.0
  %119 = vmatpush1.msra.mxu0 0.0
  %120 = vmatprep.subr.mxu0 0.0
  %121 = vmatpush1.msra.mxu0 0.0
  %122 = vmatprep.subr.mxu0 0.0
  %123 = vmatpush1.msra.mxu0 0.0
  %124 = vmatprep.subr.mxu0 0.0
  %125 = vmatpush1.msra.mxu0 0.0
  %126 = vmatprep.subr.mxu0 0.0
  %127 = vmatpush1.msra.mxu0 0.0
  %128 = vmatprep.subr.mxu0 0.0
  %129 = vmatpush1.msra.mxu0 0.0
  %130 = vmatprep.subr.mxu0 0.0
  %131 = vmatpush1.msra.mxu0 0.0
  %132 = vmatprep.subr.mxu0 0.0
  %133 = vmatpush1.msra.mxu0 0.0
  %134 = vmatprep.subr.mxu0 0.0
  %135 = vmatpush1.msra.mxu0 0.0
  %136 = vmatprep.subr.mxu0 0.0
  %137 = vmatpush1.msra.mxu0 0.0
  %138 = vmatprep.subr.mxu0 0.0
  %139 = vmatpush1.msra.mxu0 0.0
  %140 = vmatprep.subr.mxu0 0.0
  %141 = vmatpush1.msra.mxu0 0.0
  %142 = vmatprep.subr.mxu0 0.0
  %143 = vmatpush1.msra.mxu0 0.0
  %144 = vmatprep.subr.mxu0 0.0
  %145 = vmatpush1.msra.mxu0 0.0
  %146 = vmatprep.subr.mxu0 0.0
  %147 = vmatpush1.msra.mxu0 0.0
  %148 = vmatprep.subr.mxu0 0.0
  %149 = vmatpush1.msra.mxu0 0.0
  %150 = vmatprep.subr.mxu0 0.0
  %151 = vmatpush1.msra.mxu0 0.0
  %152 = vmatprep.subr.mxu0 0.0
  %153 = vmatpush1.msra.mxu0 0.0
  %154 = vmatprep.subr.mxu0 0.0
  %155 = vmatpush1.msra.mxu0 0.0
  %156 = vmatprep.subr.mxu0 0.0
  %157 = vmatpush1.msra.mxu0 0.0
  %158 = vmatprep.subr.mxu0 0.0
  %159 = vmatpush1.msra.mxu0 0.0
  %160 = vmatprep.subr.mxu0 0.0
  %161 = vmatpush1.msra.mxu0 0.0
  %162 = vmatprep.subr.mxu0 0.0
  %163 = vmatpush1.msra.mxu0 0.0
  %164 = vmatprep.subr.mxu0 0.0
  %165 = vmatpush1.msra.mxu0 0.0
  %166 = vmatprep.subr.mxu0 0.0
  %167 = vmatpush1.msra.mxu0 0.0
  %168 = vmatprep.subr.mxu0 0.0
  %169 = vmatpush1.msra.mxu0 0.0
  %170 = vmatprep.subr.mxu0 0.0
  %171 = vmatpush1.msra.mxu0 0.0
  %172 = vmatprep.mubr.f32.mxu0 0.0
  %173 = vmatmul.mubr.f32.gmra.mrb[0].mxu0 %v85
  %v174 = vpop.f32.mrb[0].mxu0
  %v175 = vadd.f32 %v71, %v174
  %v176 = vpop.f32.mrb[0].mxu0
  %v177 = vadd.f32 %v75, %v176
  %178 = vmatprep.mubr.f32.mxu0 0.0
  %179 = vmatmul.mubr.f32.gmra.mrb[0].mxu0 %v88
  %v180 = vpop.f32.mrb[0].mxu0
  %v181 = vadd.f32 %v71, %v180
  %v182 = vpop.f32.mrb[0].mxu0
  %v183 = vadd.f32 %v75, %v182
  %184 = vmatprep.mubr.f32.mxu0 0.0
  %185 = vmatmul.mubr.f32.gmra.mrb[0].mxu0 %v91
  %v186 = vpop.f32.mrb[0].mxu0
  %v187 = vadd.f32 %v71, %v186
  %v188 = vpop.f32.mrb[0].mxu0
  %v189 = vadd.f32 %v75, %v188
  %190 = vmatprep.mubr.f32.mxu0 0.0
  %191 = vmatmul.mubr.f32.gmra.mrb[0].mxu0 %v94
  %v192 = vpop.f32.mrb[0].mxu0
  %v193 = vadd.f32 %v71, %v192
  %v194 = vpop.f32.mrb[0].mxu0
  %v195 = vadd.f32 %v75, %v194
  %196 = vmatprep.mubr.f32.mxu0 0.0
  %197 = vmatmul.mubr.f32.gmra.mrb[0].mxu0 %v97
  %v198 = vpop.f32.mrb[0].mxu0
  %v199 = vadd.f32 %v71, %v198
  %v200 = vpop.f32.mrb[0].mxu0
  %v201 = vadd.f32 %v75, %v200
  %202 = vmatprep.mubr.f32.mxu0 0.0
  %203 = vmatmul.mubr.f32.gmra.mrb[0].mxu0 %v100
  %v204 = vpop.f32.mrb[0].mxu0
  %v205 = vadd.f32 %v71, %v204
  %v206 = vpop.f32.mrb[0].mxu0
  %v207 = vadd.f32 %v75, %v206
  %208 = vmatprep.mubr.f32.mxu0 0.0
  %209 = vmatmul.mubr.f32.gmra.mrb[0].mxu0 %v103
  %v210 = vpop.f32.mrb[0].mxu0
  %v211 = vadd.f32 %v71, %v210
  %v212 = vpop.f32.mrb[0].mxu0
  %v213 = vadd.f32 %v75, %v212
  %214 = vmatprep.mubr.f32.mxu0 0.0
  %215 = vmatmul.mubr.f32.gmra.mrb[0].mxu0 %v106
  %v216 = vpop.f32.mrb[0].mxu0
  %v217 = vadd.f32 %v71, %v216
  %v218 = vpop.f32.mrb[0].mxu0
  %v219 = vadd.f32 %v75, %v218
  %220 = vdwg.mxu0
  %221 = vmatprep.subr.mxu0 0.0
  %222 = vmatpush1.msra.mxu0 %v65
  %223 = vmatprep.subr.mxu0 0.0
  %224 = vmatpush1.msra.mxu0 0.0
  %225 = vmatprep.subr.mxu0 0.0
  %226 = vmatpush1.msra.mxu0 0.0
  %227 = vmatprep.subr.mxu0 0.0
  %228 = vmatpush1.msra.mxu0 0.0
  %229 = vmatprep.subr.mxu0 0.0
  %230 = vmatpush1.msra.mxu0 0.0
  %231 = vmatprep.subr.mxu0 0.0
  %232 = vmatpush1.msra.mxu0 0.0
  %233 = vmatprep.subr.mxu0 0.0
  %234 = vmatpush1.msra.mxu0 0.0
  %235 = vmatprep.subr.mxu0 0.0
  %236 = vmatpush1.msra.mxu0 0.0
  %237 = vmatprep.subr.mxu0 0.0
  %238 = vmatpush1.msra.mxu0 0.0
  %239 = vmatprep.subr.mxu0 0.0
  %240 = vmatpush1.msra.mxu0 0.0
  %241 = vmatprep.subr.mxu0 0.0
  %242 = vmatpush1.msra.mxu0 0.0
  %243 = vmatprep.subr.mxu0 0.0
  %244 = vmatpush1.msra.mxu0 0.0
  %245 = vmatprep.subr.mxu0 0.0
  %246 = vmatpush1.msra.mxu0 0.0
  %247 = vmatprep.subr.mxu0 0.0
  %248 = vmatpush1.msra.mxu0 0.0
  %249 = vmatprep.subr.mxu0 0.0
  %250 = vmatpush1.msra.mxu0 0.0
  %251 = vmatprep.subr.mxu0 0.0
  %252 = vmatpush1.msra.mxu0 0.0
  %253 = vmatprep.subr.mxu0 0.0
  %254 = vmatpush1.msra.mxu0 0.0
  %255 = vmatprep.subr.mxu0 0.0
  %256 = vmatpush1.msra.mxu0 0.0
  %257 = vmatprep.subr.mxu0 0.0
  %258 = vmatpush1.msra.mxu0 0.0
  %259 = vmatprep.subr.mxu0 0.0
  %260 = vmatpush1.msra.mxu0 0.0
  %261 = vmatprep.subr.mxu0 0.0
  %262 = vmatpush1.msra.mxu0 0.0
  %263 = vmatprep.subr.mxu0 0.0
  %264 = vmatpush1.msra.mxu0 0.0
  %265 = vmatprep.subr.mxu0 0.0
  %266 = vmatpush1.msra.mxu0 0.0
  %267 = vmatprep.subr.mxu0 0.0
  %268 = vmatpush1.msra.mxu0 0.0
  %269 = vmatprep.subr.mxu0 0.0
  %270 = vmatpush1.msra.mxu0 0.0
  %271 = vmatprep.subr.mxu0 0.0
  %272 = vmatpush1.msra.mxu0 0.0
  %273 = vmatprep.subr.mxu0 0.0
  %274 = vmatpush1.msra.mxu0 0.0
  %275 = vmatprep.subr.mxu0 0.0
  %276 = vmatpush1.msra.mxu0 0.0
  %277 = vmatprep.subr.mxu0 0.0
  %278 = vmatpush1.msra.mxu0 0.0
  %279 = vmatprep.subr.mxu0 0.0
  %280 = vmatpush1.msra.mxu0 0.0
  %281 = vmatprep.subr.mxu0 0.0
  %282 = vmatpush1.msra.mxu0 0.0
  %283 = vmatprep.subr.mxu0 0.0
  %284 = vmatpush1.msra.mxu0 0.0
  %285 = vmatprep.mubr.f32.mxu0 0.0
  %286 = vmatmul.mubr.f32.gmra.mrb[0].mxu0 %v85
  %v287 = vpop.f32.mrb[0].mxu0
  %v288 = vadd.f32 %v79, %v287
  %v289 = vpop.f32.mrb[0].mxu0
  %290 = vmatprep.mubr.f32.mxu0 0.0
  %291 = vmatmul.mubr.f32.gmra.mrb[0].mxu0 %v88
  %v292 = vpop.f32.mrb[0].mxu0
  %v293 = vadd.f32 %v79, %v292
  %v294 = vpop.f32.mrb[0].mxu0
  %295 = vmatprep.mubr.f32.mxu0 0.0
  %296 = vmatmul.mubr.f32.gmra.mrb[0].mxu0 %v91
  %v297 = vpop.f32.mrb[0].mxu0
  %v298 = vadd.f32 %v79, %v297
  %v299 = vpop.f32.mrb[0].mxu0
  %300 = vmatprep.mubr.f32.mxu0 0.0
  %301 = vmatmul.mubr.f32.gmra.mrb[0].mxu0 %v94
  %v302 = vpop.f32.mrb[0].mxu0
  %v303 = vadd.f32 %v79, %v302
  %v304 = vpop.f32.mrb[0].mxu0
  %305 = vmatprep.mubr.f32.mxu0 0.0
  %306 = vmatmul.mubr.f32.gmra.mrb[0].mxu0 %v97
  %v307 = vpop.f32.mrb[0].mxu0
  %v308 = vadd.f32 %v79, %v307
  %v309 = vpop.f32.mrb[0].mxu0
  %310 = vmatprep.mubr.f32.mxu0 0.0
  %311 = vmatmul.mubr.f32.gmra.mrb[0].mxu0 %v100
  %v312 = vpop.f32.mrb[0].mxu0
  %v313 = vadd.f32 %v79, %v312
  %v314 = vpop.f32.mrb[0].mxu0
  %315 = vmatprep.mubr.f32.mxu0 0.0
  %316 = vmatmul.mubr.f32.gmra.mrb[0].mxu0 %v103
  %v317 = vpop.f32.mrb[0].mxu0
  %v318 = vadd.f32 %v79, %v317
  %v319 = vpop.f32.mrb[0].mxu0
  %320 = vmatprep.mubr.f32.mxu0 0.0
  %321 = vmatmul.mubr.f32.gmra.mrb[0].mxu0 %v106
  %v322 = vpop.f32.mrb[0].mxu0
  %v323 = vadd.f32 %v79, %v322
  %v324 = vpop.f32.mrb[0].mxu0
  %325 = vdwg.mxu0
  %326 = vst [vmem:[#allocation2] sm:$0xff] %v175
  %327 = vst [vmem:[#allocation2 + $0x8] sm:$0xff] %v177
  %328 = vst [vmem:[#allocation2 + $0x10] sm:$0xff] %v288
  %329 = vst [vmem:[#allocation2 + $0x18] sm:$0xff] %v181
  %330 = vst [vmem:[#allocation2 + $0x20] sm:$0xff] %v183
  %331 = vst [vmem:[#allocation2 + $0x28] sm:$0xff] %v293
  %332 = vst [vmem:[#allocation2 + $0x30] sm:$0xff] %v187
  %333 = vst [vmem:[#allocation2 + $0x38] sm:$0xff] %v189
  %334 = vst [vmem:[#allocation2 + $0x40] sm:$0xff] %v298
  %335 = vst [vmem:[#allocation2 + $0x48] sm:$0xff] %v193
  %336 = vst [vmem:[#allocation2 + $0x50] sm:$0xff] %v195
  %337 = vst [vmem:[#allocation2 + $0x58] sm:$0xff] %v303
  %338 = vst [vmem:[#allocation2 + $0x60] sm:$0xff] %v199
  %339 = vst [vmem:[#allocation2 + $0x68] sm:$0xff] %v201
  %340 = vst [vmem:[#allocation2 + $0x70] sm:$0xff] %v308
  %341 = vst [vmem:[#allocation2 + $0x78] sm:$0xff] %v205
  %342 = vst [vmem:[#allocation2 + $0x80] sm:$0xff] %v207
  %343 = vst [vmem:[#allocation2 + $0x88] sm:$0xff] %v313
  %344 = vst [vmem:[#allocation2 + $0x90] sm:$0xff] %v211
  %345 = vst [vmem:[#allocation2 + $0x98] sm:$0xff] %v213
  %346 = vst [vmem:[#allocation2 + $0xa0] sm:$0xff] %v318
  %347 = vst [vmem:[#allocation2 + $0xa8] sm:$0xff] %v217
  %348 = vst [vmem:[#allocation2 + $0xb0] sm:$0xff] %v219
  %349 = vst [vmem:[#allocation2 + $0xb8] sm:$0xff] %v323
  %v350 = vld [vmem:[%s3] sm:$0xff]
  %v351 = vld [vmem:[%s3 + $0x8] sm:$0xff]
  %v352 = vld [vmem:[%s3 + $0x10] sm:$0xff]
  %v353 = vld [vmem:[%s3 + $0x18] sm:$0xff]
  %v354 = vld [vmem:[%s3 + $0x20] sm:$0xff]
  %v355 = vld [vmem:[%s3 + $0x28] sm:$0xff]
  %v356 = vld [vmem:[%s3 + $0x30] sm:$0xff]
  %v357 = vld [vmem:[%s3 + $0x38] sm:$0xff]
  %v358 = vld [vmem:[%s3 + $0x40] sm:$0xff]
  %v359 = vld [vmem:[%s3 + $0x48] sm:$0xff]
  %v360 = vld [vmem:[%s3 + $0x50] sm:$0xff]
  %v361 = vld [vmem:[%s3 + $0x58] sm:$0xff]
  %v362 = vld [vmem:[%s3 + $0x60] sm:$0xff]
  %v363 = vld [vmem:[%s3 + $0x68] sm:$0xff]
  %v364 = vld [vmem:[%s3 + $0x70] sm:$0xff]
  %v365 = vld [vmem:[%s3 + $0x78] sm:$0xff]
  %v366 = vld [vmem:[%s3 + $0x80] sm:$0xff]
  %v367 = vld [vmem:[%s3 + $0x88] sm:$0xff]
  %v368 = vld [vmem:[%s3 + $0x90] sm:$0xff]
  %v369 = vld [vmem:[%s3 + $0x98] sm:$0xff]
  %v370 = vld [vmem:[%s3 + $0xa0] sm:$0xff]
  %v371 = vld [vmem:[%s3 + $0xa8] sm:$0xff]
  %v372 = vld [vmem:[%s3 + $0xb0] sm:$0xff]
  %v373 = vld [vmem:[%s3 + $0xb8] sm:$0xff]
  %v374 = vld [vmem:[%s3 + $0xc0] sm:$0xff]
  %v375 = vld [vmem:[%s3 + $0xc8] sm:$0xff]
  %v376 = vld [vmem:[%s3 + $0xd0] sm:$0xff]
  %v377 = vld [vmem:[%s3 + $0xd8] sm:$0xff]
  %v378 = vld [vmem:[%s3 + $0xe0] sm:$0xff]
  %v379 = vld [vmem:[%s3 + $0xe8] sm:$0xff]
  %v380 = vld [vmem:[%s3 + $0xf0] sm:$0xff]
  %v381 = vld [vmem:[%s3 + $0xf8] sm:$0xff]
  %v382 = vld [vmem:[%s3 + $0x100] sm:$0xff]
  %v383 = vld [vmem:[%s3 + $0x108] sm:$0xff]
  %v384 = vld [vmem:[%s3 + $0x110] sm:$0xff]
  %v385 = vld [vmem:[%s3 + $0x118] sm:$0xff]
  %v386 = vld [vmem:[%s3 + $0x120] sm:$0xff]
  %v387 = vld [vmem:[%s3 + $0x128] sm:$0xff]
  %v388 = vld [vmem:[%s3 + $0x130] sm:$0xff]
  %v389 = vld [vmem:[%s3 + $0x138] sm:$0xff]
  %v390 = vld [vmem:[%s3 + $0x140] sm:$0xff]
  %v391 = vld [vmem:[%s3 + $0x148] sm:$0xff]
  %v392 = vld [vmem:[%s3 + $0x150] sm:$0xff]
  %v393 = vld [vmem:[%s3 + $0x158] sm:$0xff]
  %v394 = vld [vmem:[%s3 + $0x160] sm:$0xff]
  %v395 = vld [vmem:[%s3 + $0x168] sm:$0xff]
  %v396 = vld [vmem:[%s3 + $0x170] sm:$0xff]
  %v397 = vld [vmem:[%s3 + $0x178] sm:$0xff]
  %v398 = vld [vmem:[%s5] sm:$0x1]
  %v399 = vld [vmem:[%s1] sm:$0xff]
  %s400 = smul.u32 0, 3
  %s401 = smul.addr %s400, 8
  %s402 = scalar_lea.vmem [#allocation2], %s401
  %v403 = vld [vmem:[%s402] sm:$0xff]
  %v404 = vld [vmem:[%s402 + $0x8] sm:$0xff]
  %v405 = vld [vmem:[%s402 + $0x10] sm:$0xff]
  %406 = vmatprep.subr.mxu0 %v351
  %407 = vmatpush1.msra.mxu0 %v350
  %408 = vmatprep.subr.mxu0 %v354
  %409 = vmatpush1.msra.mxu0 %v353
  %410 = vmatprep.subr.mxu0 %v357
  %411 = vmatpush1.msra.mxu0 %v356
  %412 = vmatprep.subr.mxu0 %v360
  %413 = vmatpush1.msra.mxu0 %v359
  %414 = vmatprep.subr.mxu0 %v363
  %415 = vmatpush1.msra.mxu0 %v362
  %416 = vmatprep.subr.mxu0 %v366
  %417 = vmatpush1.msra.mxu0 %v365
  %418 = vmatprep.subr.mxu0 %v369
  %419 = vmatpush1.msra.mxu0 %v368
  %420 = vmatprep.subr.mxu0 %v372
  %421 = vmatpush1.msra.mxu0 %v371
  %422 = vmatprep.subr.mxu0 %v375
  %423 = vmatpush1.msra.mxu0 %v374
  %424 = vmatprep.subr.mxu0 %v378
  %425 = vmatpush1.msra.mxu0 %v377
  %426 = vmatprep.subr.mxu0 %v381
  %427 = vmatpush1.msra.mxu0 %v380
  %428 = vmatprep.subr.mxu0 %v384
  %429 = vmatpush1.msra.mxu0 %v383
  %430 = vmatprep.subr.mxu0 %v387
  %431 = vmatpush1.msra.mxu0 %v386
  %432 = vmatprep.subr.mxu0 %v390
  %433 = vmatpush1.msra.mxu0 %v389
  %434 = vmatprep.subr.mxu0 %v393
  %435 = vmatpush1.msra.mxu0 %v392
  %436 = vmatprep.subr.mxu0 %v396
  %437 = vmatpush1.msra.mxu0 %v395
  %438 = vmatprep.subr.mxu0 0.0
  %439 = vmatpush1.msra.mxu0 0.0
  %440 = vmatprep.subr.mxu0 0.0
  %441 = vmatpush1.msra.mxu0 0.0
  %442 = vmatprep.subr.mxu0 0.0
  %443 = vmatpush1.msra.mxu0 0.0
  %444 = vmatprep.subr.mxu0 0.0
  %445 = vmatpush1.msra.mxu0 0.0
  %446 = vmatprep.subr.mxu0 0.0
  %447 = vmatpush1.msra.mxu0 0.0
  %448 = vmatprep.subr.mxu0 0.0
  %449 = vmatpush1.msra.mxu0 0.0
  %450 = vmatprep.subr.mxu0 0.0
  %451 = vmatpush1.msra.mxu0 0.0
  %452 = vmatprep.subr.mxu0 0.0
  %453 = vmatpush1.msra.mxu0 0.0
  %454 = vmatprep.subr.mxu0 0.0
  %455 = vmatpush1.msra.mxu0 0.0
  %456 = vmatprep.subr.mxu0 0.0
  %457 = vmatpush1.msra.mxu0 0.0
  %458 = vmatprep.subr.mxu0 0.0
  %459 = vmatpush1.msra.mxu0 0.0
  %460 = vmatprep.subr.mxu0 0.0
  %461 = vmatpush1.msra.mxu0 0.0
  %462 = vmatprep.subr.mxu0 0.0
  %463 = vmatpush1.msra.mxu0 0.0
  %464 = vmatprep.subr.mxu0 0.0
  %465 = vmatpush1.msra.mxu0 0.0
  %466 = vmatprep.subr.mxu0 0.0
  %467 = vmatpush1.msra.mxu0 0.0
  %468 = vmatprep.subr.mxu0 0.0
  %469 = vmatpush1.msra.mxu0 0.0
  %470 = vmatprep.mubr.f32.mxu0 0.0
  %471 = vmatmul.mubr.f32.gmra.mrb[0].mxu0 %v399
  %v472 = vpop.f32.mrb[0].mxu0
  %v473 = vadd.f32 0.0, %v472
  %v474 = vpop.f32.mrb[0].mxu0
  %v475 = vadd.f32 0.0, %v474
  %476 = vdwg.mxu0
  %477 = vmatprep.subr.mxu0 0.0
  %478 = vmatpush1.msra.mxu0 %v352
  %479 = vmatprep.subr.mxu0 0.0
  %480 = vmatpush1.msra.mxu0 %v355
  %481 = vmatprep.subr.mxu0 0.0
  %482 = vmatpush1.msra.mxu0 %v358
  %483 = vmatprep.subr.mxu0 0.0
  %484 = vmatpush1.msra.mxu0 %v361
  %485 = vmatprep.subr.mxu0 0.0
  %486 = vmatpush1.msra.mxu0 %v364
  %487 = vmatprep.subr.mxu0 0.0
  %488 = vmatpush1.msra.mxu0 %v367
  %489 = vmatprep.subr.mxu0 0.0
  %490 = vmatpush1.msra.mxu0 %v370
  %491 = vmatprep.subr.mxu0 0.0
  %492 = vmatpush1.msra.mxu0 %v373
  %493 = vmatprep.subr.mxu0 0.0
  %494 = vmatpush1.msra.mxu0 %v376
  %495 = vmatprep.subr.mxu0 0.0
  %496 = vmatpush1.msra.mxu0 %v379
  %497 = vmatprep.subr.mxu0 0.0
  %498 = vmatpush1.msra.mxu0 %v382
  %499 = vmatprep.subr.mxu0 0.0
  %500 = vmatpush1.msra.mxu0 %v385
  %501 = vmatprep.subr.mxu0 0.0
  %502 = vmatpush1.msra.mxu0 %v388
  %503 = vmatprep.subr.mxu0 0.0
  %504 = vmatpush1.msra.mxu0 %v391
  %505 = vmatprep.subr.mxu0 0.0
  %506 = vmatpush1.msra.mxu0 %v394
  %507 = vmatprep.subr.mxu0 0.0
  %508 = vmatpush1.msra.mxu0 %v397
  %509 = vmatprep.subr.mxu0 0.0
  %510 = vmatpush1.msra.mxu0 0.0
  %511 = vmatprep.subr.mxu0 0.0
  %512 = vmatpush1.msra.mxu0 0.0
  %513 = vmatprep.subr.mxu0 0.0
  %514 = vmatpush1.msra.mxu0 0.0
  %515 = vmatprep.subr.mxu0 0.0
  %516 = vmatpush1.msra.mxu0 0.0
  %517 = vmatprep.subr.mxu0 0.0
  %518 = vmatpush1.msra.mxu0 0.0
  %519 = vmatprep.subr.mxu0 0.0
  %520 = vmatpush1.msra.mxu0 0.0
  %521 = vmatprep.subr.mxu0 0.0
  %522 = vmatpush1.msra.mxu0 0.0
  %523 = vmatprep.subr.mxu0 0.0
  %524 = vmatpush1.msra.mxu0 0.0
  %525 = vmatprep.subr.mxu0 0.0
  %526 = vmatpush1.msra.mxu0 0.0
  %527 = vmatprep.subr.mxu0 0.0
  %528 = vmatpush1.msra.mxu0 0.0
  %529 = vmatprep.subr.mxu0 0.0
  %530 = vmatpush1.msra.mxu0 0.0
  %531 = vmatprep.subr.mxu0 0.0
  %532 = vmatpush1.msra.mxu0 0.0
  %533 = vmatprep.subr.mxu0 0.0
  %534 = vmatpush1.msra.mxu0 0.0
  %535 = vmatprep.subr.mxu0 0.0
  %536 = vmatpush1.msra.mxu0 0.0
  %537 = vmatprep.subr.mxu0 0.0
  %538 = vmatpush1.msra.mxu0 0.0
  %539 = vmatprep.subr.mxu0 0.0
  %540 = vmatpush1.msra.mxu0 0.0
  %541 = vmatprep.mubr.f32.mxu0 0.0
  %542 = vmatmul.mubr.f32.gmra.mrb[0].mxu0 %v399
  %v543 = vpop.f32.mrb[0].mxu0
  %v544 = vadd.f32 0.0, %v543
  %v545 = vpop.f32.mrb[0].mxu0
  %546 = vdwg.mxu0
  %v547 = vadd.f32 %v403, %v473
  %v548 = vadd.f32 %v404, %v475
  %v549 = vmul.f32 %v547, 0.5
  %v550 = vmul.f32 %v548, 0.5
  %v551 = vtanh.pop %v549
  %v552 = vtanh.pop %v550
  %v553 = vadd.f32 %v551, 1.0
  %v554 = vadd.f32 %v552, 1.0
  %v555 = vmul.f32 %v553, 0.5
  %v556 = vmul.f32 %v554, 0.5
  %v558 = vlaneseq
  %v559 = vshrl.u32 %v558, 7
  %v560 = vsub.s32 0, %v559
  %v561 = vrot.slane %v398, %v560
  %v563 = vadd.f32 %v544, %v561
  %v564 = vmul.f32 %v555, %v563
  %v565 = vadd.f32 %v405, %v564
  %v566 = vtanh.pop %v565
  %v567 = vsub.f32 1.0, %v556
  %v568 = vsub.f32 %v566, %v399
  %v569 = vmul.f32 %v567, %v568
  %v570 = vadd.f32 %v399, %v569
  %571 = vst [vmem:[#allocation3] sm:$0xff] %v570
  %s572 = smul.u32 1, 3
  %s573 = smul.addr %s572, 8
  %s574 = scalar_lea.vmem [#allocation2], %s573
  %v575 = vld [vmem:[%s574] sm:$0xff]
  %v576 = vld [vmem:[%s574 + $0x8] sm:$0xff]
  %v577 = vld [vmem:[%s574 + $0x10] sm:$0xff]
  %578 = vmatprep.subr.mxu0 %v351
  %579 = vmatpush1.msra.mxu0 %v350
  %580 = vmatprep.subr.mxu0 %v354
  %581 = vmatpush1.msra.mxu0 %v353
  %582 = vmatprep.subr.mxu0 %v357
  %583 = vmatpush1.msra.mxu0 %v356
  %584 = vmatprep.subr.mxu0 %v360
  %585 = vmatpush1.msra.mxu0 %v359
  %586 = vmatprep.subr.mxu0 %v363
  %587 = vmatpush1.msra.mxu0 %v362
  %588 = vmatprep.subr.mxu0 %v366
  %589 = vmatpush1.msra.mxu0 %v365
  %590 = vmatprep.subr.mxu0 %v369
  %591 = vmatpush1.msra.mxu0 %v368
  %592 = vmatprep.subr.mxu0 %v372
  %593 = vmatpush1.msra.mxu0 %v371
  %594 = vmatprep.subr.mxu0 %v375
  %595 = vmatpush1.msra.mxu0 %v374
  %596 = vmatprep.subr.mxu0 %v378
  %597 = vmatpush1.msra.mxu0 %v377
  %598 = vmatprep.subr.mxu0 %v381
  %599 = vmatpush1.msra.mxu0 %v380
  %600 = vmatprep.subr.mxu0 %v384
  %601 = vmatpush1.msra.mxu0 %v383
  %602 = vmatprep.subr.mxu0 %v387
  %603 = vmatpush1.msra.mxu0 %v386
  %604 = vmatprep.subr.mxu0 %v390
  %605 = vmatpush1.msra.mxu0 %v389
  %606 = vmatprep.subr.mxu0 %v393
  %607 = vmatpush1.msra.mxu0 %v392
  %608 = vmatprep.subr.mxu0 %v396
  %609 = vmatpush1.msra.mxu0 %v395
  %610 = vmatprep.subr.mxu0 0.0
  %611 = vmatpush1.msra.mxu0 0.0
  %612 = vmatprep.subr.mxu0 0.0
  %613 = vmatpush1.msra.mxu0 0.0
  %614 = vmatprep.subr.mxu0 0.0
  %615 = vmatpush1.msra.mxu0 0.0
  %616 = vmatprep.subr.mxu0 0.0
  %617 = vmatpush1.msra.mxu0 0.0
  %618 = vmatprep.subr.mxu0 0.0
  %619 = vmatpush1.msra.mxu0 0.0
  %620 = vmatprep.subr.mxu0 0.0
  %621 = vmatpush1.msra.mxu0 0.0
  %622 = vmatprep.subr.mxu0 0.0
  %623 = vmatpush1.msra.mxu0 0.0
  %624 = vmatprep.subr.mxu0 0.0
  %625 = vmatpush1.msra.mxu0 0.0
  %626 = vmatprep.subr.mxu0 0.0
  %627 = vmatpush1.msra.mxu0 0.0
  %628 = vmatprep.subr.mxu0 0.0
  %629 = vmatpush1.msra.mxu0 0.0
  %630 = vmatprep.subr.mxu0 0.0
  %631 = vmatpush1.msra.mxu0 0.0
  %632 = vmatprep.subr.mxu0 0.0
  %633 = vmatpush1.msra.mxu0 0.0
  %634 = vmatprep.subr.mxu0 0.0
  %635 = vmatpush1.msra.mxu0 0.0
  %636 = vmatprep.subr.mxu0 0.0
  %637 = vmatpush1.msra.mxu0 0.0
  %638 = vmatprep.subr.mxu0 0.0
  %639 = vmatpush1.msra.mxu0 0.0
  %640 = vmatprep.subr.mxu0 0.0
  %641 = vmatpush1.msra.mxu0 0.0
  %642 = vmatprep.mubr.f32.mxu0 0.0
  %643 = vmatmul.mubr.f32.gmra.mrb[0].mxu0 %v570
  %v644 = vpop.f32.mrb[0].mxu0
  %v645 = vadd.f32 0.0, %v644
  %v646 = vpop.f32.mrb[0].mxu0
  %v647 = vadd.f32 0.0, %v646
  %648 = vdwg.mxu0
  %649 = vmatprep.subr.mxu0 0.0
  %650 = vmatpush1.msra.mxu0 %v352
  %651 = vmatprep.subr.mxu0 0.0
  %652 = vmatpush1.msra.mxu0 %v355
  %653 = vmatprep.subr.mxu0 0.0
  %654 = vmatpush1.msra.mxu0 %v358
  %655 = vmatprep.subr.mxu0 0.0
  %656 = vmatpush1.msra.mxu0 %v361
  %657 = vmatprep.subr.mxu0 0.0
  %658 = vmatpush1.msra.mxu0 %v364
  %659 = vmatprep.subr.mxu0 0.0
  %660 = vmatpush1.msra.mxu0 %v367
  %661 = vmatprep.subr.mxu0 0.0
  %662 = vmatpush1.msra.mxu0 %v370
  %663 = vmatprep.subr.mxu0 0.0
  %664 = vmatpush1.msra.mxu0 %v373
  %665 = vmatprep.subr.mxu0 0.0
  %666 = vmatpush1.msra.mxu0 %v376
  %667 = vmatprep.subr.mxu0 0.0
  %668 = vmatpush1.msra.mxu0 %v379
  %669 = vmatprep.subr.mxu0 0.0
  %670 = vmatpush1.msra.mxu0 %v382
  %671 = vmatprep.subr.mxu0 0.0
  %672 = vmatpush1.msra.mxu0 %v385
  %673 = vmatprep.subr.mxu0 0.0
  %674 = vmatpush1.msra.mxu0 %v388
  %675 = vmatprep.subr.mxu0 0.0
  %676 = vmatpush1.msra.mxu0 %v391
  %677 = vmatprep.subr.mxu0 0.0
  %678 = vmatpush1.msra.mxu0 %v394
  %679 = vmatprep.subr.mxu0 0.0
  %680 = vmatpush1.msra.mxu0 %v397
  %681 = vmatprep.subr.mxu0 0.0
  %682 = vmatpush1.msra.mxu0 0.0
  %683 = vmatprep.subr.mxu0 0.0
  %684 = vmatpush1.msra.mxu0 0.0
  %685 = vmatprep.subr.mxu0 0.0
  %686 = vmatpush1.msra.mxu0 0.0
  %687 = vmatprep.subr.mxu0 0.0
  %688 = vmatpush1.msra.mxu0 0.0
  %689 = vmatprep.subr.mxu0 0.0
  %690 = vmatpush1.msra.mxu0 0.0
  %691 = vmatprep.subr.mxu0 0.0
  %692 = vmatpush1.msra.mxu0 0.0
  %693 = vmatprep.subr.mxu0 0.0
  %694 = vmatpush1.msra.mxu0 0.0
  %695 = vmatprep.subr.mxu0 0.0
  %696 = vmatpush1.msra.mxu0 0.0
  %697 = vmatprep.subr.mxu0 0.0
  %698 = vmatpush1.msra.mxu0 0.0
  %699 = vmatprep.subr.mxu0 0.0
  %700 = vmatpush1.msra.mxu0 0.0
  %701 = vmatprep.subr.mxu0 0.0
  %702 = vmatpush1.msra.mxu0 0.0
  %703 = vmatprep.subr.mxu0 0.0
  %704 = vmatpush1.msra.mxu0 0.0
  %705 = vmatprep.subr.mxu0 0.0
  %706 = vmatpush1.msra.mxu0 0.0
  %707 = vmatprep.subr.mxu0 0.0
  %708 = vmatpush1.msra.mxu0 0.0
  %709 = vmatprep.subr.mxu0 0.0
  %710 = vmatpush1.msra.mxu0 0.0
  %711 = vmatprep.subr.mxu0 0.0
  %712 = vmatpush1.msra.mxu0 0.0
  %713 = vmatprep.mubr.f32.mxu0 0.0
  %714 = vmatmul.mubr.f32.gmra.mrb[0].mxu0 %v570
  %v715 = vpop.f32.mrb[0].mxu0
  %v716 = vadd.f32 0.0, %v715
  %v717 = vpop.f32.mrb[0].mxu0
  %718 = vdwg.mxu0
  %v719 = vadd.f32 %v575, %v645
  %v720 = vadd.f32 %v576, %v647
  %v721 = vmul.f32 %v719, 0.5
  %v722 = vmul.f32 %v720, 0.5
  %v723 = vtanh.pop %v721
  %v724 = vtanh.pop %v722
  %v725 = vadd.f32 %v723, 1.0
  %v726 = vadd.f32 %v724, 1.0
  %v727 = vmul.f32 %v725, 0.5
  %v728 = vmul.f32 %v726, 0.5
  %v729 = vadd.f32 %v716, %v561
  %v730 = vmul.f32 %v727, %v729
  %v731 = vadd.f32 %v577, %v730
  %v732 = vtanh.pop %v731
  %v733 = vsub.f32 1.0, %v728
  %v734 = vsub.f32 %v732, %v570
  %v735 = vmul.f32 %v733, %v734
  %v736 = vadd.f32 %v570, %v735
  %s737 = scalar_lea.vmem [#allocation3], 8
  %738 = vst [vmem:[%s737] sm:$0xff] %v736
  %s739 = smul.u32 2, 3
  %s740 = smul.addr %s739, 8
  %s741 = scalar_lea.vmem [#allocation2], %s740
  %v742 = vld [vmem:[%s741] sm:$0xff]
  %v743 = vld [vmem:[%s741 + $0x8] sm:$0xff]
  %v744 = vld [vmem:[%s741 + $0x10] sm:$0xff]
  %745 = vmatprep.subr.mxu0 %v351
  %746 = vmatpush1.msra.mxu0 %v350
  %747 = vmatprep.subr.mxu0 %v354
  %748 = vmatpush1.msra.mxu0 %v353
  %749 = vmatprep.subr.mxu0 %v357
  %750 = vmatpush1.msra.mxu0 %v356
  %751 = vmatprep.subr.mxu0 %v360
  %752 = vmatpush1.msra.mxu0 %v359
  %753 = vmatprep.subr.mxu0 %v363
  %754 = vmatpush1.msra.mxu0 %v362
  %755 = vmatprep.subr.mxu0 %v366
  %756 = vmatpush1.msra.mxu0 %v365
  %757 = vmatprep.subr.mxu0 %v369
  %758 = vmatpush1.msra.mxu0 %v368
  %759 = vmatprep.subr.mxu0 %v372
  %760 = vmatpush1.msra.mxu0 %v371
  %761 = vmatprep.subr.mxu0 %v375
  %762 = vmatpush1.msra.mxu0 %v374
  %763 = vmatprep.subr.mxu0 %v378
  %764 = vmatpush1.msra.mxu0 %v377
  %765 = vmatprep.subr.mxu0 %v381
  %766 = vmatpush1.msra.mxu0 %v380
  %767 = vmatprep.subr.mxu0 %v384
  %768 = vmatpush1.msra.mxu0 %v383
  %769 = vmatprep.subr.mxu0 %v387
  %770 = vmatpush1.msra.mxu0 %v386
  %771 = vmatprep.subr.mxu0 %v390
  %772 = vmatpush1.msra.mxu0 %v389
  %773 = vmatprep.subr.mxu0 %v393
  %774 = vmatpush1.msra.mxu0 %v392
  %775 = vmatprep.subr.mxu0 %v396
  %776 = vmatpush1.msra.mxu0 %v395
  %777 = vmatprep.subr.mxu0 0.0
  %778 = vmatpush1.msra.mxu0 0.0
  %779 = vmatprep.subr.mxu0 0.0
  %780 = vmatpush1.msra.mxu0 0.0
  %781 = vmatprep.subr.mxu0 0.0
  %782 = vmatpush1.msra.mxu0 0.0
  %783 = vmatprep.subr.mxu0 0.0
  %784 = vmatpush1.msra.mxu0 0.0
  %785 = vmatprep.subr.mxu0 0.0
  %786 = vmatpush1.msra.mxu0 0.0
  %787 = vmatprep.subr.mxu0 0.0
  %788 = vmatpush1.msra.mxu0 0.0
  %789 = vmatprep.subr.mxu0 0.0
  %790 = vmatpush1.msra.mxu0 0.0
  %791 = vmatprep.subr.mxu0 0.0
  %792 = vmatpush1.msra.mxu0 0.0
  %793 = vmatprep.subr.mxu0 0.0
  %794 = vmatpush1.msra.mxu0 0.0
  %795 = vmatprep.subr.mxu0 0.0
  %796 = vmatpush1.msra.mxu0 0.0
  %797 = vmatprep.subr.mxu0 0.0
  %798 = vmatpush1.msra.mxu0 0.0
  %799 = vmatprep.subr.mxu0 0.0
  %800 = vmatpush1.msra.mxu0 0.0
  %801 = vmatprep.subr.mxu0 0.0
  %802 = vmatpush1.msra.mxu0 0.0
  %803 = vmatprep.subr.mxu0 0.0
  %804 = vmatpush1.msra.mxu0 0.0
  %805 = vmatprep.subr.mxu0 0.0
  %806 = vmatpush1.msra.mxu0 0.0
  %807 = vmatprep.subr.mxu0 0.0
  %808 = vmatpush1.msra.mxu0 0.0
  %809 = vmatprep.mubr.f32.mxu0 0.0
  %810 = vmatmul.mubr.f32.gmra.mrb[0].mxu0 %v736
  %v811 = vpop.f32.mrb[0].mxu0
  %v812 = vadd.f32 0.0, %v811
  %v813 = vpop.f32.mrb[0].mxu0
  %v814 = vadd.f32 0.0, %v813
  %815 = vdwg.mxu0
  %816 = vmatprep.subr.mxu0 0.0
  %817 = vmatpush1.msra.mxu0 %v352
  %818 = vmatprep.subr.mxu0 0.0
  %819 = vmatpush1.msra.mxu0 %v355
  %820 = vmatprep.subr.mxu0 0.0
  %821 = vmatpush1.msra.mxu0 %v358
  %822 = vmatprep.subr.mxu0 0.0
  %823 = vmatpush1.msra.mxu0 %v361
  %824 = vmatprep.subr.mxu0 0.0
  %825 = vmatpush1.msra.mxu0 %v364
  %826 = vmatprep.subr.mxu0 0.0
  %827 = vmatpush1.msra.mxu0 %v367
  %828 = vmatprep.subr.mxu0 0.0
  %829 = vmatpush1.msra.mxu0 %v370
  %830 = vmatprep.subr.mxu0 0.0
  %831 = vmatpush1.msra.mxu0 %v373
  %832 = vmatprep.subr.mxu0 0.0
  %833 = vmatpush1.msra.mxu0 %v376
  %834 = vmatprep.subr.mxu0 0.0
  %835 = vmatpush1.msra.mxu0 %v379
  %836 = vmatprep.subr.mxu0 0.0
  %837 = vmatpush1.msra.mxu0 %v382
  %838 = vmatprep.subr.mxu0 0.0
  %839 = vmatpush1.msra.mxu0 %v385
  %840 = vmatprep.subr.mxu0 0.0
  %841 = vmatpush1.msra.mxu0 %v388
  %842 = vmatprep.subr.mxu0 0.0
  %843 = vmatpush1.msra.mxu0 %v391
  %844 = vmatprep.subr.mxu0 0.0
  %845 = vmatpush1.msra.mxu0 %v394
  %846 = vmatprep.subr.mxu0 0.0
  %847 = vmatpush1.msra.mxu0 %v397
  %848 = vmatprep.subr.mxu0 0.0
  %849 = vmatpush1.msra.mxu0 0.0
  %850 = vmatprep.subr.mxu0 0.0
  %851 = vmatpush1.msra.mxu0 0.0
  %852 = vmatprep.subr.mxu0 0.0
  %853 = vmatpush1.msra.mxu0 0.0
  %854 = vmatprep.subr.mxu0 0.0
  %855 = vmatpush1.msra.mxu0 0.0
  %856 = vmatprep.subr.mxu0 0.0
  %857 = vmatpush1.msra.mxu0 0.0
  %858 = vmatprep.subr.mxu0 0.0
  %859 = vmatpush1.msra.mxu0 0.0
  %860 = vmatprep.subr.mxu0 0.0
  %861 = vmatpush1.msra.mxu0 0.0
  %862 = vmatprep.subr.mxu0 0.0
  %863 = vmatpush1.msra.mxu0 0.0
  %864 = vmatprep.subr.mxu0 0.0
  %865 = vmatpush1.msra.mxu0 0.0
  %866 = vmatprep.subr.mxu0 0.0
  %867 = vmatpush1.msra.mxu0 0.0
  %868 = vmatprep.subr.mxu0 0.0
  %869 = vmatpush1.msra.mxu0 0.0
  %870 = vmatprep.subr.mxu0 0.0
  %871 = vmatpush1.msra.mxu0 0.0
  %872 = vmatprep.subr.mxu0 0.0
  %873 = vmatpush1.msra.mxu0 0.0
  %874 = vmatprep.subr.mxu0 0.0
  %875 = vmatpush1.msra.mxu0 0.0
  %876 = vmatprep.subr.mxu0 0.0
  %877 = vmatpush1.msra.mxu0 0.0
  %878 = vmatprep.subr.mxu0 0.0
  %879 = vmatpush1.msra.mxu0 0.0
  %880 = vmatprep.mubr.f32.mxu0 0.0
  %881 = vmatmul.mubr.f32.gmra.mrb[0].mxu0 %v736
  %v882 = vpop.f32.mrb[0].mxu0
  %v883 = vadd.f32 0.0, %v882
  %v884 = vpop.f32.mrb[0].mxu0
  %885 = vdwg.mxu0
  %v886 = vadd.f32 %v742, %v812
  %v887 = vadd.f32 %v743, %v814
  %v888 = vmul.f32 %v886, 0.5
  %v889 = vmul.f32 %v887, 0.5
  %v890 = vtanh.pop %v888
  %v891 = vtanh.pop %v889
  %v892 = vadd.f32 %v890, 1.0
  %v893 = vadd.f32 %v891, 1.0
  %v894 = vmul.f32 %v892, 0.5
  %v895 = vmul.f32 %v893, 0.5
  %v896 = vadd.f32 %v883, %v561
  %v897 = vmul.f32 %v894, %v896
  %v898 = vadd.f32 %v744, %v897
  %v899 = vtanh.pop %v898
  %v900 = vsub.f32 1.0, %v895
  %v901 = vsub.f32 %v899, %v736
  %v902 = vmul.f32 %v900, %v901
  %v903 = vadd.f32 %v736, %v902
  %s904 = scalar_lea.vmem [#allocation3], 16
  %905 = vst [vmem:[%s904] sm:$0xff] %v903
  %s906 = smul.u32 3, 3
  %s907 = smul.addr %s906, 8
  %s908 = scalar_lea.vmem [#allocation2], %s907
  %v909 = vld [vmem:[%s908] sm:$0xff]
  %v910 = vld [vmem:[%s908 + $0x8] sm:$0xff]
  %v911 = vld [vmem:[%s908 + $0x10] sm:$0xff]
  %912 = vmatprep.subr.mxu0 %v351
  %913 = vmatpush1.msra.mxu0 %v350
  %914 = vmatprep.subr.mxu0 %v354
  %915 = vmatpush1.msra.mxu0 %v353
  %916 = vmatprep.subr.mxu0 %v357
  %917 = vmatpush1.msra.mxu0 %v356
  %918 = vmatprep.subr.mxu0 %v360
  %919 = vmatpush1.msra.mxu0 %v359
  %920 = vmatprep.subr.mxu0 %v363
  %921 = vmatpush1.msra.mxu0 %v362
  %922 = vmatprep.subr.mxu0 %v366
  %923 = vmatpush1.msra.mxu0 %v365
  %924 = vmatprep.subr.mxu0 %v369
  %925 = vmatpush1.msra.mxu0 %v368
  %926 = vmatprep.subr.mxu0 %v372
  %927 = vmatpush1.msra.mxu0 %v371
  %928 = vmatprep.subr.mxu0 %v375
  %929 = vmatpush1.msra.mxu0 %v374
  %930 = vmatprep.subr.mxu0 %v378
  %931 = vmatpush1.msra.mxu0 %v377
  %932 = vmatprep.subr.mxu0 %v381
  %933 = vmatpush1.msra.mxu0 %v380
  %934 = vmatprep.subr.mxu0 %v384
  %935 = vmatpush1.msra.mxu0 %v383
  %936 = vmatprep.subr.mxu0 %v387
  %937 = vmatpush1.msra.mxu0 %v386
  %938 = vmatprep.subr.mxu0 %v390
  %939 = vmatpush1.msra.mxu0 %v389
  %940 = vmatprep.subr.mxu0 %v393
  %941 = vmatpush1.msra.mxu0 %v392
  %942 = vmatprep.subr.mxu0 %v396
  %943 = vmatpush1.msra.mxu0 %v395
  %944 = vmatprep.subr.mxu0 0.0
  %945 = vmatpush1.msra.mxu0 0.0
  %946 = vmatprep.subr.mxu0 0.0
  %947 = vmatpush1.msra.mxu0 0.0
  %948 = vmatprep.subr.mxu0 0.0
  %949 = vmatpush1.msra.mxu0 0.0
  %950 = vmatprep.subr.mxu0 0.0
  %951 = vmatpush1.msra.mxu0 0.0
  %952 = vmatprep.subr.mxu0 0.0
  %953 = vmatpush1.msra.mxu0 0.0
  %954 = vmatprep.subr.mxu0 0.0
  %955 = vmatpush1.msra.mxu0 0.0
  %956 = vmatprep.subr.mxu0 0.0
  %957 = vmatpush1.msra.mxu0 0.0
  %958 = vmatprep.subr.mxu0 0.0
  %959 = vmatpush1.msra.mxu0 0.0
  %960 = vmatprep.subr.mxu0 0.0
  %961 = vmatpush1.msra.mxu0 0.0
  %962 = vmatprep.subr.mxu0 0.0
  %963 = vmatpush1.msra.mxu0 0.0
  %964 = vmatprep.subr.mxu0 0.0
  %965 = vmatpush1.msra.mxu0 0.0
  %966 = vmatprep.subr.mxu0 0.0
  %967 = vmatpush1.msra.mxu0 0.0
  %968 = vmatprep.subr.mxu0 0.0
  %969 = vmatpush1.msra.mxu0 0.0
  %970 = vmatprep.subr.mxu0 0.0
  %971 = vmatpush1.msra.mxu0 0.0
  %972 = vmatprep.subr.mxu0 0.0
  %973 = vmatpush1.msra.mxu0 0.0
  %974 = vmatprep.subr.mxu0 0.0
  %975 = vmatpush1.msra.mxu0 0.0
  %976 = vmatprep.mubr.f32.mxu0 0.0
  %977 = vmatmul.mubr.f32.gmra.mrb[0].mxu0 %v903
  %v978 = vpop.f32.mrb[0].mxu0
  %v979 = vadd.f32 0.0, %v978
  %v980 = vpop.f32.mrb[0].mxu0
  %v981 = vadd.f32 0.0, %v980
  %982 = vdwg.mxu0
  %983 = vmatprep.subr.mxu0 0.0
  %984 = vmatpush1.msra.mxu0 %v352
  %985 = vmatprep.subr.mxu0 0.0
  %986 = vmatpush1.msra.mxu0 %v355
  %987 = vmatprep.subr.mxu0 0.0
  %988 = vmatpush1.msra.mxu0 %v358
  %989 = vmatprep.subr.mxu0 0.0
  %990 = vmatpush1.msra.mxu0 %v361
  %991 = vmatprep.subr.mxu0 0.0
  %992 = vmatpush1.msra.mxu0 %v364
  %993 = vmatprep.subr.mxu0 0.0
  %994 = vmatpush1.msra.mxu0 %v367
  %995 = vmatprep.subr.mxu0 0.0
  %996 = vmatpush1.msra.mxu0 %v370
  %997 = vmatprep.subr.mxu0 0.0
  %998 = vmatpush1.msra.mxu0 %v373
  %999 = vmatprep.subr.mxu0 0.0
  %1000 = vmatpush1.msra.mxu0 %v376
  %1001 = vmatprep.subr.mxu0 0.0
  %1002 = vmatpush1.msra.mxu0 %v379
  %1003 = vmatprep.subr.mxu0 0.0
  %1004 = vmatpush1.msra.mxu0 %v382
  %1005 = vmatprep.subr.mxu0 0.0
  %1006 = vmatpush1.msra.mxu0 %v385
  %1007 = vmatprep.subr.mxu0 0.0
  %1008 = vmatpush1.msra.mxu0 %v388
  %1009 = vmatprep.subr.mxu0 0.0
  %1010 = vmatpush1.msra.mxu0 %v391
  %1011 = vmatprep.subr.mxu0 0.0
  %1012 = vmatpush1.msra.mxu0 %v394
  %1013 = vmatprep.subr.mxu0 0.0
  %1014 = vmatpush1.msra.mxu0 %v397
  %1015 = vmatprep.subr.mxu0 0.0
  %1016 = vmatpush1.msra.mxu0 0.0
  %1017 = vmatprep.subr.mxu0 0.0
  %1018 = vmatpush1.msra.mxu0 0.0
  %1019 = vmatprep.subr.mxu0 0.0
  %1020 = vmatpush1.msra.mxu0 0.0
  %1021 = vmatprep.subr.mxu0 0.0
  %1022 = vmatpush1.msra.mxu0 0.0
  %1023 = vmatprep.subr.mxu0 0.0
  %1024 = vmatpush1.msra.mxu0 0.0
  %1025 = vmatprep.subr.mxu0 0.0
  %1026 = vmatpush1.msra.mxu0 0.0
  %1027 = vmatprep.subr.mxu0 0.0
  %1028 = vmatpush1.msra.mxu0 0.0
  %1029 = vmatprep.subr.mxu0 0.0
  %1030 = vmatpush1.msra.mxu0 0.0
  %1031 = vmatprep.subr.mxu0 0.0
  %1032 = vmatpush1.msra.mxu0 0.0
  %1033 = vmatprep.subr.mxu0 0.0
  %1034 = vmatpush1.msra.mxu0 0.0
  %1035 = vmatprep.subr.mxu0 0.0
  %1036 = vmatpush1.msra.mxu0 0.0
  %1037 = vmatprep.subr.mxu0 0.0
  %1038 = vmatpush1.msra.mxu0 0.0
  %1039 = vmatprep.subr.mxu0 0.0
  %1040 = vmatpush1.msra.mxu0 0.0
  %1041 = vmatprep.subr.mxu0 0.0
  %1042 = vmatpush1.msra.mxu0 0.0
  %1043 = vmatprep.subr.mxu0 0.0
  %1044 = vmatpush1.msra.mxu0 0.0
  %1045 = vmatprep.subr.mxu0 0.0
  %1046 = vmatpush1.msra.mxu0 0.0
  %1047 = vmatprep.mubr.f32.mxu0 0.0
  %1048 = vmatmul.mubr.f32.gmra.mrb[0].mxu0 %v903
  %v1049 = vpop.f32.mrb[0].mxu0
  %v1050 = vadd.f32 0.0, %v1049
  %v1051 = vpop.f32.mrb[0].mxu0
  %1052 = vdwg.mxu0
  %v1053 = vadd.f32 %v909, %v979
  %v1054 = vadd.f32 %v910, %v981
  %v1055 = vmul.f32 %v1053, 0.5
  %v1056 = vmul.f32 %v1054, 0.5
  %v1057 = vtanh.pop %v1055
  %v1058 = vtanh.pop %v1056
  %v1059 = vadd.f32 %v1057, 1.0
  %v1060 = vadd.f32 %v1058, 1.0
  %v1061 = vmul.f32 %v1059, 0.5
  %v1062 = vmul.f32 %v1060, 0.5
  %v1063 = vadd.f32 %v1050, %v561
  %v1064 = vmul.f32 %v1061, %v1063
  %v1065 = vadd.f32 %v911, %v1064
  %v1066 = vtanh.pop %v1065
  %v1067 = vsub.f32 1.0, %v1062
  %v1068 = vsub.f32 %v1066, %v903
  %v1069 = vmul.f32 %v1067, %v1068
  %v1070 = vadd.f32 %v903, %v1069
  %s1071 = scalar_lea.vmem [#allocation3], 24
  %1072 = vst [vmem:[%s1071] sm:$0xff] %v1070
  %s1073 = smul.u32 4, 3
  %s1074 = smul.addr %s1073, 8
  %s1075 = scalar_lea.vmem [#allocation2], %s1074
  %v1076 = vld [vmem:[%s1075] sm:$0xff]
  %v1077 = vld [vmem:[%s1075 + $0x8] sm:$0xff]
  %v1078 = vld [vmem:[%s1075 + $0x10] sm:$0xff]
  %1079 = vmatprep.subr.mxu0 %v351
  %1080 = vmatpush1.msra.mxu0 %v350
  %1081 = vmatprep.subr.mxu0 %v354
  %1082 = vmatpush1.msra.mxu0 %v353
  %1083 = vmatprep.subr.mxu0 %v357
  %1084 = vmatpush1.msra.mxu0 %v356
  %1085 = vmatprep.subr.mxu0 %v360
  %1086 = vmatpush1.msra.mxu0 %v359
  %1087 = vmatprep.subr.mxu0 %v363
  %1088 = vmatpush1.msra.mxu0 %v362
  %1089 = vmatprep.subr.mxu0 %v366
  %1090 = vmatpush1.msra.mxu0 %v365
  %1091 = vmatprep.subr.mxu0 %v369
  %1092 = vmatpush1.msra.mxu0 %v368
  %1093 = vmatprep.subr.mxu0 %v372
  %1094 = vmatpush1.msra.mxu0 %v371
  %1095 = vmatprep.subr.mxu0 %v375
  %1096 = vmatpush1.msra.mxu0 %v374
  %1097 = vmatprep.subr.mxu0 %v378
  %1098 = vmatpush1.msra.mxu0 %v377
  %1099 = vmatprep.subr.mxu0 %v381
  %1100 = vmatpush1.msra.mxu0 %v380
  %1101 = vmatprep.subr.mxu0 %v384
  %1102 = vmatpush1.msra.mxu0 %v383
  %1103 = vmatprep.subr.mxu0 %v387
  %1104 = vmatpush1.msra.mxu0 %v386
  %1105 = vmatprep.subr.mxu0 %v390
  %1106 = vmatpush1.msra.mxu0 %v389
  %1107 = vmatprep.subr.mxu0 %v393
  %1108 = vmatpush1.msra.mxu0 %v392
  %1109 = vmatprep.subr.mxu0 %v396
  %1110 = vmatpush1.msra.mxu0 %v395
  %1111 = vmatprep.subr.mxu0 0.0
  %1112 = vmatpush1.msra.mxu0 0.0
  %1113 = vmatprep.subr.mxu0 0.0
  %1114 = vmatpush1.msra.mxu0 0.0
  %1115 = vmatprep.subr.mxu0 0.0
  %1116 = vmatpush1.msra.mxu0 0.0
  %1117 = vmatprep.subr.mxu0 0.0
  %1118 = vmatpush1.msra.mxu0 0.0
  %1119 = vmatprep.subr.mxu0 0.0
  %1120 = vmatpush1.msra.mxu0 0.0
  %1121 = vmatprep.subr.mxu0 0.0
  %1122 = vmatpush1.msra.mxu0 0.0
  %1123 = vmatprep.subr.mxu0 0.0
  %1124 = vmatpush1.msra.mxu0 0.0
  %1125 = vmatprep.subr.mxu0 0.0
  %1126 = vmatpush1.msra.mxu0 0.0
  %1127 = vmatprep.subr.mxu0 0.0
  %1128 = vmatpush1.msra.mxu0 0.0
  %1129 = vmatprep.subr.mxu0 0.0
  %1130 = vmatpush1.msra.mxu0 0.0
  %1131 = vmatprep.subr.mxu0 0.0
  %1132 = vmatpush1.msra.mxu0 0.0
  %1133 = vmatprep.subr.mxu0 0.0
  %1134 = vmatpush1.msra.mxu0 0.0
  %1135 = vmatprep.subr.mxu0 0.0
  %1136 = vmatpush1.msra.mxu0 0.0
  %1137 = vmatprep.subr.mxu0 0.0
  %1138 = vmatpush1.msra.mxu0 0.0
  %1139 = vmatprep.subr.mxu0 0.0
  %1140 = vmatpush1.msra.mxu0 0.0
  %1141 = vmatprep.subr.mxu0 0.0
  %1142 = vmatpush1.msra.mxu0 0.0
  %1143 = vmatprep.mubr.f32.mxu0 0.0
  %1144 = vmatmul.mubr.f32.gmra.mrb[0].mxu0 %v1070
  %v1145 = vpop.f32.mrb[0].mxu0
  %v1146 = vadd.f32 0.0, %v1145
  %v1147 = vpop.f32.mrb[0].mxu0
  %v1148 = vadd.f32 0.0, %v1147
  %1149 = vdwg.mxu0
  %1150 = vmatprep.subr.mxu0 0.0
  %1151 = vmatpush1.msra.mxu0 %v352
  %1152 = vmatprep.subr.mxu0 0.0
  %1153 = vmatpush1.msra.mxu0 %v355
  %1154 = vmatprep.subr.mxu0 0.0
  %1155 = vmatpush1.msra.mxu0 %v358
  %1156 = vmatprep.subr.mxu0 0.0
  %1157 = vmatpush1.msra.mxu0 %v361
  %1158 = vmatprep.subr.mxu0 0.0
  %1159 = vmatpush1.msra.mxu0 %v364
  %1160 = vmatprep.subr.mxu0 0.0
  %1161 = vmatpush1.msra.mxu0 %v367
  %1162 = vmatprep.subr.mxu0 0.0
  %1163 = vmatpush1.msra.mxu0 %v370
  %1164 = vmatprep.subr.mxu0 0.0
  %1165 = vmatpush1.msra.mxu0 %v373
  %1166 = vmatprep.subr.mxu0 0.0
  %1167 = vmatpush1.msra.mxu0 %v376
  %1168 = vmatprep.subr.mxu0 0.0
  %1169 = vmatpush1.msra.mxu0 %v379
  %1170 = vmatprep.subr.mxu0 0.0
  %1171 = vmatpush1.msra.mxu0 %v382
  %1172 = vmatprep.subr.mxu0 0.0
  %1173 = vmatpush1.msra.mxu0 %v385
  %1174 = vmatprep.subr.mxu0 0.0
  %1175 = vmatpush1.msra.mxu0 %v388
  %1176 = vmatprep.subr.mxu0 0.0
  %1177 = vmatpush1.msra.mxu0 %v391
  %1178 = vmatprep.subr.mxu0 0.0
  %1179 = vmatpush1.msra.mxu0 %v394
  %1180 = vmatprep.subr.mxu0 0.0
  %1181 = vmatpush1.msra.mxu0 %v397
  %1182 = vmatprep.subr.mxu0 0.0
  %1183 = vmatpush1.msra.mxu0 0.0
  %1184 = vmatprep.subr.mxu0 0.0
  %1185 = vmatpush1.msra.mxu0 0.0
  %1186 = vmatprep.subr.mxu0 0.0
  %1187 = vmatpush1.msra.mxu0 0.0
  %1188 = vmatprep.subr.mxu0 0.0
  %1189 = vmatpush1.msra.mxu0 0.0
  %1190 = vmatprep.subr.mxu0 0.0
  %1191 = vmatpush1.msra.mxu0 0.0
  %1192 = vmatprep.subr.mxu0 0.0
  %1193 = vmatpush1.msra.mxu0 0.0
  %1194 = vmatprep.subr.mxu0 0.0
  %1195 = vmatpush1.msra.mxu0 0.0
  %1196 = vmatprep.subr.mxu0 0.0
  %1197 = vmatpush1.msra.mxu0 0.0
  %1198 = vmatprep.subr.mxu0 0.0
  %1199 = vmatpush1.msra.mxu0 0.0
  %1200 = vmatprep.subr.mxu0 0.0
  %1201 = vmatpush1.msra.mxu0 0.0
  %1202 = vmatprep.subr.mxu0 0.0
  %1203 = vmatpush1.msra.mxu0 0.0
  %1204 = vmatprep.subr.mxu0 0.0
  %1205 = vmatpush1.msra.mxu0 0.0
  %1206 = vmatprep.subr.mxu0 0.0
  %1207 = vmatpush1.msra.mxu0 0.0
  %1208 = vmatprep.subr.mxu0 0.0
  %1209 = vmatpush1.msra.mxu0 0.0
  %1210 = vmatprep.subr.mxu0 0.0
  %1211 = vmatpush1.msra.mxu0 0.0
  %1212 = vmatprep.subr.mxu0 0.0
  %1213 = vmatpush1.msra.mxu0 0.0
  %1214 = vmatprep.mubr.f32.mxu0 0.0
  %1215 = vmatmul.mubr.f32.gmra.mrb[0].mxu0 %v1070
  %v1216 = vpop.f32.mrb[0].mxu0
  %v1217 = vadd.f32 0.0, %v1216
  %v1218 = vpop.f32.mrb[0].mxu0
  %1219 = vdwg.mxu0
  %v1220 = vadd.f32 %v1076, %v1146
  %v1221 = vadd.f32 %v1077, %v1148
  %v1222 = vmul.f32 %v1220, 0.5
  %v1223 = vmul.f32 %v1221, 0.5
  %v1224 = vtanh.pop %v1222
  %v1225 = vtanh.pop %v1223
  %v1226 = vadd.f32 %v1224, 1.0
  %v1227 = vadd.f32 %v1225, 1.0
  %v1228 = vmul.f32 %v1226, 0.5
  %v1229 = vmul.f32 %v1227, 0.5
  %v1230 = vadd.f32 %v1217, %v561
  %v1231 = vmul.f32 %v1228, %v1230
  %v1232 = vadd.f32 %v1078, %v1231
  %v1233 = vtanh.pop %v1232
  %v1234 = vsub.f32 1.0, %v1229
  %v1235 = vsub.f32 %v1233, %v1070
  %v1236 = vmul.f32 %v1234, %v1235
  %v1237 = vadd.f32 %v1070, %v1236
  %s1238 = scalar_lea.vmem [#allocation3], 32
  %1239 = vst [vmem:[%s1238] sm:$0xff] %v1237
  %s1240 = smul.u32 5, 3
  %s1241 = smul.addr %s1240, 8
  %s1242 = scalar_lea.vmem [#allocation2], %s1241
  %v1243 = vld [vmem:[%s1242] sm:$0xff]
  %v1244 = vld [vmem:[%s1242 + $0x8] sm:$0xff]
  %v1245 = vld [vmem:[%s1242 + $0x10] sm:$0xff]
  %1246 = vmatprep.subr.mxu0 %v351
  %1247 = vmatpush1.msra.mxu0 %v350
  %1248 = vmatprep.subr.mxu0 %v354
  %1249 = vmatpush1.msra.mxu0 %v353
  %1250 = vmatprep.subr.mxu0 %v357
  %1251 = vmatpush1.msra.mxu0 %v356
  %1252 = vmatprep.subr.mxu0 %v360
  %1253 = vmatpush1.msra.mxu0 %v359
  %1254 = vmatprep.subr.mxu0 %v363
  %1255 = vmatpush1.msra.mxu0 %v362
  %1256 = vmatprep.subr.mxu0 %v366
  %1257 = vmatpush1.msra.mxu0 %v365
  %1258 = vmatprep.subr.mxu0 %v369
  %1259 = vmatpush1.msra.mxu0 %v368
  %1260 = vmatprep.subr.mxu0 %v372
  %1261 = vmatpush1.msra.mxu0 %v371
  %1262 = vmatprep.subr.mxu0 %v375
  %1263 = vmatpush1.msra.mxu0 %v374
  %1264 = vmatprep.subr.mxu0 %v378
  %1265 = vmatpush1.msra.mxu0 %v377
  %1266 = vmatprep.subr.mxu0 %v381
  %1267 = vmatpush1.msra.mxu0 %v380
  %1268 = vmatprep.subr.mxu0 %v384
  %1269 = vmatpush1.msra.mxu0 %v383
  %1270 = vmatprep.subr.mxu0 %v387
  %1271 = vmatpush1.msra.mxu0 %v386
  %1272 = vmatprep.subr.mxu0 %v390
  %1273 = vmatpush1.msra.mxu0 %v389
  %1274 = vmatprep.subr.mxu0 %v393
  %1275 = vmatpush1.msra.mxu0 %v392
  %1276 = vmatprep.subr.mxu0 %v396
  %1277 = vmatpush1.msra.mxu0 %v395
  %1278 = vmatprep.subr.mxu0 0.0
  %1279 = vmatpush1.msra.mxu0 0.0
  %1280 = vmatprep.subr.mxu0 0.0
  %1281 = vmatpush1.msra.mxu0 0.0
  %1282 = vmatprep.subr.mxu0 0.0
  %1283 = vmatpush1.msra.mxu0 0.0
  %1284 = vmatprep.subr.mxu0 0.0
  %1285 = vmatpush1.msra.mxu0 0.0
  %1286 = vmatprep.subr.mxu0 0.0
  %1287 = vmatpush1.msra.mxu0 0.0
  %1288 = vmatprep.subr.mxu0 0.0
  %1289 = vmatpush1.msra.mxu0 0.0
  %1290 = vmatprep.subr.mxu0 0.0
  %1291 = vmatpush1.msra.mxu0 0.0
  %1292 = vmatprep.subr.mxu0 0.0
  %1293 = vmatpush1.msra.mxu0 0.0
  %1294 = vmatprep.subr.mxu0 0.0
  %1295 = vmatpush1.msra.mxu0 0.0
  %1296 = vmatprep.subr.mxu0 0.0
  %1297 = vmatpush1.msra.mxu0 0.0
  %1298 = vmatprep.subr.mxu0 0.0
  %1299 = vmatpush1.msra.mxu0 0.0
  %1300 = vmatprep.subr.mxu0 0.0
  %1301 = vmatpush1.msra.mxu0 0.0
  %1302 = vmatprep.subr.mxu0 0.0
  %1303 = vmatpush1.msra.mxu0 0.0
  %1304 = vmatprep.subr.mxu0 0.0
  %1305 = vmatpush1.msra.mxu0 0.0
  %1306 = vmatprep.subr.mxu0 0.0
  %1307 = vmatpush1.msra.mxu0 0.0
  %1308 = vmatprep.subr.mxu0 0.0
  %1309 = vmatpush1.msra.mxu0 0.0
  %1310 = vmatprep.mubr.f32.mxu0 0.0
  %1311 = vmatmul.mubr.f32.gmra.mrb[0].mxu0 %v1237
  %v1312 = vpop.f32.mrb[0].mxu0
  %v1313 = vadd.f32 0.0, %v1312
  %v1314 = vpop.f32.mrb[0].mxu0
  %v1315 = vadd.f32 0.0, %v1314
  %1316 = vdwg.mxu0
  %1317 = vmatprep.subr.mxu0 0.0
  %1318 = vmatpush1.msra.mxu0 %v352
  %1319 = vmatprep.subr.mxu0 0.0
  %1320 = vmatpush1.msra.mxu0 %v355
  %1321 = vmatprep.subr.mxu0 0.0
  %1322 = vmatpush1.msra.mxu0 %v358
  %1323 = vmatprep.subr.mxu0 0.0
  %1324 = vmatpush1.msra.mxu0 %v361
  %1325 = vmatprep.subr.mxu0 0.0
  %1326 = vmatpush1.msra.mxu0 %v364
  %1327 = vmatprep.subr.mxu0 0.0
  %1328 = vmatpush1.msra.mxu0 %v367
  %1329 = vmatprep.subr.mxu0 0.0
  %1330 = vmatpush1.msra.mxu0 %v370
  %1331 = vmatprep.subr.mxu0 0.0
  %1332 = vmatpush1.msra.mxu0 %v373
  %1333 = vmatprep.subr.mxu0 0.0
  %1334 = vmatpush1.msra.mxu0 %v376
  %1335 = vmatprep.subr.mxu0 0.0
  %1336 = vmatpush1.msra.mxu0 %v379
  %1337 = vmatprep.subr.mxu0 0.0
  %1338 = vmatpush1.msra.mxu0 %v382
  %1339 = vmatprep.subr.mxu0 0.0
  %1340 = vmatpush1.msra.mxu0 %v385
  %1341 = vmatprep.subr.mxu0 0.0
  %1342 = vmatpush1.msra.mxu0 %v388
  %1343 = vmatprep.subr.mxu0 0.0
  %1344 = vmatpush1.msra.mxu0 %v391
  %1345 = vmatprep.subr.mxu0 0.0
  %1346 = vmatpush1.msra.mxu0 %v394
  %1347 = vmatprep.subr.mxu0 0.0
  %1348 = vmatpush1.msra.mxu0 %v397
  %1349 = vmatprep.subr.mxu0 0.0
  %1350 = vmatpush1.msra.mxu0 0.0
  %1351 = vmatprep.subr.mxu0 0.0
  %1352 = vmatpush1.msra.mxu0 0.0
  %1353 = vmatprep.subr.mxu0 0.0
  %1354 = vmatpush1.msra.mxu0 0.0
  %1355 = vmatprep.subr.mxu0 0.0
  %1356 = vmatpush1.msra.mxu0 0.0
  %1357 = vmatprep.subr.mxu0 0.0
  %1358 = vmatpush1.msra.mxu0 0.0
  %1359 = vmatprep.subr.mxu0 0.0
  %1360 = vmatpush1.msra.mxu0 0.0
  %1361 = vmatprep.subr.mxu0 0.0
  %1362 = vmatpush1.msra.mxu0 0.0
  %1363 = vmatprep.subr.mxu0 0.0
  %1364 = vmatpush1.msra.mxu0 0.0
  %1365 = vmatprep.subr.mxu0 0.0
  %1366 = vmatpush1.msra.mxu0 0.0
  %1367 = vmatprep.subr.mxu0 0.0
  %1368 = vmatpush1.msra.mxu0 0.0
  %1369 = vmatprep.subr.mxu0 0.0
  %1370 = vmatpush1.msra.mxu0 0.0
  %1371 = vmatprep.subr.mxu0 0.0
  %1372 = vmatpush1.msra.mxu0 0.0
  %1373 = vmatprep.subr.mxu0 0.0
  %1374 = vmatpush1.msra.mxu0 0.0
  %1375 = vmatprep.subr.mxu0 0.0
  %1376 = vmatpush1.msra.mxu0 0.0
  %1377 = vmatprep.subr.mxu0 0.0
  %1378 = vmatpush1.msra.mxu0 0.0
  %1379 = vmatprep.subr.mxu0 0.0
  %1380 = vmatpush1.msra.mxu0 0.0
  %1381 = vmatprep.mubr.f32.mxu0 0.0
  %1382 = vmatmul.mubr.f32.gmra.mrb[0].mxu0 %v1237
  %v1383 = vpop.f32.mrb[0].mxu0
  %v1384 = vadd.f32 0.0, %v1383
  %v1385 = vpop.f32.mrb[0].mxu0
  %1386 = vdwg.mxu0
  %v1387 = vadd.f32 %v1243, %v1313
  %v1388 = vadd.f32 %v1244, %v1315
  %v1389 = vmul.f32 %v1387, 0.5
  %v1390 = vmul.f32 %v1388, 0.5
  %v1391 = vtanh.pop %v1389
  %v1392 = vtanh.pop %v1390
  %v1393 = vadd.f32 %v1391, 1.0
  %v1394 = vadd.f32 %v1392, 1.0
  %v1395 = vmul.f32 %v1393, 0.5
  %v1396 = vmul.f32 %v1394, 0.5
  %v1397 = vadd.f32 %v1384, %v561
  %v1398 = vmul.f32 %v1395, %v1397
  %v1399 = vadd.f32 %v1245, %v1398
  %v1400 = vtanh.pop %v1399
  %v1401 = vsub.f32 1.0, %v1396
  %v1402 = vsub.f32 %v1400, %v1237
  %v1403 = vmul.f32 %v1401, %v1402
  %v1404 = vadd.f32 %v1237, %v1403
  %s1405 = scalar_lea.vmem [#allocation3], 40
  %1406 = vst [vmem:[%s1405] sm:$0xff] %v1404
  %s1407 = smul.u32 6, 3
  %s1408 = smul.addr %s1407, 8
  %s1409 = scalar_lea.vmem [#allocation2], %s1408
  %v1410 = vld [vmem:[%s1409] sm:$0xff]
  %v1411 = vld [vmem:[%s1409 + $0x8] sm:$0xff]
  %v1412 = vld [vmem:[%s1409 + $0x10] sm:$0xff]
  %1413 = vmatprep.subr.mxu0 %v351
  %1414 = vmatpush1.msra.mxu0 %v350
  %1415 = vmatprep.subr.mxu0 %v354
  %1416 = vmatpush1.msra.mxu0 %v353
  %1417 = vmatprep.subr.mxu0 %v357
  %1418 = vmatpush1.msra.mxu0 %v356
  %1419 = vmatprep.subr.mxu0 %v360
  %1420 = vmatpush1.msra.mxu0 %v359
  %1421 = vmatprep.subr.mxu0 %v363
  %1422 = vmatpush1.msra.mxu0 %v362
  %1423 = vmatprep.subr.mxu0 %v366
  %1424 = vmatpush1.msra.mxu0 %v365
  %1425 = vmatprep.subr.mxu0 %v369
  %1426 = vmatpush1.msra.mxu0 %v368
  %1427 = vmatprep.subr.mxu0 %v372
  %1428 = vmatpush1.msra.mxu0 %v371
  %1429 = vmatprep.subr.mxu0 %v375
  %1430 = vmatpush1.msra.mxu0 %v374
  %1431 = vmatprep.subr.mxu0 %v378
  %1432 = vmatpush1.msra.mxu0 %v377
  %1433 = vmatprep.subr.mxu0 %v381
  %1434 = vmatpush1.msra.mxu0 %v380
  %1435 = vmatprep.subr.mxu0 %v384
  %1436 = vmatpush1.msra.mxu0 %v383
  %1437 = vmatprep.subr.mxu0 %v387
  %1438 = vmatpush1.msra.mxu0 %v386
  %1439 = vmatprep.subr.mxu0 %v390
  %1440 = vmatpush1.msra.mxu0 %v389
  %1441 = vmatprep.subr.mxu0 %v393
  %1442 = vmatpush1.msra.mxu0 %v392
  %1443 = vmatprep.subr.mxu0 %v396
  %1444 = vmatpush1.msra.mxu0 %v395
  %1445 = vmatprep.subr.mxu0 0.0
  %1446 = vmatpush1.msra.mxu0 0.0
  %1447 = vmatprep.subr.mxu0 0.0
  %1448 = vmatpush1.msra.mxu0 0.0
  %1449 = vmatprep.subr.mxu0 0.0
  %1450 = vmatpush1.msra.mxu0 0.0
  %1451 = vmatprep.subr.mxu0 0.0
  %1452 = vmatpush1.msra.mxu0 0.0
  %1453 = vmatprep.subr.mxu0 0.0
  %1454 = vmatpush1.msra.mxu0 0.0
  %1455 = vmatprep.subr.mxu0 0.0
  %1456 = vmatpush1.msra.mxu0 0.0
  %1457 = vmatprep.subr.mxu0 0.0
  %1458 = vmatpush1.msra.mxu0 0.0
  %1459 = vmatprep.subr.mxu0 0.0
  %1460 = vmatpush1.msra.mxu0 0.0
  %1461 = vmatprep.subr.mxu0 0.0
  %1462 = vmatpush1.msra.mxu0 0.0
  %1463 = vmatprep.subr.mxu0 0.0
  %1464 = vmatpush1.msra.mxu0 0.0
  %1465 = vmatprep.subr.mxu0 0.0
  %1466 = vmatpush1.msra.mxu0 0.0
  %1467 = vmatprep.subr.mxu0 0.0
  %1468 = vmatpush1.msra.mxu0 0.0
  %1469 = vmatprep.subr.mxu0 0.0
  %1470 = vmatpush1.msra.mxu0 0.0
  %1471 = vmatprep.subr.mxu0 0.0
  %1472 = vmatpush1.msra.mxu0 0.0
  %1473 = vmatprep.subr.mxu0 0.0
  %1474 = vmatpush1.msra.mxu0 0.0
  %1475 = vmatprep.subr.mxu0 0.0
  %1476 = vmatpush1.msra.mxu0 0.0
  %1477 = vmatprep.mubr.f32.mxu0 0.0
  %1478 = vmatmul.mubr.f32.gmra.mrb[0].mxu0 %v1404
  %v1479 = vpop.f32.mrb[0].mxu0
  %v1480 = vadd.f32 0.0, %v1479
  %v1481 = vpop.f32.mrb[0].mxu0
  %v1482 = vadd.f32 0.0, %v1481
  %1483 = vdwg.mxu0
  %1484 = vmatprep.subr.mxu0 0.0
  %1485 = vmatpush1.msra.mxu0 %v352
  %1486 = vmatprep.subr.mxu0 0.0
  %1487 = vmatpush1.msra.mxu0 %v355
  %1488 = vmatprep.subr.mxu0 0.0
  %1489 = vmatpush1.msra.mxu0 %v358
  %1490 = vmatprep.subr.mxu0 0.0
  %1491 = vmatpush1.msra.mxu0 %v361
  %1492 = vmatprep.subr.mxu0 0.0
  %1493 = vmatpush1.msra.mxu0 %v364
  %1494 = vmatprep.subr.mxu0 0.0
  %1495 = vmatpush1.msra.mxu0 %v367
  %1496 = vmatprep.subr.mxu0 0.0
  %1497 = vmatpush1.msra.mxu0 %v370
  %1498 = vmatprep.subr.mxu0 0.0
  %1499 = vmatpush1.msra.mxu0 %v373
  %1500 = vmatprep.subr.mxu0 0.0
  %1501 = vmatpush1.msra.mxu0 %v376
  %1502 = vmatprep.subr.mxu0 0.0
  %1503 = vmatpush1.msra.mxu0 %v379
  %1504 = vmatprep.subr.mxu0 0.0
  %1505 = vmatpush1.msra.mxu0 %v382
  %1506 = vmatprep.subr.mxu0 0.0
  %1507 = vmatpush1.msra.mxu0 %v385
  %1508 = vmatprep.subr.mxu0 0.0
  %1509 = vmatpush1.msra.mxu0 %v388
  %1510 = vmatprep.subr.mxu0 0.0
  %1511 = vmatpush1.msra.mxu0 %v391
  %1512 = vmatprep.subr.mxu0 0.0
  %1513 = vmatpush1.msra.mxu0 %v394
  %1514 = vmatprep.subr.mxu0 0.0
  %1515 = vmatpush1.msra.mxu0 %v397
  %1516 = vmatprep.subr.mxu0 0.0
  %1517 = vmatpush1.msra.mxu0 0.0
  %1518 = vmatprep.subr.mxu0 0.0
  %1519 = vmatpush1.msra.mxu0 0.0
  %1520 = vmatprep.subr.mxu0 0.0
  %1521 = vmatpush1.msra.mxu0 0.0
  %1522 = vmatprep.subr.mxu0 0.0
  %1523 = vmatpush1.msra.mxu0 0.0
  %1524 = vmatprep.subr.mxu0 0.0
  %1525 = vmatpush1.msra.mxu0 0.0
  %1526 = vmatprep.subr.mxu0 0.0
  %1527 = vmatpush1.msra.mxu0 0.0
  %1528 = vmatprep.subr.mxu0 0.0
  %1529 = vmatpush1.msra.mxu0 0.0
  %1530 = vmatprep.subr.mxu0 0.0
  %1531 = vmatpush1.msra.mxu0 0.0
  %1532 = vmatprep.subr.mxu0 0.0
  %1533 = vmatpush1.msra.mxu0 0.0
  %1534 = vmatprep.subr.mxu0 0.0
  %1535 = vmatpush1.msra.mxu0 0.0
  %1536 = vmatprep.subr.mxu0 0.0
  %1537 = vmatpush1.msra.mxu0 0.0
  %1538 = vmatprep.subr.mxu0 0.0
  %1539 = vmatpush1.msra.mxu0 0.0
  %1540 = vmatprep.subr.mxu0 0.0
  %1541 = vmatpush1.msra.mxu0 0.0
  %1542 = vmatprep.subr.mxu0 0.0
  %1543 = vmatpush1.msra.mxu0 0.0
  %1544 = vmatprep.subr.mxu0 0.0
  %1545 = vmatpush1.msra.mxu0 0.0
  %1546 = vmatprep.subr.mxu0 0.0
  %1547 = vmatpush1.msra.mxu0 0.0
  %1548 = vmatprep.mubr.f32.mxu0 0.0
  %1549 = vmatmul.mubr.f32.gmra.mrb[0].mxu0 %v1404
  %v1550 = vpop.f32.mrb[0].mxu0
  %v1551 = vadd.f32 0.0, %v1550
  %v1552 = vpop.f32.mrb[0].mxu0
  %1553 = vdwg.mxu0
  %v1554 = vadd.f32 %v1410, %v1480
  %v1555 = vadd.f32 %v1411, %v1482
  %v1556 = vmul.f32 %v1554, 0.5
  %v1557 = vmul.f32 %v1555, 0.5
  %v1558 = vtanh.pop %v1556
  %v1559 = vtanh.pop %v1557
  %v1560 = vadd.f32 %v1558, 1.0
  %v1561 = vadd.f32 %v1559, 1.0
  %v1562 = vmul.f32 %v1560, 0.5
  %v1563 = vmul.f32 %v1561, 0.5
  %v1564 = vadd.f32 %v1551, %v561
  %v1565 = vmul.f32 %v1562, %v1564
  %v1566 = vadd.f32 %v1412, %v1565
  %v1567 = vtanh.pop %v1566
  %v1568 = vsub.f32 1.0, %v1563
  %v1569 = vsub.f32 %v1567, %v1404
  %v1570 = vmul.f32 %v1568, %v1569
  %v1571 = vadd.f32 %v1404, %v1570
  %s1572 = scalar_lea.vmem [#allocation3], 48
  %1573 = vst [vmem:[%s1572] sm:$0xff] %v1571
  %s1574 = smul.u32 7, 3
  %s1575 = smul.addr %s1574, 8
  %s1576 = scalar_lea.vmem [#allocation2], %s1575
  %v1577 = vld [vmem:[%s1576] sm:$0xff]
  %v1578 = vld [vmem:[%s1576 + $0x8] sm:$0xff]
  %v1579 = vld [vmem:[%s1576 + $0x10] sm:$0xff]
  %1580 = vmatprep.subr.mxu0 %v351
  %1581 = vmatpush1.msra.mxu0 %v350
  %1582 = vmatprep.subr.mxu0 %v354
  %1583 = vmatpush1.msra.mxu0 %v353
  %1584 = vmatprep.subr.mxu0 %v357
  %1585 = vmatpush1.msra.mxu0 %v356
  %1586 = vmatprep.subr.mxu0 %v360
  %1587 = vmatpush1.msra.mxu0 %v359
  %1588 = vmatprep.subr.mxu0 %v363
  %1589 = vmatpush1.msra.mxu0 %v362
  %1590 = vmatprep.subr.mxu0 %v366
  %1591 = vmatpush1.msra.mxu0 %v365
  %1592 = vmatprep.subr.mxu0 %v369
  %1593 = vmatpush1.msra.mxu0 %v368
  %1594 = vmatprep.subr.mxu0 %v372
  %1595 = vmatpush1.msra.mxu0 %v371
  %1596 = vmatprep.subr.mxu0 %v375
  %1597 = vmatpush1.msra.mxu0 %v374
  %1598 = vmatprep.subr.mxu0 %v378
  %1599 = vmatpush1.msra.mxu0 %v377
  %1600 = vmatprep.subr.mxu0 %v381
  %1601 = vmatpush1.msra.mxu0 %v380
  %1602 = vmatprep.subr.mxu0 %v384
  %1603 = vmatpush1.msra.mxu0 %v383
  %1604 = vmatprep.subr.mxu0 %v387
  %1605 = vmatpush1.msra.mxu0 %v386
  %1606 = vmatprep.subr.mxu0 %v390
  %1607 = vmatpush1.msra.mxu0 %v389
  %1608 = vmatprep.subr.mxu0 %v393
  %1609 = vmatpush1.msra.mxu0 %v392
  %1610 = vmatprep.subr.mxu0 %v396
  %1611 = vmatpush1.msra.mxu0 %v395
  %1612 = vmatprep.subr.mxu0 0.0
  %1613 = vmatpush1.msra.mxu0 0.0
  %1614 = vmatprep.subr.mxu0 0.0
  %1615 = vmatpush1.msra.mxu0 0.0
  %1616 = vmatprep.subr.mxu0 0.0
  %1617 = vmatpush1.msra.mxu0 0.0
  %1618 = vmatprep.subr.mxu0 0.0
  %1619 = vmatpush1.msra.mxu0 0.0
  %1620 = vmatprep.subr.mxu0 0.0
  %1621 = vmatpush1.msra.mxu0 0.0
  %1622 = vmatprep.subr.mxu0 0.0
  %1623 = vmatpush1.msra.mxu0 0.0
  %1624 = vmatprep.subr.mxu0 0.0
  %1625 = vmatpush1.msra.mxu0 0.0
  %1626 = vmatprep.subr.mxu0 0.0
  %1627 = vmatpush1.msra.mxu0 0.0
  %1628 = vmatprep.subr.mxu0 0.0
  %1629 = vmatpush1.msra.mxu0 0.0
  %1630 = vmatprep.subr.mxu0 0.0
  %1631 = vmatpush1.msra.mxu0 0.0
  %1632 = vmatprep.subr.mxu0 0.0
  %1633 = vmatpush1.msra.mxu0 0.0
  %1634 = vmatprep.subr.mxu0 0.0
  %1635 = vmatpush1.msra.mxu0 0.0
  %1636 = vmatprep.subr.mxu0 0.0
  %1637 = vmatpush1.msra.mxu0 0.0
  %1638 = vmatprep.subr.mxu0 0.0
  %1639 = vmatpush1.msra.mxu0 0.0
  %1640 = vmatprep.subr.mxu0 0.0
  %1641 = vmatpush1.msra.mxu0 0.0
  %1642 = vmatprep.subr.mxu0 0.0
  %1643 = vmatpush1.msra.mxu0 0.0
  %1644 = vmatprep.mubr.f32.mxu0 0.0
  %1645 = vmatmul.mubr.f32.gmra.mrb[0].mxu0 %v1571
  %v1646 = vpop.f32.mrb[0].mxu0
  %v1647 = vadd.f32 0.0, %v1646
  %v1648 = vpop.f32.mrb[0].mxu0
  %v1649 = vadd.f32 0.0, %v1648
  %1650 = vdwg.mxu0
  %1651 = vmatprep.subr.mxu0 0.0
  %1652 = vmatpush1.msra.mxu0 %v352
  %1653 = vmatprep.subr.mxu0 0.0
  %1654 = vmatpush1.msra.mxu0 %v355
  %1655 = vmatprep.subr.mxu0 0.0
  %1656 = vmatpush1.msra.mxu0 %v358
  %1657 = vmatprep.subr.mxu0 0.0
  %1658 = vmatpush1.msra.mxu0 %v361
  %1659 = vmatprep.subr.mxu0 0.0
  %1660 = vmatpush1.msra.mxu0 %v364
  %1661 = vmatprep.subr.mxu0 0.0
  %1662 = vmatpush1.msra.mxu0 %v367
  %1663 = vmatprep.subr.mxu0 0.0
  %1664 = vmatpush1.msra.mxu0 %v370
  %1665 = vmatprep.subr.mxu0 0.0
  %1666 = vmatpush1.msra.mxu0 %v373
  %1667 = vmatprep.subr.mxu0 0.0
  %1668 = vmatpush1.msra.mxu0 %v376
  %1669 = vmatprep.subr.mxu0 0.0
  %1670 = vmatpush1.msra.mxu0 %v379
  %1671 = vmatprep.subr.mxu0 0.0
  %1672 = vmatpush1.msra.mxu0 %v382
  %1673 = vmatprep.subr.mxu0 0.0
  %1674 = vmatpush1.msra.mxu0 %v385
  %1675 = vmatprep.subr.mxu0 0.0
  %1676 = vmatpush1.msra.mxu0 %v388
  %1677 = vmatprep.subr.mxu0 0.0
  %1678 = vmatpush1.msra.mxu0 %v391
  %1679 = vmatprep.subr.mxu0 0.0
  %1680 = vmatpush1.msra.mxu0 %v394
  %1681 = vmatprep.subr.mxu0 0.0
  %1682 = vmatpush1.msra.mxu0 %v397
  %1683 = vmatprep.subr.mxu0 0.0
  %1684 = vmatpush1.msra.mxu0 0.0
  %1685 = vmatprep.subr.mxu0 0.0
  %1686 = vmatpush1.msra.mxu0 0.0
  %1687 = vmatprep.subr.mxu0 0.0
  %1688 = vmatpush1.msra.mxu0 0.0
  %1689 = vmatprep.subr.mxu0 0.0
  %1690 = vmatpush1.msra.mxu0 0.0
  %1691 = vmatprep.subr.mxu0 0.0
  %1692 = vmatpush1.msra.mxu0 0.0
  %1693 = vmatprep.subr.mxu0 0.0
  %1694 = vmatpush1.msra.mxu0 0.0
  %1695 = vmatprep.subr.mxu0 0.0
  %1696 = vmatpush1.msra.mxu0 0.0
  %1697 = vmatprep.subr.mxu0 0.0
  %1698 = vmatpush1.msra.mxu0 0.0
  %1699 = vmatprep.subr.mxu0 0.0
  %1700 = vmatpush1.msra.mxu0 0.0
  %1701 = vmatprep.subr.mxu0 0.0
  %1702 = vmatpush1.msra.mxu0 0.0
  %1703 = vmatprep.subr.mxu0 0.0
  %1704 = vmatpush1.msra.mxu0 0.0
  %1705 = vmatprep.subr.mxu0 0.0
  %1706 = vmatpush1.msra.mxu0 0.0
  %1707 = vmatprep.subr.mxu0 0.0
  %1708 = vmatpush1.msra.mxu0 0.0
  %1709 = vmatprep.subr.mxu0 0.0
  %1710 = vmatpush1.msra.mxu0 0.0
  %1711 = vmatprep.subr.mxu0 0.0
  %1712 = vmatpush1.msra.mxu0 0.0
  %1713 = vmatprep.subr.mxu0 0.0
  %1714 = vmatpush1.msra.mxu0 0.0
  %1715 = vmatprep.mubr.f32.mxu0 0.0
  %1716 = vmatmul.mubr.f32.gmra.mrb[0].mxu0 %v1571
  %v1717 = vpop.f32.mrb[0].mxu0
  %v1718 = vadd.f32 0.0, %v1717
  %v1719 = vpop.f32.mrb[0].mxu0
  %1720 = vdwg.mxu0
  %v1721 = vadd.f32 %v1577, %v1647
  %v1722 = vadd.f32 %v1578, %v1649
  %v1723 = vmul.f32 %v1721, 0.5
  %v1724 = vmul.f32 %v1722, 0.5
  %v1725 = vtanh.pop %v1723
  %v1726 = vtanh.pop %v1724
  %v1727 = vadd.f32 %v1725, 1.0
  %v1728 = vadd.f32 %v1726, 1.0
  %v1729 = vmul.f32 %v1727, 0.5
  %v1730 = vmul.f32 %v1728, 0.5
  %v1731 = vadd.f32 %v1718, %v561
  %v1732 = vmul.f32 %v1729, %v1731
  %v1733 = vadd.f32 %v1579, %v1732
  %v1734 = vtanh.pop %v1733
  %v1735 = vsub.f32 1.0, %v1730
  %v1736 = vsub.f32 %v1734, %v1571
  %v1737 = vmul.f32 %v1735, %v1736
  %v1738 = vadd.f32 %v1571, %v1737
  %s1739 = scalar_lea.vmem [#allocation3], 56
  %1740 = vst [vmem:[%s1739] sm:$0xff] %v1738
  %1741 = vst [vmem:[%s17] sm:$0xff] %v1738
  %v1742 = vld [vmem:[#allocation3] sm:$0xff]
  %v1743 = vld [vmem:[#allocation3 + $0x8] sm:$0xff]
  %v1744 = vld [vmem:[#allocation3 + $0x10] sm:$0xff]
  %v1745 = vld [vmem:[#allocation3 + $0x18] sm:$0xff]
  %v1746 = vld [vmem:[#allocation3 + $0x20] sm:$0xff]
  %v1747 = vld [vmem:[#allocation3 + $0x28] sm:$0xff]
  %v1748 = vld [vmem:[#allocation3 + $0x30] sm:$0xff]
  %v1749 = vld [vmem:[#allocation3 + $0x38] sm:$0xff]
  %v1750 = vld [vmem:[%s6] sm:$0xff]
  %v1751 = vld [vmem:[%s6 + $0x8] sm:$0xff]
  %v1752 = vld [vmem:[%s6 + $0x10] sm:$0xff]
  %v1753 = vld [vmem:[%s6 + $0x18] sm:$0xff]
  %v1754 = vld [vmem:[%s6 + $0x20] sm:$0xff]
  %v1755 = vld [vmem:[%s6 + $0x28] sm:$0xff]
  %v1756 = vld [vmem:[%s6 + $0x30] sm:$0xff]
  %v1757 = vld [vmem:[%s6 + $0x38] sm:$0xff]
  %v1758 = vld [vmem:[%s6 + $0x40] sm:$0xff]
  %v1759 = vld [vmem:[%s6 + $0x48] sm:$0xff]
  %v1760 = vld [vmem:[%s6 + $0x50] sm:$0xff]
  %v1761 = vld [vmem:[%s6 + $0x58] sm:$0xff]
  %v1762 = vld [vmem:[%s6 + $0x60] sm:$0xff]
  %v1763 = vld [vmem:[%s6 + $0x68] sm:$0xff]
  %v1764 = vld [vmem:[%s6 + $0x70] sm:$0xff]
  %v1765 = vld [vmem:[%s6 + $0x78] sm:$0xff]
  %v1766 = vld [vmem:[%s7] sm:$0x1]
  %v1768 = vlaneseq
  %v1769 = vshrl.u32 %v1768, 7
  %v1770 = vsub.s32 0, %v1769
  %v1771 = vrot.slane %v1766, %v1770
  %1773 = vmatprep.subr.mxu0 0.0
  %1774 = vmatpush1.msra.mxu0 %v1750
  %1775 = vmatprep.subr.mxu0 0.0
  %1776 = vmatpush1.msra.mxu0 %v1751
  %1777 = vmatprep.subr.mxu0 0.0
  %1778 = vmatpush1.msra.mxu0 %v1752
  %1779 = vmatprep.subr.mxu0 0.0
  %1780 = vmatpush1.msra.mxu0 %v1753
  %1781 = vmatprep.subr.mxu0 0.0
  %1782 = vmatpush1.msra.mxu0 %v1754
  %1783 = vmatprep.subr.mxu0 0.0
  %1784 = vmatpush1.msra.mxu0 %v1755
  %1785 = vmatprep.subr.mxu0 0.0
  %1786 = vmatpush1.msra.mxu0 %v1756
  %1787 = vmatprep.subr.mxu0 0.0
  %1788 = vmatpush1.msra.mxu0 %v1757
  %1789 = vmatprep.subr.mxu0 0.0
  %1790 = vmatpush1.msra.mxu0 %v1758
  %1791 = vmatprep.subr.mxu0 0.0
  %1792 = vmatpush1.msra.mxu0 %v1759
  %1793 = vmatprep.subr.mxu0 0.0
  %1794 = vmatpush1.msra.mxu0 %v1760
  %1795 = vmatprep.subr.mxu0 0.0
  %1796 = vmatpush1.msra.mxu0 %v1761
  %1797 = vmatprep.subr.mxu0 0.0
  %1798 = vmatpush1.msra.mxu0 %v1762
  %1799 = vmatprep.subr.mxu0 0.0
  %1800 = vmatpush1.msra.mxu0 %v1763
  %1801 = vmatprep.subr.mxu0 0.0
  %1802 = vmatpush1.msra.mxu0 %v1764
  %1803 = vmatprep.subr.mxu0 0.0
  %1804 = vmatpush1.msra.mxu0 %v1765
  %1805 = vmatprep.subr.mxu0 0.0
  %1806 = vmatpush1.msra.mxu0 0.0
  %1807 = vmatprep.subr.mxu0 0.0
  %1808 = vmatpush1.msra.mxu0 0.0
  %1809 = vmatprep.subr.mxu0 0.0
  %1810 = vmatpush1.msra.mxu0 0.0
  %1811 = vmatprep.subr.mxu0 0.0
  %1812 = vmatpush1.msra.mxu0 0.0
  %1813 = vmatprep.subr.mxu0 0.0
  %1814 = vmatpush1.msra.mxu0 0.0
  %1815 = vmatprep.subr.mxu0 0.0
  %1816 = vmatpush1.msra.mxu0 0.0
  %1817 = vmatprep.subr.mxu0 0.0
  %1818 = vmatpush1.msra.mxu0 0.0
  %1819 = vmatprep.subr.mxu0 0.0
  %1820 = vmatpush1.msra.mxu0 0.0
  %1821 = vmatprep.subr.mxu0 0.0
  %1822 = vmatpush1.msra.mxu0 0.0
  %1823 = vmatprep.subr.mxu0 0.0
  %1824 = vmatpush1.msra.mxu0 0.0
  %1825 = vmatprep.subr.mxu0 0.0
  %1826 = vmatpush1.msra.mxu0 0.0
  %1827 = vmatprep.subr.mxu0 0.0
  %1828 = vmatpush1.msra.mxu0 0.0
  %1829 = vmatprep.subr.mxu0 0.0
  %1830 = vmatpush1.msra.mxu0 0.0
  %1831 = vmatprep.subr.mxu0 0.0
  %1832 = vmatpush1.msra.mxu0 0.0
  %1833 = vmatprep.subr.mxu0 0.0
  %1834 = vmatpush1.msra.mxu0 0.0
  %1835 = vmatprep.subr.mxu0 0.0
  %1836 = vmatpush1.msra.mxu0 0.0
  %1837 = vmatprep.mubr.f32.mxu0 0.0
  %1838 = vmatmul.mubr.f32.gmra.mrb[0].mxu0 %v1742
  %v1839 = vpop.f32.mrb[0].mxu0
  %v1840 = vadd.f32 %v1771, %v1839
  %v1841 = vpop.f32.mrb[0].mxu0
  %1842 = vmatprep.mubr.f32.mxu0 0.0
  %1843 = vmatmul.mubr.f32.gmra.mrb[0].mxu0 %v1743
  %v1844 = vpop.f32.mrb[0].mxu0
  %v1845 = vadd.f32 %v1771, %v1844
  %v1846 = vpop.f32.mrb[0].mxu0
  %1847 = vmatprep.mubr.f32.mxu0 0.0
  %1848 = vmatmul.mubr.f32.gmra.mrb[0].mxu0 %v1744
  %v1849 = vpop.f32.mrb[0].mxu0
  %v1850 = vadd.f32 %v1771, %v1849
  %v1851 = vpop.f32.mrb[0].mxu0
  %1852 = vmatprep.mubr.f32.mxu0 0.0
  %1853 = vmatmul.mubr.f32.gmra.mrb[0].mxu0 %v1745
  %v1854 = vpop.f32.mrb[0].mxu0
  %v1855 = vadd.f32 %v1771, %v1854
  %v1856 = vpop.f32.mrb[0].mxu0
  %1857 = vmatprep.mubr.f32.mxu0 0.0
  %1858 = vmatmul.mubr.f32.gmra.mrb[0].mxu0 %v1746
  %v1859 = vpop.f32.mrb[0].mxu0
  %v1860 = vadd.f32 %v1771, %v1859
  %v1861 = vpop.f32.mrb[0].mxu0
  %1862 = vmatprep.mubr.f32.mxu0 0.0
  %1863 = vmatmul.mubr.f32.gmra.mrb[0].mxu0 %v1747
  %v1864 = vpop.f32.mrb[0].mxu0
  %v1865 = vadd.f32 %v1771, %v1864
  %v1866 = vpop.f32.mrb[0].mxu0
  %1867 = vmatprep.mubr.f32.mxu0 0.0
  %1868 = vmatmul.mubr.f32.gmra.mrb[0].mxu0 %v1748
  %v1869 = vpop.f32.mrb[0].mxu0
  %v1870 = vadd.f32 %v1771, %v1869
  %v1871 = vpop.f32.mrb[0].mxu0
  %1872 = vmatprep.mubr.f32.mxu0 0.0
  %1873 = vmatmul.mubr.f32.gmra.mrb[0].mxu0 %v1749
  %v1874 = vpop.f32.mrb[0].mxu0
  %v1875 = vadd.f32 %v1771, %v1874
  %v1876 = vpop.f32.mrb[0].mxu0
  %1877 = vdwg.mxu0
  %v1878 = vld [vmem:[%s8] sm:$0x1]
  %v1879 = vld [vmem:[%s9] sm:$0x1]
  %vm1880 = vcmask 261120
  %v1881 = vsel %vm1880, %v1840, 0.0
  %1882 = vadd.xlane.f32.xlu0 %v1881
  %v1883 = vpop.xlane.xlu0 %1882
  %v1884 = vsel %vm1880, %v1845, 0.0
  %1885 = vadd.xlane.f32.xlu0 %v1884
  %v1886 = vpop.xlane.xlu0 %1885
  %v1887 = vsel %vm1880, %v1850, 0.0
  %1888 = vadd.xlane.f32.xlu0 %v1887
  %v1889 = vpop.xlane.xlu0 %1888
  %v1890 = vsel %vm1880, %v1855, 0.0
  %1891 = vadd.xlane.f32.xlu0 %v1890
  %v1892 = vpop.xlane.xlu0 %1891
  %v1893 = vsel %vm1880, %v1860, 0.0
  %1894 = vadd.xlane.f32.xlu0 %v1893
  %v1895 = vpop.xlane.xlu0 %1894
  %v1896 = vsel %vm1880, %v1865, 0.0
  %1897 = vadd.xlane.f32.xlu0 %v1896
  %v1898 = vpop.xlane.xlu0 %1897
  %v1899 = vsel %vm1880, %v1870, 0.0
  %1900 = vadd.xlane.f32.xlu0 %v1899
  %v1901 = vpop.xlane.xlu0 %1900
  %v1902 = vsel %vm1880, %v1875, 0.0
  %1903 = vadd.xlane.f32.xlu0 %v1902
  %v1904 = vpop.xlane.xlu0 %1903
  %v1905 = vmul.f32 %v1883, 0.03125
  %v1906 = vmul.f32 %v1886, 0.03125
  %v1907 = vmul.f32 %v1889, 0.03125
  %v1908 = vmul.f32 %v1892, 0.03125
  %v1909 = vmul.f32 %v1895, 0.03125
  %v1910 = vmul.f32 %v1898, 0.03125
  %v1911 = vmul.f32 %v1901, 0.03125
  %v1912 = vmul.f32 %v1904, 0.03125
  %v1913 = vsub.f32 %v1840, %v1905
  %v1914 = vsub.f32 %v1845, %v1906
  %v1915 = vsub.f32 %v1850, %v1907
  %v1916 = vsub.f32 %v1855, %v1908
  %v1917 = vsub.f32 %v1860, %v1909
  %v1918 = vsub.f32 %v1865, %v1910
  %v1919 = vsub.f32 %v1870, %v1911
  %v1920 = vsub.f32 %v1875, %v1912
  %v1921 = vmul.f32 %v1913, %v1913
  %v1922 = vmul.f32 %v1914, %v1914
  %v1923 = vmul.f32 %v1915, %v1915
  %v1924 = vmul.f32 %v1916, %v1916
  %v1925 = vmul.f32 %v1917, %v1917
  %v1926 = vmul.f32 %v1918, %v1918
  %v1927 = vmul.f32 %v1919, %v1919
  %v1928 = vmul.f32 %v1920, %v1920
  %v1929 = vsel %vm1880, %v1921, 0.0
  %1930 = vadd.xlane.f32.xlu0 %v1929
  %v1931 = vpop.xlane.xlu0 %1930
  %v1932 = vsel %vm1880, %v1922, 0.0
  %1933 = vadd.xlane.f32.xlu0 %v1932
  %v1934 = vpop.xlane.xlu0 %1933
  %v1935 = vsel %vm1880, %v1923, 0.0
  %1936 = vadd.xlane.f32.xlu0 %v1935
  %v1937 = vpop.xlane.xlu0 %1936
  %v1938 = vsel %vm1880, %v1924, 0.0
  %1939 = vadd.xlane.f32.xlu0 %v1938
  %v1940 = vpop.xlane.xlu0 %1939
  %v1941 = vsel %vm1880, %v1925, 0.0
  %1942 = vadd.xlane.f32.xlu0 %v1941
  %v1943 = vpop.xlane.xlu0 %1942
  %v1944 = vsel %vm1880, %v1926, 0.0
  %1945 = vadd.xlane.f32.xlu0 %v1944
  %v1946 = vpop.xlane.xlu0 %1945
  %v1947 = vsel %vm1880, %v1927, 0.0
  %1948 = vadd.xlane.f32.xlu0 %v1947
  %v1949 = vpop.xlane.xlu0 %1948
  %v1950 = vsel %vm1880, %v1928, 0.0
  %1951 = vadd.xlane.f32.xlu0 %v1950
  %v1952 = vpop.xlane.xlu0 %1951
  %v1953 = vmul.f32 %v1931, 0.03125
  %v1954 = vmul.f32 %v1934, 0.03125
  %v1955 = vmul.f32 %v1937, 0.03125
  %v1956 = vmul.f32 %v1940, 0.03125
  %v1957 = vmul.f32 %v1943, 0.03125
  %v1958 = vmul.f32 %v1946, 0.03125
  %v1959 = vmul.f32 %v1949, 0.03125
  %v1960 = vmul.f32 %v1952, 0.03125
  %v1961 = vadd.f32 %v1953, 1e-05
  %v1962 = vadd.f32 %v1954, 1e-05
  %v1963 = vadd.f32 %v1955, 1e-05
  %v1964 = vadd.f32 %v1956, 1e-05
  %v1965 = vadd.f32 %v1957, 1e-05
  %v1966 = vadd.f32 %v1958, 1e-05
  %v1967 = vadd.f32 %v1959, 1e-05
  %v1968 = vadd.f32 %v1960, 1e-05
  %v1969 = vrsqrt.pop %v1961
  %v1970 = vrsqrt.pop %v1962
  %v1971 = vrsqrt.pop %v1963
  %v1972 = vrsqrt.pop %v1964
  %v1973 = vrsqrt.pop %v1965
  %v1974 = vrsqrt.pop %v1966
  %v1975 = vrsqrt.pop %v1967
  %v1976 = vrsqrt.pop %v1968
  %v1978 = vlaneseq
  %v1979 = vshrl.u32 %v1978, 7
  %v1980 = vsub.s32 0, %v1979
  %v1981 = vrot.slane %v1878, %v1980
  %v1983 = vmul.f32 %v1981, %v1969
  %v1984 = vmul.f32 %v1981, %v1970
  %v1985 = vmul.f32 %v1981, %v1971
  %v1986 = vmul.f32 %v1981, %v1972
  %v1987 = vmul.f32 %v1981, %v1973
  %v1988 = vmul.f32 %v1981, %v1974
  %v1989 = vmul.f32 %v1981, %v1975
  %v1990 = vmul.f32 %v1981, %v1976
  %v1991 = vmul.f32 %v1913, %v1983
  %v1992 = vmul.f32 %v1914, %v1984
  %v1993 = vmul.f32 %v1915, %v1985
  %v1994 = vmul.f32 %v1916, %v1986
  %v1995 = vmul.f32 %v1917, %v1987
  %v1996 = vmul.f32 %v1918, %v1988
  %v1997 = vmul.f32 %v1919, %v1989
  %v1998 = vmul.f32 %v1920, %v1990
  %v2000 = vlaneseq
  %v2001 = vshrl.u32 %v2000, 7
  %v2002 = vsub.s32 0, %v2001
  %v2003 = vrot.slane %v1879, %v2002
  %v2005 = vadd.f32 %v1991, %v2003
  %v2006 = vadd.f32 %v1992, %v2003
  %v2007 = vadd.f32 %v1993, %v2003
  %v2008 = vadd.f32 %v1994, %v2003
  %v2009 = vadd.f32 %v1995, %v2003
  %v2010 = vadd.f32 %v1996, %v2003
  %v2011 = vadd.f32 %v1997, %v2003
  %v2012 = vadd.f32 %v1998, %v2003
  %vm2013 = vcmp.gt.f32.partialorder %v2005, 0.0
  %vm2014 = vcmp.gt.f32.partialorder %v2006, 0.0
  %vm2015 = vcmp.gt.f32.partialorder %v2007, 0.0
  %vm2016 = vcmp.gt.f32.partialorder %v2008, 0.0
  %vm2017 = vcmp.gt.f32.partialorder %v2009, 0.0
  %vm2018 = vcmp.gt.f32.partialorder %v2010, 0.0
  %vm2019 = vcmp.gt.f32.partialorder %v2011, 0.0
  %vm2020 = vcmp.gt.f32.partialorder %v2012, 0.0
  %v2021 = vmul.f32 %v2005, 0.01
  %v2022 = vmul.f32 %v2006, 0.01
  %v2023 = vmul.f32 %v2007, 0.01
  %v2024 = vmul.f32 %v2008, 0.01
  %v2025 = vmul.f32 %v2009, 0.01
  %v2026 = vmul.f32 %v2010, 0.01
  %v2027 = vmul.f32 %v2011, 0.01
  %v2028 = vmul.f32 %v2012, 0.01
  %v2029 = vsel %vm2013, %v2005, %v2021
  %v2030 = vsel %vm2014, %v2006, %v2022
  %v2031 = vsel %vm2015, %v2007, %v2023
  %v2032 = vsel %vm2016, %v2008, %v2024
  %v2033 = vsel %vm2017, %v2009, %v2025
  %v2034 = vsel %vm2018, %v2010, %v2026
  %v2035 = vsel %vm2019, %v2011, %v2027
  %v2036 = vsel %vm2020, %v2012, %v2028
  %v2037 = vld [vmem:[%s10] sm:$0xff]
  %v2038 = vld [vmem:[%s10 + $0x8] sm:$0xff]
  %v2039 = vld [vmem:[%s10 + $0x10] sm:$0xff]
  %v2040 = vld [vmem:[%s10 + $0x18] sm:$0xff]
  %v2041 = vld [vmem:[%s11] sm:$0x1]
  %v2043 = vlaneseq
  %v2044 = vshrl.u32 %v2043, 7
  %v2045 = vsub.s32 0, %v2044
  %v2046 = vrot.slane %v2041, %v2045
  %v2049 = vsel %vm1880, %v2029, 0
  %v2052 = vsel %vm1880, %v2030, 0
  %v2055 = vsel %vm1880, %v2031, 0
  %v2058 = vsel %vm1880, %v2032, 0
  %v2061 = vsel %vm1880, %v2033, 0
  %v2064 = vsel %vm1880, %v2034, 0
  %v2067 = vsel %vm1880, %v2035, 0
  %v2070 = vsel %vm1880, %v2036, 0
  %2072 = vmatprep.subr.mxu0 0.0
  %2073 = vmatpush1.msra.mxu0 %v2037
  %2074 = vmatprep.subr.mxu0 0.0
  %2075 = vmatpush1.msra.mxu0 %v2038
  %2076 = vmatprep.subr.mxu0 0.0
  %2077 = vmatpush1.msra.mxu0 %v2039
  %2078 = vmatprep.subr.mxu0 0.0
  %2079 = vmatpush1.msra.mxu0 %v2040
  %2080 = vmatprep.subr.mxu0 0.0
  %2081 = vmatpush1.msra.mxu0 0.0
  %2082 = vmatprep.subr.mxu0 0.0
  %2083 = vmatpush1.msra.mxu0 0.0
  %2084 = vmatprep.subr.mxu0 0.0
  %2085 = vmatpush1.msra.mxu0 0.0
  %2086 = vmatprep.subr.mxu0 0.0
  %2087 = vmatpush1.msra.mxu0 0.0
  %2088 = vmatprep.subr.mxu0 0.0
  %2089 = vmatpush1.msra.mxu0 0.0
  %2090 = vmatprep.subr.mxu0 0.0
  %2091 = vmatpush1.msra.mxu0 0.0
  %2092 = vmatprep.subr.mxu0 0.0
  %2093 = vmatpush1.msra.mxu0 0.0
  %2094 = vmatprep.subr.mxu0 0.0
  %2095 = vmatpush1.msra.mxu0 0.0
  %2096 = vmatprep.subr.mxu0 0.0
  %2097 = vmatpush1.msra.mxu0 0.0
  %2098 = vmatprep.subr.mxu0 0.0
  %2099 = vmatpush1.msra.mxu0 0.0
  %2100 = vmatprep.subr.mxu0 0.0
  %2101 = vmatpush1.msra.mxu0 0.0
  %2102 = vmatprep.subr.mxu0 0.0
  %2103 = vmatpush1.msra.mxu0 0.0
  %2104 = vmatprep.subr.mxu0 0.0
  %2105 = vmatpush1.msra.mxu0 0.0
  %2106 = vmatprep.subr.mxu0 0.0
  %2107 = vmatpush1.msra.mxu0 0.0
  %2108 = vmatprep.subr.mxu0 0.0
  %2109 = vmatpush1.msra.mxu0 0.0
  %2110 = vmatprep.subr.mxu0 0.0
  %2111 = vmatpush1.msra.mxu0 0.0
  %2112 = vmatprep.subr.mxu0 0.0
  %2113 = vmatpush1.msra.mxu0 0.0
  %2114 = vmatprep.subr.mxu0 0.0
  %2115 = vmatpush1.msra.mxu0 0.0
  %2116 = vmatprep.subr.mxu0 0.0
  %2117 = vmatpush1.msra.mxu0 0.0
  %2118 = vmatprep.subr.mxu0 0.0
  %2119 = vmatpush1.msra.mxu0 0.0
  %2120 = vmatprep.subr.mxu0 0.0
  %2121 = vmatpush1.msra.mxu0 0.0
  %2122 = vmatprep.subr.mxu0 0.0
  %2123 = vmatpush1.msra.mxu0 0.0
  %2124 = vmatprep.subr.mxu0 0.0
  %2125 = vmatpush1.msra.mxu0 0.0
  %2126 = vmatprep.subr.mxu0 0.0
  %2127 = vmatpush1.msra.mxu0 0.0
  %2128 = vmatprep.subr.mxu0 0.0
  %2129 = vmatpush1.msra.mxu0 0.0
  %2130 = vmatprep.subr.mxu0 0.0
  %2131 = vmatpush1.msra.mxu0 0.0
  %2132 = vmatprep.subr.mxu0 0.0
  %2133 = vmatpush1.msra.mxu0 0.0
  %2134 = vmatprep.subr.mxu0 0.0
  %2135 = vmatpush1.msra.mxu0 0.0
  %2136 = vmatprep.mubr.f32.mxu0 0.0
  %2137 = vmatmul.mubr.f32.gmra.mrb[0].mxu0 %v2049
  %v2138 = vpop.f32.mrb[0].mxu0
  %v2139 = vadd.f32 %v2046, %v2138
  %v2140 = vpop.f32.mrb[0].mxu0
  %2141 = vmatprep.mubr.f32.mxu0 0.0
  %2142 = vmatmul.mubr.f32.gmra.mrb[0].mxu0 %v2052
  %v2143 = vpop.f32.mrb[0].mxu0
  %v2144 = vadd.f32 %v2046, %v2143
  %v2145 = vpop.f32.mrb[0].mxu0
  %2146 = vmatprep.mubr.f32.mxu0 0.0
  %2147 = vmatmul.mubr.f32.gmra.mrb[0].mxu0 %v2055
  %v2148 = vpop.f32.mrb[0].mxu0
  %v2149 = vadd.f32 %v2046, %v2148
  %v2150 = vpop.f32.mrb[0].mxu0
  %2151 = vmatprep.mubr.f32.mxu0 0.0
  %2152 = vmatmul.mubr.f32.gmra.mrb[0].mxu0 %v2058
  %v2153 = vpop.f32.mrb[0].mxu0
  %v2154 = vadd.f32 %v2046, %v2153
  %v2155 = vpop.f32.mrb[0].mxu0
  %2156 = vmatprep.mubr.f32.mxu0 0.0
  %2157 = vmatmul.mubr.f32.gmra.mrb[0].mxu0 %v2061
  %v2158 = vpop.f32.mrb[0].mxu0
  %v2159 = vadd.f32 %v2046, %v2158
  %v2160 = vpop.f32.mrb[0].mxu0
  %2161 = vmatprep.mubr.f32.mxu0 0.0
  %2162 = vmatmul.mubr.f32.gmra.mrb[0].mxu0 %v2064
  %v2163 = vpop.f32.mrb[0].mxu0
  %v2164 = vadd.f32 %v2046, %v2163
  %v2165 = vpop.f32.mrb[0].mxu0
  %2166 = vmatprep.mubr.f32.mxu0 0.0
  %2167 = vmatmul.mubr.f32.gmra.mrb[0].mxu0 %v2067
  %v2168 = vpop.f32.mrb[0].mxu0
  %v2169 = vadd.f32 %v2046, %v2168
  %v2170 = vpop.f32.mrb[0].mxu0
  %2171 = vmatprep.mubr.f32.mxu0 0.0
  %2172 = vmatmul.mubr.f32.gmra.mrb[0].mxu0 %v2070
  %v2173 = vpop.f32.mrb[0].mxu0
  %v2174 = vadd.f32 %v2046, %v2173
  %v2175 = vpop.f32.mrb[0].mxu0
  %2176 = vdwg.mxu0
  %v2177 = vld [vmem:[%s12] sm:$0x1]
  %v2178 = vld [vmem:[%s13] sm:$0x1]
  %vm2179 = vcmask 130048
  %v2180 = vsel %vm2179, %v2139, 0.0
  %2181 = vadd.xlane.f32.xlu0 %v2180
  %v2182 = vpop.xlane.xlu0 %2181
  %v2183 = vsel %vm2179, %v2144, 0.0
  %2184 = vadd.xlane.f32.xlu0 %v2183
  %v2185 = vpop.xlane.xlu0 %2184
  %v2186 = vsel %vm2179, %v2149, 0.0
  %2187 = vadd.xlane.f32.xlu0 %v2186
  %v2188 = vpop.xlane.xlu0 %2187
  %v2189 = vsel %vm2179, %v2154, 0.0
  %2190 = vadd.xlane.f32.xlu0 %v2189
  %v2191 = vpop.xlane.xlu0 %2190
  %v2192 = vsel %vm2179, %v2159, 0.0
  %2193 = vadd.xlane.f32.xlu0 %v2192
  %v2194 = vpop.xlane.xlu0 %2193
  %v2195 = vsel %vm2179, %v2164, 0.0
  %2196 = vadd.xlane.f32.xlu0 %v2195
  %v2197 = vpop.xlane.xlu0 %2196
  %v2198 = vsel %vm2179, %v2169, 0.0
  %2199 = vadd.xlane.f32.xlu0 %v2198
  %v2200 = vpop.xlane.xlu0 %2199
  %v2201 = vsel %vm2179, %v2174, 0.0
  %2202 = vadd.xlane.f32.xlu0 %v2201
  %v2203 = vpop.xlane.xlu0 %2202
  %v2204 = vmul.f32 %v2182, 0.0625
  %v2205 = vmul.f32 %v2185, 0.0625
  %v2206 = vmul.f32 %v2188, 0.0625
  %v2207 = vmul.f32 %v2191, 0.0625
  %v2208 = vmul.f32 %v2194, 0.0625
  %v2209 = vmul.f32 %v2197, 0.0625
  %v2210 = vmul.f32 %v2200, 0.0625
  %v2211 = vmul.f32 %v2203, 0.0625
  %v2212 = vsub.f32 %v2139, %v2204
  %v2213 = vsub.f32 %v2144, %v2205
  %v2214 = vsub.f32 %v2149, %v2206
  %v2215 = vsub.f32 %v2154, %v2207
  %v2216 = vsub.f32 %v2159, %v2208
  %v2217 = vsub.f32 %v2164, %v2209
  %v2218 = vsub.f32 %v2169, %v2210
  %v2219 = vsub.f32 %v2174, %v2211
  %v2220 = vmul.f32 %v2212, %v2212
  %v2221 = vmul.f32 %v2213, %v2213
  %v2222 = vmul.f32 %v2214, %v2214
  %v2223 = vmul.f32 %v2215, %v2215
  %v2224 = vmul.f32 %v2216, %v2216
  %v2225 = vmul.f32 %v2217, %v2217
  %v2226 = vmul.f32 %v2218, %v2218
  %v2227 = vmul.f32 %v2219, %v2219
  %v2228 = vsel %vm2179, %v2220, 0.0
  %2229 = vadd.xlane.f32.xlu0 %v2228
  %v2230 = vpop.xlane.xlu0 %2229
  %v2231 = vsel %vm2179, %v2221, 0.0
  %2232 = vadd.xlane.f32.xlu0 %v2231
  %v2233 = vpop.xlane.xlu0 %2232
  %v2234 = vsel %vm2179, %v2222, 0.0
  %2235 = vadd.xlane.f32.xlu0 %v2234
  %v2236 = vpop.xlane.xlu0 %2235
  %v2237 = vsel %vm2179, %v2223, 0.0
  %2238 = vadd.xlane.f32.xlu0 %v2237
  %v2239 = vpop.xlane.xlu0 %2238
  %v2240 = vsel %vm2179, %v2224, 0.0
  %2241 = vadd.xlane.f32.xlu0 %v2240
  %v2242 = vpop.xlane.xlu0 %2241
  %v2243 = vsel %vm2179, %v2225, 0.0
  %2244 = vadd.xlane.f32.xlu0 %v2243
  %v2245 = vpop.xlane.xlu0 %2244
  %v2246 = vsel %vm2179, %v2226, 0.0
  %2247 = vadd.xlane.f32.xlu0 %v2246
  %v2248 = vpop.xlane.xlu0 %2247
  %v2249 = vsel %vm2179, %v2227, 0.0
  %2250 = vadd.xlane.f32.xlu0 %v2249
  %v2251 = vpop.xlane.xlu0 %2250
  %v2252 = vmul.f32 %v2230, 0.0625
  %v2253 = vmul.f32 %v2233, 0.0625
  %v2254 = vmul.f32 %v2236, 0.0625
  %v2255 = vmul.f32 %v2239, 0.0625
  %v2256 = vmul.f32 %v2242, 0.0625
  %v2257 = vmul.f32 %v2245, 0.0625
  %v2258 = vmul.f32 %v2248, 0.0625
  %v2259 = vmul.f32 %v2251, 0.0625
  %v2260 = vadd.f32 %v2252, 1e-05
  %v2261 = vadd.f32 %v2253, 1e-05
  %v2262 = vadd.f32 %v2254, 1e-05
  %v2263 = vadd.f32 %v2255, 1e-05
  %v2264 = vadd.f32 %v2256, 1e-05
  %v2265 = vadd.f32 %v2257, 1e-05
  %v2266 = vadd.f32 %v2258, 1e-05
  %v2267 = vadd.f32 %v2259, 1e-05
  %v2268 = vrsqrt.pop %v2260
  %v2269 = vrsqrt.pop %v2261
  %v2270 = vrsqrt.pop %v2262
  %v2271 = vrsqrt.pop %v2263
  %v2272 = vrsqrt.pop %v2264
  %v2273 = vrsqrt.pop %v2265
  %v2274 = vrsqrt.pop %v2266
  %v2275 = vrsqrt.pop %v2267
  %v2277 = vlaneseq
  %v2278 = vshrl.u32 %v2277, 7
  %v2279 = vsub.s32 0, %v2278
  %v2280 = vrot.slane %v2177, %v2279
  %v2282 = vmul.f32 %v2280, %v2268
  %v2283 = vmul.f32 %v2280, %v2269
  %v2284 = vmul.f32 %v2280, %v2270
  %v2285 = vmul.f32 %v2280, %v2271
  %v2286 = vmul.f32 %v2280, %v2272
  %v2287 = vmul.f32 %v2280, %v2273
  %v2288 = vmul.f32 %v2280, %v2274
  %v2289 = vmul.f32 %v2280, %v2275
  %v2290 = vmul.f32 %v2212, %v2282
  %v2291 = vmul.f32 %v2213, %v2283
  %v2292 = vmul.f32 %v2214, %v2284
  %v2293 = vmul.f32 %v2215, %v2285
  %v2294 = vmul.f32 %v2216, %v2286
  %v2295 = vmul.f32 %v2217, %v2287
  %v2296 = vmul.f32 %v2218, %v2288
  %v2297 = vmul.f32 %v2219, %v2289
  %v2299 = vlaneseq
  %v2300 = vshrl.u32 %v2299, 7
  %v2301 = vsub.s32 0, %v2300
  %v2302 = vrot.slane %v2178, %v2301
  %v2304 = vadd.f32 %v2290, %v2302
  %v2305 = vadd.f32 %v2291, %v2302
  %v2306 = vadd.f32 %v2292, %v2302
  %v2307 = vadd.f32 %v2293, %v2302
  %v2308 = vadd.f32 %v2294, %v2302
  %v2309 = vadd.f32 %v2295, %v2302
  %v2310 = vadd.f32 %v2296, %v2302
  %v2311 = vadd.f32 %v2297, %v2302
  %vm2312 = vcmp.gt.f32.partialorder %v2304, 0.0
  %vm2313 = vcmp.gt.f32.partialorder %v2305, 0.0
  %vm2314 = vcmp.gt.f32.partialorder %v2306, 0.0
  %vm2315 = vcmp.gt.f32.partialorder %v2307, 0.0
  %vm2316 = vcmp.gt.f32.partialorder %v2308, 0.0
  %vm2317 = vcmp.gt.f32.partialorder %v2309, 0.0
  %vm2318 = vcmp.gt.f32.partialorder %v2310, 0.0
  %vm2319 = vcmp.gt.f32.partialorder %v2311, 0.0
  %v2320 = vmul.f32 %v2304, 0.01
  %v2321 = vmul.f32 %v2305, 0.01
  %v2322 = vmul.f32 %v2306, 0.01
  %v2323 = vmul.f32 %v2307, 0.01
  %v2324 = vmul.f32 %v2308, 0.01
  %v2325 = vmul.f32 %v2309, 0.01
  %v2326 = vmul.f32 %v2310, 0.01
  %v2327 = vmul.f32 %v2311, 0.01
  %v2328 = vsel %vm2312, %v2304, %v2320
  %v2329 = vsel %vm2313, %v2305, %v2321
  %v2330 = vsel %vm2314, %v2306, %v2322
  %v2331 = vsel %vm2315, %v2307, %v2323
  %v2332 = vsel %vm2316, %v2308, %v2324
  %v2333 = vsel %vm2317, %v2309, %v2325
  %v2334 = vsel %vm2318, %v2310, %v2326
  %v2335 = vsel %vm2319, %v2311, %v2327
  %v2336 = vld [vmem:[%s14] sm:$0xff]
  %v2337 = vld [vmem:[%s14 + $0x8] sm:$0xff]
  %v2338 = vld [vmem:[%s15] sm:$0x1]
  %v2340 = vlaneseq
  %v2341 = vshrl.u32 %v2340, 7
  %v2342 = vsub.s32 0, %v2341
  %v2343 = vrot.slane %v2338, %v2342
  %v2346 = vsel %vm2179, %v2328, 0
  %v2349 = vsel %vm2179, %v2329, 0
  %v2352 = vsel %vm2179, %v2330, 0
  %v2355 = vsel %vm2179, %v2331, 0
  %v2358 = vsel %vm2179, %v2332, 0
  %v2361 = vsel %vm2179, %v2333, 0
  %v2364 = vsel %vm2179, %v2334, 0
  %v2367 = vsel %vm2179, %v2335, 0
  %2369 = vmatprep.subr.mxu0 0.0
  %2370 = vmatpush1.msra.mxu0 %v2336
  %2371 = vmatprep.subr.mxu0 0.0
  %2372 = vmatpush1.msra.mxu0 %v2337
  %2373 = vmatprep.subr.mxu0 0.0
  %2374 = vmatpush1.msra.mxu0 0.0
  %2375 = vmatprep.subr.mxu0 0.0
  %2376 = vmatpush1.msra.mxu0 0.0
  %2377 = vmatprep.subr.mxu0 0.0
  %2378 = vmatpush1.msra.mxu0 0.0
  %2379 = vmatprep.subr.mxu0 0.0
  %2380 = vmatpush1.msra.mxu0 0.0
  %2381 = vmatprep.subr.mxu0 0.0
  %2382 = vmatpush1.msra.mxu0 0.0
  %2383 = vmatprep.subr.mxu0 0.0
  %2384 = vmatpush1.msra.mxu0 0.0
  %2385 = vmatprep.subr.mxu0 0.0
  %2386 = vmatpush1.msra.mxu0 0.0
  %2387 = vmatprep.subr.mxu0 0.0
  %2388 = vmatpush1.msra.mxu0 0.0
  %2389 = vmatprep.subr.mxu0 0.0
  %2390 = vmatpush1.msra.mxu0 0.0
  %2391 = vmatprep.subr.mxu0 0.0
  %2392 = vmatpush1.msra.mxu0 0.0
  %2393 = vmatprep.subr.mxu0 0.0
  %2394 = vmatpush1.msra.mxu0 0.0
  %2395 = vmatprep.subr.mxu0 0.0
  %2396 = vmatpush1.msra.mxu0 0.0
  %2397 = vmatprep.subr.mxu0 0.0
  %2398 = vmatpush1.msra.mxu0 0.0
  %2399 = vmatprep.subr.mxu0 0.0
  %2400 = vmatpush1.msra.mxu0 0.0
  %2401 = vmatprep.subr.mxu0 0.0
  %2402 = vmatpush1.msra.mxu0 0.0
  %2403 = vmatprep.subr.mxu0 0.0
  %2404 = vmatpush1.msra.mxu0 0.0
  %2405 = vmatprep.subr.mxu0 0.0
  %2406 = vmatpush1.msra.mxu0 0.0
  %2407 = vmatprep.subr.mxu0 0.0
  %2408 = vmatpush1.msra.mxu0 0.0
  %2409 = vmatprep.subr.mxu0 0.0
  %2410 = vmatpush1.msra.mxu0 0.0
  %2411 = vmatprep.subr.mxu0 0.0
  %2412 = vmatpush1.msra.mxu0 0.0
  %2413 = vmatprep.subr.mxu0 0.0
  %2414 = vmatpush1.msra.mxu0 0.0
  %2415 = vmatprep.subr.mxu0 0.0
  %2416 = vmatpush1.msra.mxu0 0.0
  %2417 = vmatprep.subr.mxu0 0.0
  %2418 = vmatpush1.msra.mxu0 0.0
  %2419 = vmatprep.subr.mxu0 0.0
  %2420 = vmatpush1.msra.mxu0 0.0
  %2421 = vmatprep.subr.mxu0 0.0
  %2422 = vmatpush1.msra.mxu0 0.0
  %2423 = vmatprep.subr.mxu0 0.0
  %2424 = vmatpush1.msra.mxu0 0.0
  %2425 = vmatprep.subr.mxu0 0.0
  %2426 = vmatpush1.msra.mxu0 0.0
  %2427 = vmatprep.subr.mxu0 0.0
  %2428 = vmatpush1.msra.mxu0 0.0
  %2429 = vmatprep.subr.mxu0 0.0
  %2430 = vmatpush1.msra.mxu0 0.0
  %2431 = vmatprep.subr.mxu0 0.0
  %2432 = vmatpush1.msra.mxu0 0.0
  %2433 = vmatprep.mubr.f32.mxu0 0.0
  %2434 = vmatmul.mubr.f32.gmra.mrb[0].mxu0 %v2346
  %v2435 = vpop.f32.mrb[0].mxu0
  %v2436 = vadd.f32 %v2343, %v2435
  %v2437 = vpop.f32.mrb[0].mxu0
  %2438 = vmatprep.mubr.f32.mxu0 0.0
  %2439 = vmatmul.mubr.f32.gmra.mrb[0].mxu0 %v2349
  %v2440 = vpop.f32.mrb[0].mxu0
  %v2441 = vadd.f32 %v2343, %v2440
  %v2442 = vpop.f32.mrb[0].mxu0
  %2443 = vmatprep.mubr.f32.mxu0 0.0
  %2444 = vmatmul.mubr.f32.gmra.mrb[0].mxu0 %v2352
  %v2445 = vpop.f32.mrb[0].mxu0
  %v2446 = vadd.f32 %v2343, %v2445
  %v2447 = vpop.f32.mrb[0].mxu0
  %2448 = vmatprep.mubr.f32.mxu0 0.0
  %2449 = vmatmul.mubr.f32.gmra.mrb[0].mxu0 %v2355
  %v2450 = vpop.f32.mrb[0].mxu0
  %v2451 = vadd.f32 %v2343, %v2450
  %v2452 = vpop.f32.mrb[0].mxu0
  %2453 = vmatprep.mubr.f32.mxu0 0.0
  %2454 = vmatmul.mubr.f32.gmra.mrb[0].mxu0 %v2358
  %v2455 = vpop.f32.mrb[0].mxu0
  %v2456 = vadd.f32 %v2343, %v2455
  %v2457 = vpop.f32.mrb[0].mxu0
  %2458 = vmatprep.mubr.f32.mxu0 0.0
  %2459 = vmatmul.mubr.f32.gmra.mrb[0].mxu0 %v2361
  %v2460 = vpop.f32.mrb[0].mxu0
  %v2461 = vadd.f32 %v2343, %v2460
  %v2462 = vpop.f32.mrb[0].mxu0
  %2463 = vmatprep.mubr.f32.mxu0 0.0
  %2464 = vmatmul.mubr.f32.gmra.mrb[0].mxu0 %v2364
  %v2465 = vpop.f32.mrb[0].mxu0
  %v2466 = vadd.f32 %v2343, %v2465
  %v2467 = vpop.f32.mrb[0].mxu0
  %2468 = vmatprep.mubr.f32.mxu0 0.0
  %2469 = vmatmul.mubr.f32.gmra.mrb[0].mxu0 %v2367
  %v2470 = vpop.f32.mrb[0].mxu0
  %v2471 = vadd.f32 %v2343, %v2470
  %v2472 = vpop.f32.mrb[0].mxu0
  %2473 = vdwg.mxu0
  %v2474 = vtanh.pop %v2436
  %v2475 = vtanh.pop %v2441
  %v2476 = vtanh.pop %v2446
  %v2477 = vtanh.pop %v2451
  %v2478 = vtanh.pop %v2456
  %v2479 = vtanh.pop %v2461
  %v2480 = vtanh.pop %v2466
  %v2481 = vtanh.pop %v2471
  %2482 = vst [vmem:[%s16] sm:$0xff] %v2474
  %2483 = vst [vmem:[%s16 + $0x8] sm:$0xff] %v2475
  %2484 = vst [vmem:[%s16 + $0x10] sm:$0xff] %v2476
  %2485 = vst [vmem:[%s16 + $0x18] sm:$0xff] %v2477
  %2486 = vst [vmem:[%s16 + $0x20] sm:$0xff] %v2478
  %2487 = vst [vmem:[%s16 + $0x28] sm:$0xff] %v2479
  %2488 = vst [vmem:[%s16 + $0x30] sm:$0xff] %v2480
  %2489 = vst [vmem:[%s16 + $0x38] sm:$0xff] %v2481
  // Predicated region
  $region66: #{gru_policy_forward.1} parent=0 // pred_check
    _
  $region67: #{gru_policy_forward.1} parent=0 // pred_check_branch
    %2491 = sbr.rel (0) target = $region69
  $region68: #{gru_policy_forward.1} parent=0 // pred_region
    _
  $region69: #{gru_policy_forward.1} parent=0 // pred_fallthru
    _
  // Predicated region
  $region70: #{gru_policy_forward.1} parent=0 // pred_check
    _
  $region71: #{gru_policy_forward.1} parent=0 // pred_check_branch
    %2493 = sbr.rel (0) target = $region73
  $region72: #{gru_policy_forward.1} parent=0 // pred_region
    _
  $region73: #{gru_policy_forward.1} parent=0 // pred_fallthru
    _
  // Predicated region
  $region74: #{gru_policy_forward.1} parent=0 // pred_check
    _
  $region75: #{gru_policy_forward.1} parent=0 // pred_check_branch
    %2495 = sbr.rel (0) target = $region77
  $region76: #{gru_policy_forward.1} parent=0 // pred_region
    _
  $region77: #{gru_policy_forward.1} parent=0 // pred_fallthru
    _
  // Predicated region
  $region78: #{gru_policy_forward.1} parent=0 // pred_check
    _
  $region79: #{gru_policy_forward.1} parent=0 // pred_check_branch
    %2497 = sbr.rel (0) target = $region81
  $region80: #{gru_policy_forward.1} parent=0 // pred_region
    _
  $region81: #{gru_policy_forward.1} parent=0 // pred_fallthru
    _

</llo_original>
